<compile_context>
chip_gen: v6e
topology: v6e:2x2x1
jax: 0.10.0
libtpu: 0.0.40
codegen_flags: <defaults>
</compile_context>

<pallas_src>
import functools

import jax
import jax.numpy as jnp
from jax import lax
from jax.experimental import pallas as pl
from jax.experimental.pallas import tpu as pltpu


def _phase_taps(kernel_size, pad):
    """For stride=2: per output parity r, list of (k, t) with k ≡ (r+pad) (mod 2),
    t = (r + pad - k)//2, so the contributing input index is q + t."""
    taps = []
    for r in (0, 1):
        lst = [(k, (r + pad - k) // 2) for k in range(kernel_size)
               if (k % 2) == ((r + pad) % 2)]
        taps.append(lst)
    return taps


def _pick_cout_tile(cout):
    """Cout block so the lane dim of every block is either a 128-multiple or the full dim."""
    if cout >= 256 and cout % 256 == 0:
        return 256
    if cout >= 128 and cout % 128 == 0:
        return 128
    return cout


def _deconv_phase_kernel(x_ref, w0_ref, w1_ref, w2_ref, w3_ref,
                         y_ref, sum_ref, ssq_ref, *,
                         phase_slices, Hq, Wq, fuse_taps, channels_last):
    """Transposed conv for one (batch, Cout-block) grid point via 4 parity phases,
    plus per-batch partial BN statistics.

    x_ref : (1, Hpad, Wpad, Cin) bf16      — padded NHWC input (one batch element)
    w*_ref: fused: (ntaps_p*Cin, tc) bf16  — per-phase weight matrix
            taps : (ntaps_p, Cin, tc) bf16 — per-phase per-tap weights
    y_ref : (1, 4, tc, L) or (1, 4, L, tc) bf16 — per-phase conv output, lane-dense
    sum_ref / ssq_ref: (1, 1, tc) f32      — per-batch partial BN statistics
    """
    w_refs = (w0_ref, w1_ref, w2_ref, w3_ref)
    L = Hq * Wq
    tc = sum_ref.shape[-1]

    s_acc = jnp.zeros((1, tc), jnp.float32)
    q_acc = jnp.zeros((1, tc), jnp.float32)

    for p in range(4):                                   # 4 phases, statically unrolled
        starts = phase_slices[p]
        if fuse_taps:
            # Small Cin: fold all taps into a single MXU dot via an (L, ntaps*Cin) patch.
            slices = [x_ref[0, r0:r0 + Hq, c0:c0 + Wq, :] for (r0, c0) in starts]
            patch = slices[0] if len(slices) == 1 else jnp.concatenate(slices, axis=-1)
            acc = jnp.dot(patch.reshape(L, -1), w_refs[p][...],
                          preferred_element_type=jnp.float32)        # (L, tc) f32
        else:
            # Large Cin: chained per-tap dots, f32 accumulation, no patch concatenate copy.
            acc = jnp.zeros((L, tc), jnp.float32)
            for i, (r0, c0) in enumerate(starts):
                xs = x_ref[0, r0:r0 + Hq, c0:c0 + Wq, :].reshape(L, -1)   # (L, Cin)
                acc = acc + jnp.dot(xs, w_refs[p][i],
                                    preferred_element_type=jnp.float32)

        # BN partial stats from the f32 accumulator (before the bf16 cast).
        s_acc = s_acc + jnp.sum(acc, axis=0, keepdims=True)
        q_acc = q_acc + jnp.sum(acc * acc, axis=0, keepdims=True)

        if channels_last:
            y_ref[0, p, :, :] = acc.astype(y_ref.dtype)       # (L, tc): Cout on lanes
        else:
            y_ref[0, p, :, :] = acc.T.astype(y_ref.dtype)     # (tc, L): spatial on lanes

    sum_ref[...] = s_acc.reshape(sum_ref.shape)
    ssq_ref[...] = q_acc.reshape(ssq_ref.shape)


def unet_deconv_block(x, residual, params, *, kernel_size, activation='relu',
                      eps=1e-5):
    """Forward pass of UNetDeconvBlock (dropout=0 -> Identity)."""
    if activation not in ('relu', 'sigmoid'):
        raise ValueError(f'Invalid activation: {activation}')
    if kernel_size % 2 != 1:
        raise ValueError('only odd kernel_size is supported')

    if residual is not None:
        x = jnp.concatenate([x, residual], axis=1)       # NCHW concat on C
    N, Cin, H, W = x.shape
    K = kernel_size
    pad = K // 2
    Hq, Wq = H, W                                        # per-phase output size
    Ho, Wo = 2 * H, 2 * W                                # stride=2, out_pad=1, odd K
    L = Hq * Wq

    wt = params['weight']                                # (Cin, Cout, K, K) PyTorch layout
    gamma = params['gamma'].astype(jnp.float32)
    beta = params['beta'].astype(jnp.float32)
    Cout = wt.shape[1]
    # ConvTranspose bias dropped — exactly cancelled by training-mode BatchNorm.

    tc = _pick_cout_tile(Cout)
    n_cb = Cout // tc
    channels_last = Cout >= 128                          # skip acc.T for real UNet widths
    fuse_taps = Cin < 128                                # avoid concat copy for big Cin

    # ---- static tap / phase bookkeeping ------------------------------------
    taps_r = _phase_taps(K, pad)                         # per parity: [(k, t), ...]
    t_min = min(t for lst in taps_r for (_, t) in lst)
    t_max = max(t for lst in taps_r for (_, t) in lst)
    pad_lo = max(0, -t_min)
    pad_hi = max(0, t_max)

    phase_slices = []                                    # per phase: ((row0, col0), ...)
    w_arrays = []                                        # per phase weight array (bf16)
    for ry in (0, 1):
        for rx in (0, 1):
            taps = [(ty, tx, ky, kx)
                    for (ky, ty) in taps_r[ry] for (kx, tx) in taps_r[rx]]
            phase_slices.append(tuple((ty + pad_lo, tx + pad_lo)
                                      for (ty, tx, _, _) in taps))
            wm = jnp.stack([wt[:, :, ky, kx] for (_, _, ky, kx) in taps], axis=0)
            if fuse_taps:
                wm = wm.reshape(-1, Cout)                # (ntaps*Cin, Cout)
            w_arrays.append(wm.astype(jnp.bfloat16))     # else (ntaps, Cin, Cout)
    phase_slices = tuple(phase_slices)

    # ---- input prep: NHWC, bf16, small zero halo ---------------------------
    x_nhwc = jnp.transpose(x, (0, 2, 3, 1)).astype(jnp.bfloat16)
    xpad = jnp.pad(x_nhwc, ((0, 0), (pad_lo, pad_hi), (pad_lo, pad_hi), (0, 0)))
    Hpad, Wpad = xpad.shape[1], xpad.shape[2]

    # ---- BlockSpecs ---------------------------------------------------------
    if fuse_taps:
        w_specs = [pl.BlockSpec((w.shape[0], tc), lambda n, c: (0, c))
                   for w in w_arrays]
    else:
        w_specs = [pl.BlockSpec((w.shape[0], w.shape[1], tc), lambda n, c: (0, 0, c))
                   for w in w_arrays]

    if channels_last:
        y_shape, y_block = (N, 4, L, Cout), (1, 4, L, tc)
        y_map = lambda n, c: (n, 0, 0, c)
    else:
        y_shape, y_block = (N, 4, Cout, L), (1, 4, tc, L)
        y_map = lambda n, c: (n, 0, c, 0)

    # ---- explicit VMEM budget (double-buffered blocks + weights + temps) ---
    lane = 128
    x_blk = Hpad * Wpad * max(Cin, lane) * 2
    y_blk = 4 * L * max(tc, lane) * 2
    w_blk = sum((int(w.size) // n_cb) * 2 for w in w_arrays)
    tmp = 4 * L * max(tc, lane) * 4                      # f32 accumulator / patch temps
    est = 2 * (x_blk + y_blk) + 2 * w_blk + tmp
    try:
        cap = int(0.75 * pltpu.get_tpu_info().vmem_capacity_bytes)
    except Exception:
        cap = 48 * 1024 * 1024                           # safe on v5e/v6e/v7x
    vmem_limit = int(min(cap, max(32 * 1024 * 1024, 3 * est + 8 * 1024 * 1024)))

    # ---- pass 1: transposed conv (phase layout, bf16) + per-batch BN partials
    conv_kernel = functools.partial(
        _deconv_phase_kernel, phase_slices=phase_slices, Hq=Hq, Wq=Wq,
        fuse_taps=fuse_taps, channels_last=channels_last)

    y_ph, psum, pssq = pl.pallas_call(
        conv_kernel,
        out_shape=(
            jax.ShapeDtypeStruct(y_shape, jnp.bfloat16),
            jax.ShapeDtypeStruct((N, 1, Cout), jnp.float32),
            jax.ShapeDtypeStruct((N, 1, Cout), jnp.float32),
        ),
        grid_spec=pltpu.PrefetchScalarGridSpec(
            num_scalar_prefetch=0,
            grid=(N, n_cb),
            in_specs=[pl.BlockSpec((1, Hpad, Wpad, Cin), lambda n, c: (n, 0, 0, 0))]
                     + w_specs,
            out_specs=(
                pl.BlockSpec(y_block, y_map),
                pl.BlockSpec((1, 1, tc), lambda n, c: (n, 0, c)),
                pl.BlockSpec((1, 1, tc), lambda n, c: (n, 0, c)),
            ),
        ),
        compiler_params=pltpu.CompilerParams(
            dimension_semantics=("parallel", "parallel"),
            vmem_limit_bytes=vmem_limit),
    )(xpad, *w_arrays)

    # ---- BatchNorm2d training-mode statistics (tiny per-channel math, f32) -
    count = jnp.float32(N * Ho * Wo)
    mean = jnp.sum(psum, axis=(0, 1)) / count            # (Cout,)
    # Note: E[x^2]-E[x]^2 in f32; fine at these scales (flagged in review for huge |mean|/std).
    var = jnp.sum(pssq, axis=(0, 1)) / count - mean * mean
    scale = gamma * lax.rsqrt(var + eps)                 # (Cout,)
    shift = beta - mean * scale

    # ---- epilogue: BN affine + activation fused (by XLA) into the single
    #      phase -> NCHW interleave: one bf16 read + one f32 write of the output.
    z = y_ph.astype(jnp.float32)
    if channels_last:
        z = z * scale[None, None, None, :] + shift[None, None, None, :]
    else:
        z = z * scale[None, None, :, None] + shift[None, None, :, None]
    z = jnp.maximum(z, 0.0) if activation == 'relu' else jax.nn.sigmoid(z)
    if channels_last:
        out = z.reshape(N, 2, 2, Hq, Wq, Cout).transpose(0, 5, 3, 1, 4, 2)
    else:
        out = z.reshape(N, 2, 2, Cout, Hq, Wq).transpose(0, 3, 4, 1, 5, 2)
    # (n, c, qy, ry, qx, rx) -> (N, Cout, Ho, Wo).  Final dtype kept f32 to match the module;
    # a bf16-consuming next layer could take bf16 here to halve the final write.
    return out.reshape(N, Cout, Ho, Wo)


def _reference(x, residual, params, *, kernel_size, activation='relu', eps=1e-5):
    """Pure-JAX reference (XLA dilated conv, bf16 operands / f32 accumulation)."""
    if residual is not None:
        x = jnp.concatenate([x, residual], axis=1)
    K = kernel_size
    stride, pad, out_pad = 2, K // 2, 1
    wt, bias = params['weight'], params['bias']
    gamma, beta = params['gamma'], params['beta']
    p_lo = K - 1 - pad
    p_hi = p_lo + out_pad
    x_nhwc = jnp.transpose(x, (0, 2, 3, 1)).astype(jnp.bfloat16)
    w_hwio = jnp.transpose(wt[:, :, ::-1, ::-1], (2, 3, 0, 1)).astype(jnp.bfloat16)
    y = lax.conv_general_dilated(
        x_nhwc, w_hwio, window_strides=(1, 1),
        padding=[(p_lo, p_hi), (p_lo, p_hi)], lhs_dilation=(stride, stride),
        dimension_numbers=('NHWC', 'HWIO', 'NHWC'),
        preferred_element_type=jnp.float32)
    y = y + bias[None, None, None, :]
    mean = jnp.mean(y, axis=(0, 1, 2))
    var = jnp.mean((y - mean) ** 2, axis=(0, 1, 2))
    y = (y - mean) * lax.rsqrt(var + eps) * gamma + beta
    y = jnp.maximum(y, 0.0) if activation == 'relu' else jax.nn.sigmoid(y)
    return jnp.transpose(y, (0, 3, 1, 2))


def _run_case(key, *, N, Cx, Cr, Cout, H, W, K, act):
    ks = jax.random.split(key, 6)
    x = jax.random.normal(ks[0], (N, Cx, H, W), jnp.float32)
    residual = (jax.random.normal(ks[1], (N, Cr, H, W), jnp.float32) if Cr > 0 else None)
    Cin = Cx + Cr
    params = {
        'weight': 0.1 * jax.random.normal(ks[2], (Cin, Cout, K, K), jnp.float32),
        'bias': 0.05 * jax.random.normal(ks[3], (Cout,), jnp.float32),
        'gamma': 1.0 + 0.1 * jax.random.normal(ks[4], (Cout,), jnp.float32),
        'beta': 0.1 * jax.random.normal(ks[5], (Cout,), jnp.float32),
    }
    fwd = jax.jit(functools.partial(unet_deconv_block, kernel_size=K, activation=act))
    out = jax.block_until_ready(fwd(x, residual, params))
    ref = _reference(x, residual, params, kernel_size=K, activation=act)
    assert out.shape == (N, Cout, 2 * H, 2 * W), out.shape
    # bf16 storage of the conv intermediate (per the perf review) bounds the post-BN
    # error at ~2^-9 * |y| / std  ->  ~1e-2 worst case; tolerance set accordingly.
    if not jnp.allclose(out, ref, atol=2e-2, rtol=2e-2):
        err = float(jnp.max(jnp.abs(out - ref)))
        raise AssertionError(
            f"Pallas output mismatch vs JAX reference (max |err|={err}) "
            f"for case Cin={Cin}, Cout={Cout}, K={K}, act={act}")


if __name__ == "__main__":
    key = jax.random.PRNGKey(0)
    k1, k2, k3 = jax.random.split(key, 3)

    # Case 1 (module's typical use): x & residual concat -> small Cin/Cout, fused-tap path,
    # channels-first (Cout < 128) intermediate layout.
    _run_case(k1, N=2, Cx=2, Cr=2, Cout=8, H=16, W=16, K=3, act='relu')

    # Case 2: no residual, wide Cout -> channels-last layout (no in-kernel transpose),
    # multiple Cout blocks on the grid, K=5, sigmoid head.
    _run_case(k2, N=2, Cx=4, Cr=0, Cout=512, H=8, W=8, K=5, act='sigmoid')

    # Case 3: wide Cin (>=128) -> per-tap chained-dot path (no patch concatenate copy).
    _run_case(k3, N=2, Cx=64, Cr=64, Cout=8, H=8, W=8, K=3, act='relu')

    print("KERNEL_OK")
</pallas_src>

<mosaic_0001>
module attributes {stable_mosaic.version = 11 : i64} {
  func.func @_deconv_phase_kernel(%arg0: i32, %arg1: i32, %arg2: memref<1x17x17x4xbf16, #tpu.memory_space<vmem>>, %arg3: memref<4x8xbf16, #tpu.memory_space<vmem>>, %arg4: memref<8x8xbf16, #tpu.memory_space<vmem>>, %arg5: memref<8x8xbf16, #tpu.memory_space<vmem>>, %arg6: memref<16x8xbf16, #tpu.memory_space<vmem>>, %arg7: memref<1x4x8x256xbf16, #tpu.memory_space<vmem>>, %arg8: memref<1x1x8xf32, #tpu.memory_space<vmem>>, %arg9: memref<1x1x8xf32, #tpu.memory_space<vmem>>) attributes {dimension_semantics = [#tpu.dimension_semantics<parallel>, #tpu.dimension_semantics<parallel>], iteration_bounds = array<i64: 2, 1>, scalar_prefetch = 0 : i64, scratch_operands = 0 : i64, tpu.core_type = #tpu.core_type<tc>, window_params = [{transform_indices = @transform_0, window_bounds = array<i64: 1, 17, 17, 4>}, {transform_indices = @transform_1, window_bounds = array<i64: 4, 8>}, {transform_indices = @transform_2, window_bounds = array<i64: 8, 8>}, {transform_indices = @transform_3, window_bounds = array<i64: 8, 8>}, {transform_indices = @transform_4, window_bounds = array<i64: 16, 8>}, {transform_indices = @transform_5, window_bounds = array<i64: 1, 4, 8, 256>}, {transform_indices = @transform_6, window_bounds = array<i64: 1, 1, 8>}, {transform_indices = @transform_7, window_bounds = array<i64: 1, 1, 8>}]} {
    %cst = arith.constant 0.000000e+00 : f32
    %0 = vector.broadcast %cst : f32 to vector<1x8xf32>
    %cst_0 = arith.constant 0.000000e+00 : f32
    %1 = vector.broadcast %cst_0 : f32 to vector<1x8xf32>
    %c0 = arith.constant 0 : index
    %c0_1 = arith.constant 0 : index
    %c0_2 = arith.constant 0 : index
    %c0_3 = arith.constant 0 : index
    %2 = vector.load %arg2[%c0, %c0_1, %c0_2, %c0_3] : memref<1x17x17x4xbf16, #tpu.memory_space<vmem>>, vector<1x16x16x4xbf16>
    %3 = vector.shape_cast %2 : vector<1x16x16x4xbf16> to vector<16x16x4xbf16>
    %4 = vector.shape_cast %3 : vector<16x16x4xbf16> to vector<256x4xbf16>
    %c0_4 = arith.constant 0 : index
    %c0_5 = arith.constant 0 : index
    %5 = vector.load %arg3[%c0_4, %c0_5] : memref<4x8xbf16, #tpu.memory_space<vmem>>, vector<4x8xbf16>
    %cst_6 = arith.constant dense<0.000000e+00> : vector<256x8xf32>
    %6 = tpu.matmul %4, %5, %cst_6 {dimension_numbers = #tpu.dot_dimension_numbers<[1], [0], [0], [1], [0, 0, 1, 1], [], []>} : vector<256x4xbf16>, vector<4x8xbf16>, vector<256x8xf32> -> vector<256x8xf32>
    %cst_7 = arith.constant dense<0.000000e+00> : vector<8xf32>
    %7 = vector.multi_reduction <add>, %6, %cst_7 [0] : vector<256x8xf32> to vector<8xf32>
    %8 = vector.shape_cast %7 : vector<8xf32> to vector<1x8xf32>
    %9 = arith.addf %0, %8 : vector<1x8xf32>
    %10 = arith.mulf %6, %6 : vector<256x8xf32>
    %cst_8 = arith.constant dense<0.000000e+00> : vector<8xf32>
    %11 = vector.multi_reduction <add>, %10, %cst_8 [0] : vector<256x8xf32> to vector<8xf32>
    %12 = vector.shape_cast %11 : vector<8xf32> to vector<1x8xf32>
    %13 = arith.addf %1, %12 : vector<1x8xf32>
    %14 = tpu.transpose %6, [1, 0] : vector<256x8xf32> -> vector<8x256xf32>
    %15 = arith.truncf %14 : vector<8x256xf32> to vector<8x256xbf16>
    %c0_9 = arith.constant 0 : index
    %c0_10 = arith.constant 0 : index
    %c0_11 = arith.constant 0 : index
    %c0_12 = arith.constant 0 : index
    %16 = vector.load %arg7[%c0_9, %c0_10, %c0_11, %c0_12] : memref<1x4x8x256xbf16, #tpu.memory_space<vmem>>, vector<1x1x8x256xbf16>
    %17 = vector.shape_cast %16 : vector<1x1x8x256xbf16> to vector<8x256xbf16>
    %18 = vector.shape_cast %15 : vector<8x256xbf16> to vector<1x1x8x256xbf16>
    tpu.vector_store %arg7[%c0_9, %c0_10, %c0_11, %c0_12], %18 {strides = array<i32>} : memref<1x4x8x256xbf16, #tpu.memory_space<vmem>>, vector<1x1x8x256xbf16>,
    %c0_13 = arith.constant 0 : index
    %c0_14 = arith.constant 0 : index
    %c1 = arith.constant 1 : index
    %c0_15 = arith.constant 0 : index
    %19 = vector.load %arg2[%c0_13, %c0_14, %c1, %c0_15] : memref<1x17x17x4xbf16, #tpu.memory_space<vmem>>, vector<1x16x16x4xbf16>
    %20 = vector.shape_cast %19 : vector<1x16x16x4xbf16> to vector<16x16x4xbf16>
    %c0_16 = arith.constant 0 : index
    %c0_17 = arith.constant 0 : index
    %c0_18 = arith.constant 0 : index
    %c0_19 = arith.constant 0 : index
    %21 = vector.load %arg2[%c0_16, %c0_17, %c0_18, %c0_19] : memref<1x17x17x4xbf16, #tpu.memory_space<vmem>>, vector<1x16x16x4xbf16>
    %22 = vector.shape_cast %21 : vector<1x16x16x4xbf16> to vector<16x16x4xbf16>
    %23 = tpu.concatenate %20, %22 in 2 : vector<16x16x4xbf16>, vector<16x16x4xbf16> -> vector<16x16x8xbf16>
    %24 = vector.shape_cast %23 : vector<16x16x8xbf16> to vector<256x8xbf16>
    %c0_20 = arith.constant 0 : index
    %c0_21 = arith.constant 0 : index
    %25 = vector.load %arg4[%c0_20, %c0_21] : memref<8x8xbf16, #tpu.memory_space<vmem>>, vector<8x8xbf16>
    %cst_22 = arith.constant dense<0.000000e+00> : vector<256x8xf32>
    %26 = tpu.matmul %24, %25, %cst_22 {dimension_numbers = #tpu.dot_dimension_numbers<[1], [0], [0], [1], [0, 0, 1, 1], [], []>} : vector<256x8xbf16>, vector<8x8xbf16>, vector<256x8xf32> -> vector<256x8xf32>
    %cst_23 = arith.constant dense<0.000000e+00> : vector<8xf32>
    %27 = vector.multi_reduction <add>, %26, %cst_23 [0] : vector<256x8xf32> to vector<8xf32>
    %28 = vector.shape_cast %27 : vector<8xf32> to vector<1x8xf32>
    %29 = arith.addf %9, %28 : vector<1x8xf32>
    %30 = arith.mulf %26, %26 : vector<256x8xf32>
    %cst_24 = arith.constant dense<0.000000e+00> : vector<8xf32>
    %31 = vector.multi_reduction <add>, %30, %cst_24 [0] : vector<256x8xf32> to vector<8xf32>
    %32 = vector.shape_cast %31 : vector<8xf32> to vector<1x8xf32>
    %33 = arith.addf %13, %32 : vector<1x8xf32>
    %34 = tpu.transpose %26, [1, 0] : vector<256x8xf32> -> vector<8x256xf32>
    %35 = arith.truncf %34 : vector<8x256xf32> to vector<8x256xbf16>
    %c0_25 = arith.constant 0 : index
    %c1_26 = arith.constant 1 : index
    %c0_27 = arith.constant 0 : index
    %c0_28 = arith.constant 0 : index
    %36 = vector.load %arg7[%c0_25, %c1_26, %c0_27, %c0_28] : memref<1x4x8x256xbf16, #tpu.memory_space<vmem>>, vector<1x1x8x256xbf16>
    %37 = vector.shape_cast %36 : vector<1x1x8x256xbf16> to vector<8x256xbf16>
    %38 = vector.shape_cast %35 : vector<8x256xbf16> to vector<1x1x8x256xbf16>
    tpu.vector_store %arg7[%c0_25, %c1_26, %c0_27, %c0_28], %38 {strides = array<i32>} : memref<1x4x8x256xbf16, #tpu.memory_space<vmem>>, vector<1x1x8x256xbf16>,
    %c0_29 = arith.constant 0 : index
    %c1_30 = arith.constant 1 : index
    %c0_31 = arith.constant 0 : index
    %c0_32 = arith.constant 0 : index
    %39 = vector.load %arg2[%c0_29, %c1_30, %c0_31, %c0_32] : memref<1x17x17x4xbf16, #tpu.memory_space<vmem>>, vector<1x16x16x4xbf16>
    %40 = vector.shape_cast %39 : vector<1x16x16x4xbf16> to vector<16x16x4xbf16>
    %c0_33 = arith.constant 0 : index
    %c0_34 = arith.constant 0 : index
    %c0_35 = arith.constant 0 : index
    %c0_36 = arith.constant 0 : index
    %41 = vector.load %arg2[%c0_33, %c0_34, %c0_35, %c0_36] : memref<1x17x17x4xbf16, #tpu.memory_space<vmem>>, vector<1x16x16x4xbf16>
    %42 = vector.shape_cast %41 : vector<1x16x16x4xbf16> to vector<16x16x4xbf16>
    %43 = tpu.concatenate %40, %42 in 2 : vector<16x16x4xbf16>, vector<16x16x4xbf16> -> vector<16x16x8xbf16>
    %44 = vector.shape_cast %43 : vector<16x16x8xbf16> to vector<256x8xbf16>
    %c0_37 = arith.constant 0 : index
    %c0_38 = arith.constant 0 : index
    %45 = vector.load %arg5[%c0_37, %c0_38] : memref<8x8xbf16, #tpu.memory_space<vmem>>, vector<8x8xbf16>
    %cst_39 = arith.constant dense<0.000000e+00> : vector<256x8xf32>
    %46 = tpu.matmul %44, %45, %cst_39 {dimension_numbers = #tpu.dot_dimension_numbers<[1], [0], [0], [1], [0, 0, 1, 1], [], []>} : vector<256x8xbf16>, vector<8x8xbf16>, vector<256x8xf32> -> vector<256x8xf32>
    %cst_40 = arith.constant dense<0.000000e+00> : vector<8xf32>
    %47 = vector.multi_reduction <add>, %46, %cst_40 [0] : vector<256x8xf32> to vector<8xf32>
    %48 = vector.shape_cast %47 : vector<8xf32> to vector<1x8xf32>
    %49 = arith.addf %29, %48 : vector<1x8xf32>
    %50 = arith.mulf %46, %46 : vector<256x8xf32>
    %cst_41 = arith.constant dense<0.000000e+00> : vector<8xf32>
    %51 = vector.multi_reduction <add>, %50, %cst_41 [0] : vector<256x8xf32> to vector<8xf32>
    %52 = vector.shape_cast %51 : vector<8xf32> to vector<1x8xf32>
    %53 = arith.addf %33, %52 : vector<1x8xf32>
    %54 = tpu.transpose %46, [1, 0] : vector<256x8xf32> -> vector<8x256xf32>
    %55 = arith.truncf %54 : vector<8x256xf32> to vector<8x256xbf16>
    %c0_42 = arith.constant 0 : index
    %c2 = arith.constant 2 : index
    %c0_43 = arith.constant 0 : index
    %c0_44 = arith.constant 0 : index
    %56 = vector.load %arg7[%c0_42, %c2, %c0_43, %c0_44] : memref<1x4x8x256xbf16, #tpu.memory_space<vmem>>, vector<1x1x8x256xbf16>
    %57 = vector.shape_cast %56 : vector<1x1x8x256xbf16> to vector<8x256xbf16>
    %58 = vector.shape_cast %55 : vector<8x256xbf16> to vector<1x1x8x256xbf16>
    tpu.vector_store %arg7[%c0_42, %c2, %c0_43, %c0_44], %58 {strides = array<i32>} : memref<1x4x8x256xbf16, #tpu.memory_space<vmem>>, vector<1x1x8x256xbf16>,
    %c0_45 = arith.constant 0 : index
    %c1_46 = arith.constant 1 : index
    %c1_47 = arith.constant 1 : index
    %c0_48 = arith.constant 0 : index
    %59 = vector.load %arg2[%c0_45, %c1_46, %c1_47, %c0_48] : memref<1x17x17x4xbf16, #tpu.memory_space<vmem>>, vector<1x16x16x4xbf16>
    %60 = vector.shape_cast %59 : vector<1x16x16x4xbf16> to vector<16x16x4xbf16>
    %c0_49 = arith.constant 0 : index
    %c1_50 = arith.constant 1 : index
    %c0_51 = arith.constant 0 : index
    %c0_52 = arith.constant 0 : index
    %61 = vector.load %arg2[%c0_49, %c1_50, %c0_51, %c0_52] : memref<1x17x17x4xbf16, #tpu.memory_space<vmem>>, vector<1x16x16x4xbf16>
    %62 = vector.shape_cast %61 : vector<1x16x16x4xbf16> to vector<16x16x4xbf16>
    %c0_53 = arith.constant 0 : index
    %c0_54 = arith.constant 0 : index
    %c1_55 = arith.constant 1 : index
    %c0_56 = arith.constant 0 : index
    %63 = vector.load %arg2[%c0_53, %c0_54, %c1_55, %c0_56] : memref<1x17x17x4xbf16, #tpu.memory_space<vmem>>, vector<1x16x16x4xbf16>
    %64 = vector.shape_cast %63 : vector<1x16x16x4xbf16> to vector<16x16x4xbf16>
    %c0_57 = arith.constant 0 : index
    %c0_58 = arith.constant 0 : index
    %c0_59 = arith.constant 0 : index
    %c0_60 = arith.constant 0 : index
    %65 = vector.load %arg2[%c0_57, %c0_58, %c0_59, %c0_60] : memref<1x17x17x4xbf16, #tpu.memory_space<vmem>>, vector<1x16x16x4xbf16>
    %66 = vector.shape_cast %65 : vector<1x16x16x4xbf16> to vector<16x16x4xbf16>
    %67 = tpu.concatenate %60, %62, %64, %66 in 2 : vector<16x16x4xbf16>, vector<16x16x4xbf16>, vector<16x16x4xbf16>, vector<16x16x4xbf16> -> vector<16x16x16xbf16>
    %68 = vector.shape_cast %67 : vector<16x16x16xbf16> to vector<256x16xbf16>
    %c0_61 = arith.constant 0 : index
    %c0_62 = arith.constant 0 : index
    %69 = vector.load %arg6[%c0_61, %c0_62] : memref<16x8xbf16, #tpu.memory_space<vmem>>, vector<16x8xbf16>
    %cst_63 = arith.constant dense<0.000000e+00> : vector<256x8xf32>
    %70 = tpu.matmul %68, %69, %cst_63 {dimension_numbers = #tpu.dot_dimension_numbers<[1], [0], [0], [1], [0, 0, 1, 1], [], []>} : vector<256x16xbf16>, vector<16x8xbf16>, vector<256x8xf32> -> vector<256x8xf32>
    %cst_64 = arith.constant dense<0.000000e+00> : vector<8xf32>
    %71 = vector.multi_reduction <add>, %70, %cst_64 [0] : vector<256x8xf32> to vector<8xf32>
    %72 = vector.shape_cast %71 : vector<8xf32> to vector<1x8xf32>
    %73 = arith.addf %49, %72 : vector<1x8xf32>
    %74 = arith.mulf %70, %70 : vector<256x8xf32>
    %cst_65 = arith.constant dense<0.000000e+00> : vector<8xf32>
    %75 = vector.multi_reduction <add>, %74, %cst_65 [0] : vector<256x8xf32> to vector<8xf32>
    %76 = vector.shape_cast %75 : vector<8xf32> to vector<1x8xf32>
    %77 = arith.addf %53, %76 : vector<1x8xf32>
    %78 = tpu.transpose %70, [1, 0] : vector<256x8xf32> -> vector<8x256xf32>
    %79 = arith.truncf %78 : vector<8x256xf32> to vector<8x256xbf16>
    %c0_66 = arith.constant 0 : index
    %c3 = arith.constant 3 : index
    %c0_67 = arith.constant 0 : index
    %c0_68 = arith.constant 0 : index
    %80 = vector.load %arg7[%c0_66, %c3, %c0_67, %c0_68] : memref<1x4x8x256xbf16, #tpu.memory_space<vmem>>, vector<1x1x8x256xbf16>
    %81 = vector.shape_cast %80 : vector<1x1x8x256xbf16> to vector<8x256xbf16>
    %82 = vector.shape_cast %79 : vector<8x256xbf16> to vector<1x1x8x256xbf16>
    tpu.vector_store %arg7[%c0_66, %c3, %c0_67, %c0_68], %82 {strides = array<i32>} : memref<1x4x8x256xbf16, #tpu.memory_space<vmem>>, vector<1x1x8x256xbf16>,
    %83 = vector.shape_cast %73 : vector<1x8xf32> to vector<1x1x8xf32>
    %c0_69 = arith.constant 0 : index
    %c0_70 = arith.constant 0 : index
    %c0_71 = arith.constant 0 : index
    %84 = vector.load %arg8[%c0_69, %c0_70, %c0_71] : memref<1x1x8xf32, #tpu.memory_space<vmem>>, vector<1x1x8xf32>
    tpu.vector_store %arg8[%c0_69, %c0_70, %c0_71], %83 {strides = array<i32>} : memref<1x1x8xf32, #tpu.memory_space<vmem>>, vector<1x1x8xf32>,
    %85 = vector.shape_cast %77 : vector<1x8xf32> to vector<1x1x8xf32>
    %c0_72 = arith.constant 0 : index
    %c0_73 = arith.constant 0 : index
    %c0_74 = arith.constant 0 : index
    %86 = vector.load %arg9[%c0_72, %c0_73, %c0_74] : memref<1x1x8xf32, #tpu.memory_space<vmem>>, vector<1x1x8xf32>
    tpu.vector_store %arg9[%c0_72, %c0_73, %c0_74], %85 {strides = array<i32>} : memref<1x1x8xf32, #tpu.memory_space<vmem>>, vector<1x1x8xf32>,
    return
  }
  func.func @transform_0(%arg0: i32, %arg1: i32) -> (i32, i32, i32, i32) {
    %c0_i32 = arith.constant 0 : i32
    %c0_i32_0 = arith.constant 0 : i32
    %c0_i32_1 = arith.constant 0 : i32
    %c0_i32_2 = arith.constant 0 : i32
    return %arg0, %c0_i32, %c0_i32_0, %c0_i32_1 : i32, i32, i32, i32
  }
  func.func @transform_1(%arg0: i32, %arg1: i32) -> (i32, i32) {
    %c0_i32 = arith.constant 0 : i32
    %c0_i32_0 = arith.constant 0 : i32
    return %c0_i32, %arg1 : i32, i32
  }
  func.func @transform_2(%arg0: i32, %arg1: i32) -> (i32, i32) {
    %c0_i32 = arith.constant 0 : i32
    %c0_i32_0 = arith.constant 0 : i32
    return %c0_i32, %arg1 : i32, i32
  }
  func.func @transform_3(%arg0: i32, %arg1: i32) -> (i32, i32) {
    %c0_i32 = arith.constant 0 : i32
    %c0_i32_0 = arith.constant 0 : i32
    return %c0_i32, %arg1 : i32, i32
  }
  func.func @transform_4(%arg0: i32, %arg1: i32) -> (i32, i32) {
    %c0_i32 = arith.constant 0 : i32
    %c0_i32_0 = arith.constant 0 : i32
    return %c0_i32, %arg1 : i32, i32
  }
  func.func @transform_5(%arg0: i32, %arg1: i32) -> (i32, i32, i32, i32) {
    %c0_i32 = arith.constant 0 : i32
    %c0_i32_0 = arith.constant 0 : i32
    %c0_i32_1 = arith.constant 0 : i32
    return %arg0, %c0_i32, %arg1, %c0_i32_0 : i32, i32, i32, i32
  }
  func.func @transform_6(%arg0: i32, %arg1: i32) -> (i32, i32, i32) {
    %c0_i32 = arith.constant 0 : i32
    %c0_i32_0 = arith.constant 0 : i32
    return %arg0, %c0_i32, %arg1 : i32, i32, i32
  }
  func.func @transform_7(%arg0: i32, %arg1: i32) -> (i32, i32, i32) {
    %c0_i32 = arith.constant 0 : i32
    %c0_i32_0 = arith.constant 0 : i32
    return %arg0, %c0_i32, %arg1 : i32, i32, i32
  }
}

</mosaic_0001>

<llo_original>
// kernel: unet_deconv_block.1
$region0: #{unet_deconv_block.1}
  #allocation0 [shape = 'u32[]', space=smem, size = 0x4, offset = 0x4, fixed_abs, tag = 'smem constant byte address 0x4 - core index']
  #allocation1 [shape = 'u32[144,128]{1,0:T(1,128)}', space=vmem, size = 0x12000, scoped, tag = 'internal scratch']
  %s0 = inlined_call_operand.vmem [shape: bf16[2,17,17,4], index: 0, kind: input, shape index: {}]
  %s1 = inlined_call_operand.vmem [shape: bf16[4,8], index: 1, kind: input, shape index: {}]
  %s2 = inlined_call_operand.vmem [shape: bf16[8,8], index: 2, kind: input, shape index: {}]
  %s3 = inlined_call_operand.vmem [shape: bf16[8,8], index: 3, kind: input, shape index: {}]
  %s4 = inlined_call_operand.vmem [shape: bf16[16,8], index: 4, kind: input, shape index: {}]
  %s5 = inlined_call_operand.vmem [shape: bf16[2,4,8,256], index: 5, kind: output, shape index: {0}]
  %s6 = inlined_call_operand.vmem [shape: f32[2,1,8], index: 6, kind: output, shape index: {1}]
  %s7 = inlined_call_operand.vmem [shape: f32[2,1,8], index: 7, kind: output, shape index: {2}]
  %8 = xla_tuple %s5, %s6, %s7
  %s9 = sld [smem:[#allocation0]]
  $region69: #{unet_deconv_block.1} parent=0
    _
  %s11 = ssub.s32 1, %s9
  %s12 = scalar_select 0, %s11, %s9
  loop: start=0, step=1, limit=4
  $region2: #{unet_deconv_block.1} parent=0 // loop_pre_header
    _
  $region3: #{unet_deconv_block.1} parent=0 // loop_header
    %s14 = sphi 0, %s18
    %p15 = scmp.ge.s32.totalorder %s14, 4
    %s21 = sphi 0, %s33
    %s22 = sphi 0, %s29
    %s23 = sphi 0, %s21
    %s24 = sphi 0, %s22
    %s25 = sphi 0, %s23
    %s26 = sphi 0, %s24
    %s36 = sphi 0, %s38
    %s39 = sphi 0, %s36
    %s40 = sphi 0, %s39
    %s56 = sphi 0, %s40
    %s62 = sphi 0, %s64
    %s65 = sphi 0, %s62
    %s66 = sphi 0, %s65
    %s82 = sphi 0, %s66
    %s88 = sphi 0, %s90
    %s91 = sphi 0, %s88
    %s92 = sphi 0, %s91
    %s108 = sphi 0, %s92
    %s114 = sphi 0, %s116
    %s117 = sphi 0, %s114
    %s118 = sphi 0, %s117
    %s134 = sphi 0, %s118
    %s140 = sphi 0, %s142
    %s143 = sphi 0, %s140
    %s144 = sphi 0, %s143
    %s160 = sphi 0, %s144
    %s168 = sphi 0, %s170
    %s171 = sphi 0, %s168
    %s172 = sphi 0, %s171
    %s188 = sphi 0, %s172
    %s196 = sphi 0, %s198
    %s199 = sphi 0, %s196
    %s200 = sphi 0, %s199
    %s216 = sphi 0, %s200
    %s224 = sphi 0, %s226
    %s227 = sphi 0, %s224
    %s228 = sphi 0, %s227
    %s244 = sphi 0, %s228
  $region4: #{unet_deconv_block.1} parent=0 // loop_header_branch
    %17 = sbr.rel (%p15) target = $region8
  $region5: #{unet_deconv_block.1} parent=0 // loop_body
    %s19 = ssub.s32 %s14, 1
    %s20 = ssub.s32 %s14, 2
    %s27 = sadd.s32 1, %s22
    %p28 = scmp.ge.s32.totalorder %s27, 1
    %s29 = scalar_select %p28, 0, %s27
    %s30 = sadd.s32 1, %s21
    %s31 = scalar_select %p28, %s30, %s21
    %p32 = scmp.ge.s32.totalorder %s31, 2
    %s33 = scalar_select %p32, 0, %s31
    %s34 = ssub.s32 %s21, %s33
    %p35 = scmp.eq.s32.totalorder %s34, 0
    %s37 = sadd.s32 %s36, 1
    %s38 = scalar_select %p35, %s36, %s37
    %p41 = pneg %p35
    %p42 = scmp.eq.s32.totalorder %s14, 1
    %p43 = por %p41, %p42
    %p44 = scmp.ne.s32.totalorder %s36, %s39
    %p45 = scmp.eq.s32.totalorder %s14, 0
    %p46 = por %p44, %p45
    %p47 = scmp.ne.s32.totalorder %s36, %s39
    %p48 = scmp.eq.s32.totalorder %s19, 1
    %p49 = por %p47, %p48
    %p50 = scmp.ne.s32.totalorder %s39, %s40
    %p51 = scmp.eq.s32.totalorder %s19, 0
    %p52 = por %p50, %p51
    %p53 = scmp.ne.s32.totalorder %s39, %s40
    %p54 = scmp.eq.s32.totalorder %s20, 1
    %p55 = por %p53, %p54
    %p57 = scmp.ne.s32.totalorder %s40, %s56
    %p58 = scmp.eq.s32.totalorder %s20, 0
    %p59 = por %p57, %p58
    %s60 = ssub.s32 %s22, %s29
    %p61 = scmp.eq.s32.totalorder %s60, 0
    %s63 = sadd.s32 %s62, 1
    %s64 = scalar_select %p61, %s62, %s63
    %p67 = pneg %p61
    %p68 = scmp.eq.s32.totalorder %s14, 1
    %p69 = por %p67, %p68
    %p70 = scmp.ne.s32.totalorder %s62, %s65
    %p71 = scmp.eq.s32.totalorder %s14, 0
    %p72 = por %p70, %p71
    %p73 = scmp.ne.s32.totalorder %s62, %s65
    %p74 = scmp.eq.s32.totalorder %s19, 1
    %p75 = por %p73, %p74
    %p76 = scmp.ne.s32.totalorder %s65, %s66
    %p77 = scmp.eq.s32.totalorder %s19, 0
    %p78 = por %p76, %p77
    %p79 = scmp.ne.s32.totalorder %s65, %s66
    %p80 = scmp.eq.s32.totalorder %s20, 1
    %p81 = por %p79, %p80
    %p83 = scmp.ne.s32.totalorder %s66, %s82
    %p84 = scmp.eq.s32.totalorder %s20, 0
    %p85 = por %p83, %p84
    %s86 = ssub.s32 %s22, %s29
    %p87 = scmp.eq.s32.totalorder %s86, 0
    %s89 = sadd.s32 %s88, 1
    %s90 = scalar_select %p87, %s88, %s89
    %p93 = pneg %p87
    %p94 = scmp.eq.s32.totalorder %s14, 1
    %p95 = por %p93, %p94
    %p96 = scmp.ne.s32.totalorder %s88, %s91
    %p97 = scmp.eq.s32.totalorder %s14, 0
    %p98 = por %p96, %p97
    %p99 = scmp.ne.s32.totalorder %s88, %s91
    %p100 = scmp.eq.s32.totalorder %s19, 1
    %p101 = por %p99, %p100
    %p102 = scmp.ne.s32.totalorder %s91, %s92
    %p103 = scmp.eq.s32.totalorder %s19, 0
    %p104 = por %p102, %p103
    %p105 = scmp.ne.s32.totalorder %s91, %s92
    %p106 = scmp.eq.s32.totalorder %s20, 1
    %p107 = por %p105, %p106
    %p109 = scmp.ne.s32.totalorder %s92, %s108
    %p110 = scmp.eq.s32.totalorder %s20, 0
    %p111 = por %p109, %p110
    %s112 = ssub.s32 %s22, %s29
    %p113 = scmp.eq.s32.totalorder %s112, 0
    %s115 = sadd.s32 %s114, 1
    %s116 = scalar_select %p113, %s114, %s115
    %p119 = pneg %p113
    %p120 = scmp.eq.s32.totalorder %s14, 1
    %p121 = por %p119, %p120
    %p122 = scmp.ne.s32.totalorder %s114, %s117
    %p123 = scmp.eq.s32.totalorder %s14, 0
    %p124 = por %p122, %p123
    %p125 = scmp.ne.s32.totalorder %s114, %s117
    %p126 = scmp.eq.s32.totalorder %s19, 1
    %p127 = por %p125, %p126
    %p128 = scmp.ne.s32.totalorder %s117, %s118
    %p129 = scmp.eq.s32.totalorder %s19, 0
    %p130 = por %p128, %p129
    %p131 = scmp.ne.s32.totalorder %s117, %s118
    %p132 = scmp.eq.s32.totalorder %s20, 1
    %p133 = por %p131, %p132
    %p135 = scmp.ne.s32.totalorder %s118, %s134
    %p136 = scmp.eq.s32.totalorder %s20, 0
    %p137 = por %p135, %p136
    %s138 = ssub.s32 %s22, %s29
    %p139 = scmp.eq.s32.totalorder %s138, 0
    %s141 = sadd.s32 %s140, 1
    %s142 = scalar_select %p139, %s140, %s141
    %p145 = pneg %p139
    %p146 = scmp.eq.s32.totalorder %s14, 1
    %p147 = por %p145, %p146
    %p148 = scmp.ne.s32.totalorder %s140, %s143
    %p149 = scmp.eq.s32.totalorder %s14, 0
    %p150 = por %p148, %p149
    %p151 = scmp.ne.s32.totalorder %s140, %s143
    %p152 = scmp.eq.s32.totalorder %s19, 1
    %p153 = por %p151, %p152
    %p154 = scmp.ne.s32.totalorder %s143, %s144
    %p155 = scmp.eq.s32.totalorder %s19, 0
    %p156 = por %p154, %p155
    %p157 = scmp.ne.s32.totalorder %s143, %s144
    %p158 = scmp.eq.s32.totalorder %s20, 1
    %p159 = por %p157, %p158
    %p161 = scmp.ne.s32.totalorder %s144, %s160
    %p162 = scmp.eq.s32.totalorder %s20, 0
    %p163 = por %p161, %p162
    %s164 = ssub.s32 %s21, %s33
    %s165 = ssub.s32 %s22, %s29
    %s166 = sor.u32 %s164, %s165
    %p167 = scmp.eq.s32.totalorder %s166, 0
    %s169 = sadd.s32 %s168, 1
    %s170 = scalar_select %p167, %s168, %s169
    %p173 = pneg %p167
    %p174 = scmp.eq.s32.totalorder %s14, 1
    %p175 = por %p173, %p174
    %p176 = scmp.ne.s32.totalorder %s168, %s171
    %p177 = scmp.eq.s32.totalorder %s14, 0
    %p178 = por %p176, %p177
    %p179 = scmp.ne.s32.totalorder %s168, %s171
    %p180 = scmp.eq.s32.totalorder %s19, 1
    %p181 = por %p179, %p180
    %p182 = scmp.ne.s32.totalorder %s171, %s172
    %p183 = scmp.eq.s32.totalorder %s19, 0
    %p184 = por %p182, %p183
    %p185 = scmp.ne.s32.totalorder %s171, %s172
    %p186 = scmp.eq.s32.totalorder %s20, 1
    %p187 = por %p185, %p186
    %p189 = scmp.ne.s32.totalorder %s172, %s188
    %p190 = scmp.eq.s32.totalorder %s20, 0
    %p191 = por %p189, %p190
    %s192 = ssub.s32 %s21, %s33
    %s193 = ssub.s32 %s22, %s29
    %s194 = sor.u32 %s192, %s193
    %p195 = scmp.eq.s32.totalorder %s194, 0
    %s197 = sadd.s32 %s196, 1
    %s198 = scalar_select %p195, %s196, %s197
    %p201 = pneg %p195
    %p202 = scmp.eq.s32.totalorder %s14, 1
    %p203 = por %p201, %p202
    %p204 = scmp.ne.s32.totalorder %s196, %s199
    %p205 = scmp.eq.s32.totalorder %s14, 0
    %p206 = por %p204, %p205
    %p207 = scmp.ne.s32.totalorder %s196, %s199
    %p208 = scmp.eq.s32.totalorder %s19, 1
    %p209 = por %p207, %p208
    %p210 = scmp.ne.s32.totalorder %s199, %s200
    %p211 = scmp.eq.s32.totalorder %s19, 0
    %p212 = por %p210, %p211
    %p213 = scmp.ne.s32.totalorder %s199, %s200
    %p214 = scmp.eq.s32.totalorder %s20, 1
    %p215 = por %p213, %p214
    %p217 = scmp.ne.s32.totalorder %s200, %s216
    %p218 = scmp.eq.s32.totalorder %s20, 0
    %p219 = por %p217, %p218
    %s220 = ssub.s32 %s21, %s33
    %s221 = ssub.s32 %s22, %s29
    %s222 = sor.u32 %s220, %s221
    %p223 = scmp.eq.s32.totalorder %s222, 0
    %s225 = sadd.s32 %s224, 1
    %s226 = scalar_select %p223, %s224, %s225
    %p229 = pneg %p223
    %p230 = scmp.eq.s32.totalorder %s14, 1
    %p231 = por %p229, %p230
    %p232 = scmp.ne.s32.totalorder %s224, %s227
    %p233 = scmp.eq.s32.totalorder %s14, 0
    %p234 = por %p232, %p233
    %p235 = scmp.ne.s32.totalorder %s224, %s227
    %p236 = scmp.eq.s32.totalorder %s19, 1
    %p237 = por %p235, %p236
    %p238 = scmp.ne.s32.totalorder %s227, %s228
    %p239 = scmp.eq.s32.totalorder %s19, 0
    %p240 = por %p238, %p239
    %p241 = scmp.ne.s32.totalorder %s227, %s228
    %p242 = scmp.eq.s32.totalorder %s20, 1
    %p243 = por %p241, %p242
    %p245 = scmp.ne.s32.totalorder %s228, %s244
    %p246 = scmp.eq.s32.totalorder %s20, 0
    %p247 = por %p245, %p246
    %p248 = scmp.le.s32.totalorder 1, %s14
    %p249 = scmp.lt.s32.totalorder %s14, 3
    %p250 = pnand %p248, %p249
    %p251 = pneg %p250
    // Predicated region
    $region9: #{unet_deconv_block.1} parent=5 // pred_check
      _
    $region10: #{unet_deconv_block.1} parent=5 // pred_check_branch
      %253 = sbr.rel (%p250) target = $region12
    $region11: #{unet_deconv_block.1} parent=5 // pred_region
      %s254 = ssub.s32 %s14, 1
      // Predicated region
      $region13: #{unet_deconv_block.1} parent=11 // pred_check
        %p255 = pneg %p78
      $region14: #{unet_deconv_block.1} parent=11 // pred_check_branch
        %257 = sbr.rel (%p255) target = $region16
      $region15: #{unet_deconv_block.1} parent=11 // pred_region
        %p258 = scmp.lt.s32.totalorder %s24, 0
        %s259 = scalar_select %p258, %s24, 0
        %s260 = smul.addr %s259, 2
        %s261 = scalar_lea.vmem %s1, %s260
      $region16: #{unet_deconv_block.1} parent=11 // pred_fallthru
        _
      // Predicated region
      $region17: #{unet_deconv_block.1} parent=11 // pred_check
        %p262 = pneg %p104
      $region18: #{unet_deconv_block.1} parent=11 // pred_check_branch
        %264 = sbr.rel (%p262) target = $region20
      $region19: #{unet_deconv_block.1} parent=11 // pred_region
        %p265 = scmp.lt.s32.totalorder %s24, 0
        %s266 = scalar_select %p265, %s24, 0
        %s267 = smul.addr %s266, 4
        %s268 = scalar_lea.vmem %s2, %s267
      $region20: #{unet_deconv_block.1} parent=11 // pred_fallthru
        _
      // Predicated region
      $region21: #{unet_deconv_block.1} parent=11 // pred_check
        %p269 = pneg %p130
      $region22: #{unet_deconv_block.1} parent=11 // pred_check_branch
        %271 = sbr.rel (%p269) target = $region24
      $region23: #{unet_deconv_block.1} parent=11 // pred_region
        %p272 = scmp.lt.s32.totalorder %s24, 0
        %s273 = scalar_select %p272, %s24, 0
        %s274 = smul.addr %s273, 4
        %s275 = scalar_lea.vmem %s3, %s274
      $region24: #{unet_deconv_block.1} parent=11 // pred_fallthru
        _
      // Predicated region
      $region25: #{unet_deconv_block.1} parent=11 // pred_check
        %p276 = pneg %p156
      $region26: #{unet_deconv_block.1} parent=11 // pred_check_branch
        %278 = sbr.rel (%p276) target = $region28
      $region27: #{unet_deconv_block.1} parent=11 // pred_region
        %p279 = scmp.lt.s32.totalorder %s24, 0
        %s280 = scalar_select %p279, %s24, 0
        %s281 = smul.addr %s280, 4
        %s282 = scalar_lea.vmem %s4, %s281
      $region28: #{unet_deconv_block.1} parent=11 // pred_fallthru
        _
    $region12: #{unet_deconv_block.1} parent=5 // pred_fallthru
      _
    %p283 = scmp.lt.s32.totalorder %s14, 2
    // Predicated region
    $region29: #{unet_deconv_block.1} parent=5 // pred_check
      %p284 = pneg %p283
    $region30: #{unet_deconv_block.1} parent=5 // pred_check_branch
      %286 = sbr.rel (%p284) target = $region32
    $region31: #{unet_deconv_block.1} parent=5 // pred_region
      // Predicated region
      $region33: #{unet_deconv_block.1} parent=31 // pred_check
        %p287 = pneg %p46
      $region34: #{unet_deconv_block.1} parent=31 // pred_check_branch
        %289 = sbr.rel (%p287) target = $region36
      $region35: #{unet_deconv_block.1} parent=31 // pred_region
        %p290 = scmp.lt.s32.totalorder %s21, 1
        %s291 = scalar_select %p290, %s21, 1
        %s292 = smul.addr %s291, 51
        %s293 = smul.addr %s292, 4
        %s294 = scalar_lea.vmem %s0, %s293
      $region36: #{unet_deconv_block.1} parent=31 // pred_fallthru
        _
    $region32: #{unet_deconv_block.1} parent=5 // pred_fallthru
      _
    %p295 = scmp.le.s32.totalorder 1, %s14
    %p296 = scmp.lt.s32.totalorder %s14, 3
    %p297 = pnand %p295, %p296
    %p298 = pneg %p297
    // Predicated region
    $region37: #{unet_deconv_block.1} parent=5 // pred_check
      _
    $region38: #{unet_deconv_block.1} parent=5 // pred_check_branch
      %300 = sbr.rel (%p297) target = $region40
    $region39: #{unet_deconv_block.1} parent=5 // pred_region
      %s301 = ssub.s32 %s14, 1
      %p302 = scmp.lt.s32.totalorder %s23, 1
      %s303 = scalar_select %p302, %s23, 1
      %s304 = smul.addr %s303, 51
      %s305 = smul.addr %s304, 4
      %s306 = scalar_lea.vmem %s0, %s305
      %p307 = pneg %p52
      %p308 = pneg %p49
      %p309 = scmp.lt.s32.totalorder %s24, 0
      %s310 = scalar_select %p309, %s24, 0
      %s311 = smul.addr %s310, 2
      %s312 = scalar_lea.vmem %s1, %s311
      %p313 = pneg %p78
      %p314 = pneg %p75
      %p315 = scmp.lt.s32.totalorder %s24, 0
      %s316 = scalar_select %p315, %s24, 0
      %s317 = smul.addr %s316, 4
      %s318 = scalar_lea.vmem %s2, %s317
      %p319 = pneg %p104
      %p320 = pneg %p101
      %p321 = scmp.lt.s32.totalorder %s24, 0
      %s322 = scalar_select %p321, %s24, 0
      %s323 = smul.addr %s322, 4
      %s324 = scalar_lea.vmem %s3, %s323
      %p325 = pneg %p130
      %p326 = pneg %p127
      %p327 = scmp.lt.s32.totalorder %s24, 0
      %s328 = scalar_select %p327, %s24, 0
      %s329 = smul.addr %s328, 4
      %s330 = scalar_lea.vmem %s4, %s329
      %p331 = pneg %p156
      %p332 = pneg %p153
      %p333 = pneg %p184
      %p334 = pneg %p181
      %p335 = scmp.lt.s32.totalorder %s23, 1
      %s336 = scalar_select %p335, %s23, 1
      %p337 = scmp.lt.s32.totalorder %s24, 0
      %s338 = scalar_select %p337, %s24, 0
      %s339 = smul.addr %s338, 2
      %s340 = smul.addr %s336, 8
      %s341 = sadd.s32 %s339, %s340
      %s342 = smul.addr %s341, 4
      %s343 = scalar_lea.vmem %s5, %s342
      %p344 = pneg %p212
      %p345 = pneg %p209
      %p346 = scmp.lt.s32.totalorder %s23, 1
      %s347 = scalar_select %p346, %s23, 1
      %p348 = scmp.lt.s32.totalorder %s24, 0
      %s349 = scalar_select %p348, %s24, 0
      %s350 = sadd.s32 %s349, %s347
      %s351 = scalar_lea.vmem %s6, %s350
      %p352 = pneg %p240
      %p353 = pneg %p237
      %p354 = scmp.lt.s32.totalorder %s23, 1
      %s355 = scalar_select %p354, %s23, 1
      %p356 = scmp.lt.s32.totalorder %s24, 0
      %s357 = scalar_select %p356, %s24, 0
      %s358 = sadd.s32 %s357, %s355
      %s359 = scalar_lea.vmem %s7, %s358
      %p360 = scmp.lt.s32.totalorder %s23, 1
      %s361 = scalar_select %p360, %s23, 1
      %s362 = smul.addr %s361, 51
      %s363 = smul.addr %s362, 4
      %s364 = scalar_lea.vmem %s0, %s363
      %p365 = scmp.lt.s32.totalorder %s24, 0
      %s366 = scalar_select %p365, %s24, 0
      %s367 = smul.addr %s366, 2
      %s368 = scalar_lea.vmem %s1, %s367
      %p369 = scmp.lt.s32.totalorder %s24, 0
      %s370 = scalar_select %p369, %s24, 0
      %s371 = smul.addr %s370, 4
      %s372 = scalar_lea.vmem %s2, %s371
      %p373 = scmp.lt.s32.totalorder %s24, 0
      %s374 = scalar_select %p373, %s24, 0
      %s375 = smul.addr %s374, 4
      %s376 = scalar_lea.vmem %s3, %s375
      %p377 = scmp.lt.s32.totalorder %s24, 0
      %s378 = scalar_select %p377, %s24, 0
      %s379 = smul.addr %s378, 4
      %s380 = scalar_lea.vmem %s4, %s379
      %p381 = scmp.lt.s32.totalorder %s23, 1
      %s382 = scalar_select %p381, %s23, 1
      %p383 = scmp.lt.s32.totalorder %s24, 0
      %s384 = scalar_select %p383, %s24, 0
      %s385 = smul.addr %s384, 2
      %s386 = smul.addr %s382, 8
      %s387 = sadd.s32 %s385, %s386
      %s388 = smul.addr %s387, 4
      %s389 = scalar_lea.vmem %s5, %s388
      %p390 = scmp.lt.s32.totalorder %s23, 1
      %s391 = scalar_select %p390, %s23, 1
      %p392 = scmp.lt.s32.totalorder %s24, 0
      %s393 = scalar_select %p392, %s24, 0
      %s394 = sadd.s32 %s393, %s391
      %s395 = scalar_lea.vmem %s6, %s394
      %p396 = scmp.lt.s32.totalorder %s23, 1
      %s397 = scalar_select %p396, %s23, 1
      %p398 = scmp.lt.s32.totalorder %s24, 0
      %s399 = scalar_select %p398, %s24, 0
      %s400 = sadd.s32 %s399, %s397
      %s401 = scalar_lea.vmem %s7, %s400
      %v403 = vld [vmem:[%s364] sm:$0xf]
      %v404 = vld [vmem:[%s364 + $0x4] sm:$0xf]
      %v405 = vld [vmem:[%s364 + $0xc] sm:$0xf]
      %v406 = vld [vmem:[%s364 + $0x10] sm:$0xf]
      %v407 = vld [vmem:[%s364 + $0x18] sm:$0xf]
      %v408 = vld [vmem:[%s364 + $0x1c] sm:$0xf]
      %v409 = vld [vmem:[%s364 + $0x24] sm:$0xf]
      %v410 = vld [vmem:[%s364 + $0x28] sm:$0xf]
      %v411 = vld [vmem:[%s364 + $0x30] sm:$0xf]
      %v412 = vld [vmem:[%s364 + $0x34] sm:$0xf]
      %v413 = vld [vmem:[%s364 + $0x3c] sm:$0xf]
      %v414 = vld [vmem:[%s364 + $0x40] sm:$0xf]
      %v415 = vld [vmem:[%s364 + $0x48] sm:$0xf]
      %v416 = vld [vmem:[%s364 + $0x4c] sm:$0xf]
      %v417 = vld [vmem:[%s364 + $0x54] sm:$0xf]
      %v418 = vld [vmem:[%s364 + $0x58] sm:$0xf]
      %v419 = vld [vmem:[%s364 + $0x60] sm:$0xf]
      %v420 = vld [vmem:[%s364 + $0x64] sm:$0xf]
      %v421 = vld [vmem:[%s364 + $0x6c] sm:$0xf]
      %v422 = vld [vmem:[%s364 + $0x70] sm:$0xf]
      %v423 = vld [vmem:[%s364 + $0x78] sm:$0xf]
      %v424 = vld [vmem:[%s364 + $0x7c] sm:$0xf]
      %v425 = vld [vmem:[%s364 + $0x84] sm:$0xf]
      %v426 = vld [vmem:[%s364 + $0x88] sm:$0xf]
      %v427 = vld [vmem:[%s364 + $0x90] sm:$0xf]
      %v428 = vld [vmem:[%s364 + $0x94] sm:$0xf]
      %v429 = vld [vmem:[%s364 + $0x9c] sm:$0xf]
      %v430 = vld [vmem:[%s364 + $0xa0] sm:$0xf]
      %v431 = vld [vmem:[%s364 + $0xa8] sm:$0xf]
      %v432 = vld [vmem:[%s364 + $0xac] sm:$0xf]
      %v433 = vld [vmem:[%s364 + $0xb4] sm:$0xf]
      %v434 = vld [vmem:[%s364 + $0xb8] sm:$0xf]
      %v435 = vld [vmem:[%s368] sm:$0x3]
      %v468 = vunpack.c.l.b16 %v403
      %v469 = vunpack.c.l.b16 %v404
      %v470 = vunpack.c.l.b16 %v405
      %v471 = vunpack.c.l.b16 %v406
      %v472 = vunpack.c.l.b16 %v407
      %v473 = vunpack.c.l.b16 %v408
      %v474 = vunpack.c.l.b16 %v409
      %v475 = vunpack.c.l.b16 %v410
      %v476 = vunpack.c.l.b16 %v411
      %v477 = vunpack.c.l.b16 %v412
      %v478 = vunpack.c.l.b16 %v413
      %v479 = vunpack.c.l.b16 %v414
      %v480 = vunpack.c.l.b16 %v415
      %v481 = vunpack.c.l.b16 %v416
      %v482 = vunpack.c.l.b16 %v417
      %v483 = vunpack.c.l.b16 %v418
      %v484 = vunpack.c.l.b16 %v419
      %v485 = vunpack.c.l.b16 %v420
      %v486 = vunpack.c.l.b16 %v421
      %v487 = vunpack.c.l.b16 %v422
      %v488 = vunpack.c.l.b16 %v423
      %v489 = vunpack.c.l.b16 %v424
      %v490 = vunpack.c.l.b16 %v425
      %v491 = vunpack.c.l.b16 %v426
      %v492 = vunpack.c.l.b16 %v427
      %v493 = vunpack.c.l.b16 %v428
      %v494 = vunpack.c.l.b16 %v429
      %v495 = vunpack.c.l.b16 %v430
      %v496 = vunpack.c.l.b16 %v431
      %v497 = vunpack.c.l.b16 %v432
      %v498 = vunpack.c.l.b16 %v433
      %v499 = vunpack.c.l.b16 %v434
      %v500 = vpack.c.b16 %v469, %v468
      %v501 = vpack.c.b16 %v471, %v470
      %v502 = vpack.c.b16 %v473, %v472
      %v503 = vpack.c.b16 %v475, %v474
      %v504 = vpack.c.b16 %v477, %v476
      %v505 = vpack.c.b16 %v479, %v478
      %v506 = vpack.c.b16 %v481, %v480
      %v507 = vpack.c.b16 %v483, %v482
      %v508 = vpack.c.b16 %v485, %v484
      %v509 = vpack.c.b16 %v487, %v486
      %v510 = vpack.c.b16 %v489, %v488
      %v511 = vpack.c.b16 %v491, %v490
      %v512 = vpack.c.b16 %v493, %v492
      %v513 = vpack.c.b16 %v495, %v494
      %v514 = vpack.c.b16 %v497, %v496
      %v515 = vpack.c.b16 %v499, %v498
      %vm516 = vcmask 31744
      %v518 = vsel %vm516, %v500, 0
      %v521 = vsel %vm516, %v501, 0
      %v524 = vsel %vm516, %v502, 0
      %v527 = vsel %vm516, %v503, 0
      %v530 = vsel %vm516, %v504, 0
      %v533 = vsel %vm516, %v505, 0
      %v536 = vsel %vm516, %v506, 0
      %v539 = vsel %vm516, %v507, 0
      %v542 = vsel %vm516, %v508, 0
      %v545 = vsel %vm516, %v509, 0
      %v548 = vsel %vm516, %v510, 0
      %v551 = vsel %vm516, %v511, 0
      %v554 = vsel %vm516, %v512, 0
      %v557 = vsel %vm516, %v513, 0
      %v560 = vsel %vm516, %v514, 0
      %v563 = vsel %vm516, %v515, 0
      %vm565 = vcmask 1041408
      %v567 = vsel %vm565, %v435, 0
      %569 = vmatprep.subr.bf16.mxu0 0
      %570 = vmatpush1.bf16.msra.mxu0 0
      %571 = vmatprep.subr.bf16.mxu0 0
      %572 = vmatpush1.bf16.msra.mxu0 0
      %573 = vmatprep.subr.bf16.mxu0 0
      %574 = vmatpush1.bf16.msra.mxu0 0
      %575 = vmatprep.subr.bf16.mxu0 0
      %576 = vmatpush1.bf16.msra.mxu0 0
      %577 = vmatprep.subr.bf16.mxu0 0
      %578 = vmatpush1.bf16.msra.mxu0 0
      %579 = vmatprep.subr.bf16.mxu0 0
      %580 = vmatpush1.bf16.msra.mxu0 0
      %581 = vmatprep.subr.bf16.mxu0 0
      %582 = vmatpush1.bf16.msra.mxu0 0
      %583 = vmatprep.subr.bf16.mxu0 0
      %584 = vmatpush1.bf16.msra.mxu0 %v567
      %585 = vmatprep.subr.bf16.mxu0 0
      %586 = vmatpush2.bf16.msra.mxu0 0
      %587 = vmatprep.subr.bf16.mxu0 0
      %588 = vmatpush2.bf16.msra.mxu0 0
      %589 = vmatprep.subr.bf16.mxu0 0
      %590 = vmatpush2.bf16.msra.mxu0 0
      %591 = vmatprep.subr.bf16.mxu0 0
      %592 = vmatpush2.bf16.msra.mxu0 0
      %593 = vmatprep.subr.bf16.mxu0 0
      %594 = vmatpush2.bf16.msra.mxu0 0
      %595 = vmatprep.subr.bf16.mxu0 0
      %596 = vmatpush2.bf16.msra.mxu0 0
      %597 = vmatprep.subr.bf16.mxu0 0
      %598 = vmatpush2.bf16.msra.mxu0 0
      %599 = vmatprep.subr.bf16.mxu0 0
      %600 = vmatpush2.bf16.msra.mxu0 0
      %601 = vmatprep.mubr.bf16.mxu0 0
      %602 = vmatmul.mubr.bf16.gmra.mxu0 %v518
      %v603 = vpop.f32.mrf.mxu0
      %v604 = vadd.f32 0.0, %v603
      %v605 = vpop.f32.mrf.mxu0
      %v606 = vpop.f32.mrf.mxu0
      %v607 = vadd.f32 0.0, %v606
      %v608 = vpop.f32.mrf.mxu0
      %609 = vmatprep.mubr.bf16.mxu0 0
      %610 = vmatmul.mubr.bf16.gmra.mxu0 %v521
      %v611 = vpop.f32.mrf.mxu0
      %v612 = vadd.f32 0.0, %v611
      %v613 = vpop.f32.mrf.mxu0
      %v614 = vpop.f32.mrf.mxu0
      %v615 = vadd.f32 0.0, %v614
      %v616 = vpop.f32.mrf.mxu0
      %617 = vmatprep.mubr.bf16.mxu0 0
      %618 = vmatmul.mubr.bf16.gmra.mxu0 %v524
      %v619 = vpop.f32.mrf.mxu0
      %v620 = vadd.f32 0.0, %v619
      %v621 = vpop.f32.mrf.mxu0
      %v622 = vpop.f32.mrf.mxu0
      %v623 = vadd.f32 0.0, %v622
      %v624 = vpop.f32.mrf.mxu0
      %625 = vmatprep.mubr.bf16.mxu0 0
      %626 = vmatmul.mubr.bf16.gmra.mxu0 %v527
      %v627 = vpop.f32.mrf.mxu0
      %v628 = vadd.f32 0.0, %v627
      %v629 = vpop.f32.mrf.mxu0
      %v630 = vpop.f32.mrf.mxu0
      %v631 = vadd.f32 0.0, %v630
      %v632 = vpop.f32.mrf.mxu0
      %633 = vmatprep.mubr.bf16.mxu0 0
      %634 = vmatmul.mubr.bf16.gmra.mxu0 %v530
      %v635 = vpop.f32.mrf.mxu0
      %v636 = vadd.f32 0.0, %v635
      %v637 = vpop.f32.mrf.mxu0
      %v638 = vpop.f32.mrf.mxu0
      %v639 = vadd.f32 0.0, %v638
      %v640 = vpop.f32.mrf.mxu0
      %641 = vmatprep.mubr.bf16.mxu0 0
      %642 = vmatmul.mubr.bf16.gmra.mxu0 %v533
      %v643 = vpop.f32.mrf.mxu0
      %v644 = vadd.f32 0.0, %v643
      %v645 = vpop.f32.mrf.mxu0
      %v646 = vpop.f32.mrf.mxu0
      %v647 = vadd.f32 0.0, %v646
      %v648 = vpop.f32.mrf.mxu0
      %649 = vmatprep.mubr.bf16.mxu0 0
      %650 = vmatmul.mubr.bf16.gmra.mxu0 %v536
      %v651 = vpop.f32.mrf.mxu0
      %v652 = vadd.f32 0.0, %v651
      %v653 = vpop.f32.mrf.mxu0
      %v654 = vpop.f32.mrf.mxu0
      %v655 = vadd.f32 0.0, %v654
      %v656 = vpop.f32.mrf.mxu0
      %657 = vmatprep.mubr.bf16.mxu0 0
      %658 = vmatmul.mubr.bf16.gmra.mxu0 %v539
      %v659 = vpop.f32.mrf.mxu0
      %v660 = vadd.f32 0.0, %v659
      %v661 = vpop.f32.mrf.mxu0
      %v662 = vpop.f32.mrf.mxu0
      %v663 = vadd.f32 0.0, %v662
      %v664 = vpop.f32.mrf.mxu0
      %665 = vmatprep.mubr.bf16.mxu0 0
      %666 = vmatmul.mubr.bf16.gmra.mxu0 %v542
      %v667 = vpop.f32.mrf.mxu0
      %v668 = vadd.f32 0.0, %v667
      %v669 = vpop.f32.mrf.mxu0
      %v670 = vpop.f32.mrf.mxu0
      %v671 = vadd.f32 0.0, %v670
      %v672 = vpop.f32.mrf.mxu0
      %673 = vmatprep.mubr.bf16.mxu0 0
      %674 = vmatmul.mubr.bf16.gmra.mxu0 %v545
      %v675 = vpop.f32.mrf.mxu0
      %v676 = vadd.f32 0.0, %v675
      %v677 = vpop.f32.mrf.mxu0
      %v678 = vpop.f32.mrf.mxu0
      %v679 = vadd.f32 0.0, %v678
      %v680 = vpop.f32.mrf.mxu0
      %681 = vmatprep.mubr.bf16.mxu0 0
      %682 = vmatmul.mubr.bf16.gmra.mxu0 %v548
      %v683 = vpop.f32.mrf.mxu0
      %v684 = vadd.f32 0.0, %v683
      %v685 = vpop.f32.mrf.mxu0
      %v686 = vpop.f32.mrf.mxu0
      %v687 = vadd.f32 0.0, %v686
      %v688 = vpop.f32.mrf.mxu0
      %689 = vmatprep.mubr.bf16.mxu0 0
      %690 = vmatmul.mubr.bf16.gmra.mxu0 %v551
      %v691 = vpop.f32.mrf.mxu0
      %v692 = vadd.f32 0.0, %v691
      %v693 = vpop.f32.mrf.mxu0
      %v694 = vpop.f32.mrf.mxu0
      %v695 = vadd.f32 0.0, %v694
      %v696 = vpop.f32.mrf.mxu0
      %697 = vmatprep.mubr.bf16.mxu0 0
      %698 = vmatmul.mubr.bf16.gmra.mxu0 %v554
      %v699 = vpop.f32.mrf.mxu0
      %v700 = vadd.f32 0.0, %v699
      %v701 = vpop.f32.mrf.mxu0
      %v702 = vpop.f32.mrf.mxu0
      %v703 = vadd.f32 0.0, %v702
      %v704 = vpop.f32.mrf.mxu0
      %705 = vmatprep.mubr.bf16.mxu0 0
      %706 = vmatmul.mubr.bf16.gmra.mxu0 %v557
      %v707 = vpop.f32.mrf.mxu0
      %v708 = vadd.f32 0.0, %v707
      %v709 = vpop.f32.mrf.mxu0
      %v710 = vpop.f32.mrf.mxu0
      %v711 = vadd.f32 0.0, %v710
      %v712 = vpop.f32.mrf.mxu0
      %713 = vmatprep.mubr.bf16.mxu0 0
      %714 = vmatmul.mubr.bf16.gmra.mxu0 %v560
      %v715 = vpop.f32.mrf.mxu0
      %v716 = vadd.f32 0.0, %v715
      %v717 = vpop.f32.mrf.mxu0
      %v718 = vpop.f32.mrf.mxu0
      %v719 = vadd.f32 0.0, %v718
      %v720 = vpop.f32.mrf.mxu0
      %721 = vmatprep.mubr.bf16.mxu0 0
      %722 = vmatmul.mubr.bf16.gmra.mxu0 %v563
      %v723 = vpop.f32.mrf.mxu0
      %v724 = vadd.f32 0.0, %v723
      %v725 = vpop.f32.mrf.mxu0
      %v726 = vpop.f32.mrf.mxu0
      %v727 = vadd.f32 0.0, %v726
      %v728 = vpop.f32.mrf.mxu0
      %729 = vdwg.mxu0
      %vm730 = vcmask 64512
      %v731 = vsel %vm730, %v604, 0.0
      %v732 = vsel %vm730, %v607, 0.0
      %v733 = vadd.f32 %v731, %v732
      %v734 = vsel %vm730, %v612, 0.0
      %v735 = vadd.f32 %v733, %v734
      %v736 = vsel %vm730, %v615, 0.0
      %v737 = vadd.f32 %v735, %v736
      %v738 = vsel %vm730, %v620, 0.0
      %v739 = vadd.f32 %v737, %v738
      %v740 = vsel %vm730, %v623, 0.0
      %v741 = vadd.f32 %v739, %v740
      %v742 = vsel %vm730, %v628, 0.0
      %v743 = vadd.f32 %v741, %v742
      %v744 = vsel %vm730, %v631, 0.0
      %v745 = vadd.f32 %v743, %v744
      %v746 = vsel %vm730, %v636, 0.0
      %v747 = vadd.f32 %v745, %v746
      %v748 = vsel %vm730, %v639, 0.0
      %v749 = vadd.f32 %v747, %v748
      %v750 = vsel %vm730, %v644, 0.0
      %v751 = vadd.f32 %v749, %v750
      %v752 = vsel %vm730, %v647, 0.0
      %v753 = vadd.f32 %v751, %v752
      %v754 = vsel %vm730, %v652, 0.0
      %v755 = vadd.f32 %v753, %v754
      %v756 = vsel %vm730, %v655, 0.0
      %v757 = vadd.f32 %v755, %v756
      %v758 = vsel %vm730, %v660, 0.0
      %v759 = vadd.f32 %v757, %v758
      %v760 = vsel %vm730, %v663, 0.0
      %v761 = vadd.f32 %v759, %v760
      %v762 = vsel %vm730, %v668, 0.0
      %v763 = vadd.f32 %v761, %v762
      %v764 = vsel %vm730, %v671, 0.0
      %v765 = vadd.f32 %v763, %v764
      %v766 = vsel %vm730, %v676, 0.0
      %v767 = vadd.f32 %v765, %v766
      %v768 = vsel %vm730, %v679, 0.0
      %v769 = vadd.f32 %v767, %v768
      %v770 = vsel %vm730, %v684, 0.0
      %v771 = vadd.f32 %v769, %v770
      %v772 = vsel %vm730, %v687, 0.0
      %v773 = vadd.f32 %v771, %v772
      %v774 = vsel %vm730, %v692, 0.0
      %v775 = vadd.f32 %v773, %v774
      %v776 = vsel %vm730, %v695, 0.0
      %v777 = vadd.f32 %v775, %v776
      %v778 = vsel %vm730, %v700, 0.0
      %v779 = vadd.f32 %v777, %v778
      %v780 = vsel %vm730, %v703, 0.0
      %v781 = vadd.f32 %v779, %v780
      %v782 = vsel %vm730, %v708, 0.0
      %v783 = vadd.f32 %v781, %v782
      %v784 = vsel %vm730, %v711, 0.0
      %v785 = vadd.f32 %v783, %v784
      %v786 = vsel %vm730, %v716, 0.0
      %v787 = vadd.f32 %v785, %v786
      %v788 = vsel %vm730, %v719, 0.0
      %v789 = vadd.f32 %v787, %v788
      %v790 = vsel %vm730, %v724, 0.0
      %v791 = vadd.f32 %v789, %v790
      %v792 = vsel %vm730, %v727, 0.0
      %v793 = vadd.f32 %v791, %v792
      %v794 = vrot.slane %v793, 4
      %v795 = vadd.f32 %v793, %v794
      %v796 = vrot.slane %v795, 2
      %v797 = vadd.f32 %v795, %v796
      %v798 = vrot.slane %v797, 1
      %v799 = vadd.f32 %v797, %v798
      %v800 = vadd.f32 %v799, 0.0
      %v801 = vmul.f32 %v604, %v604
      %v802 = vmul.f32 %v607, %v607
      %v803 = vmul.f32 %v612, %v612
      %v804 = vmul.f32 %v615, %v615
      %v805 = vmul.f32 %v620, %v620
      %v806 = vmul.f32 %v623, %v623
      %v807 = vmul.f32 %v628, %v628
      %v808 = vmul.f32 %v631, %v631
      %v809 = vmul.f32 %v636, %v636
      %v810 = vmul.f32 %v639, %v639
      %v811 = vmul.f32 %v644, %v644
      %v812 = vmul.f32 %v647, %v647
      %v813 = vmul.f32 %v652, %v652
      %v814 = vmul.f32 %v655, %v655
      %v815 = vmul.f32 %v660, %v660
      %v816 = vmul.f32 %v663, %v663
      %v817 = vmul.f32 %v668, %v668
      %v818 = vmul.f32 %v671, %v671
      %v819 = vmul.f32 %v676, %v676
      %v820 = vmul.f32 %v679, %v679
      %v821 = vmul.f32 %v684, %v684
      %v822 = vmul.f32 %v687, %v687
      %v823 = vmul.f32 %v692, %v692
      %v824 = vmul.f32 %v695, %v695
      %v825 = vmul.f32 %v700, %v700
      %v826 = vmul.f32 %v703, %v703
      %v827 = vmul.f32 %v708, %v708
      %v828 = vmul.f32 %v711, %v711
      %v829 = vmul.f32 %v716, %v716
      %v830 = vmul.f32 %v719, %v719
      %v831 = vmul.f32 %v724, %v724
      %v832 = vmul.f32 %v727, %v727
      %v833 = vsel %vm730, %v801, 0.0
      %v834 = vsel %vm730, %v802, 0.0
      %v835 = vadd.f32 %v833, %v834
      %v836 = vsel %vm730, %v803, 0.0
      %v837 = vadd.f32 %v835, %v836
      %v838 = vsel %vm730, %v804, 0.0
      %v839 = vadd.f32 %v837, %v838
      %v840 = vsel %vm730, %v805, 0.0
      %v841 = vadd.f32 %v839, %v840
      %v842 = vsel %vm730, %v806, 0.0
      %v843 = vadd.f32 %v841, %v842
      %v844 = vsel %vm730, %v807, 0.0
      %v845 = vadd.f32 %v843, %v844
      %v846 = vsel %vm730, %v808, 0.0
      %v847 = vadd.f32 %v845, %v846
      %v848 = vsel %vm730, %v809, 0.0
      %v849 = vadd.f32 %v847, %v848
      %v850 = vsel %vm730, %v810, 0.0
      %v851 = vadd.f32 %v849, %v850
      %v852 = vsel %vm730, %v811, 0.0
      %v853 = vadd.f32 %v851, %v852
      %v854 = vsel %vm730, %v812, 0.0
      %v855 = vadd.f32 %v853, %v854
      %v856 = vsel %vm730, %v813, 0.0
      %v857 = vadd.f32 %v855, %v856
      %v858 = vsel %vm730, %v814, 0.0
      %v859 = vadd.f32 %v857, %v858
      %v860 = vsel %vm730, %v815, 0.0
      %v861 = vadd.f32 %v859, %v860
      %v862 = vsel %vm730, %v816, 0.0
      %v863 = vadd.f32 %v861, %v862
      %v864 = vsel %vm730, %v817, 0.0
      %v865 = vadd.f32 %v863, %v864
      %v866 = vsel %vm730, %v818, 0.0
      %v867 = vadd.f32 %v865, %v866
      %v868 = vsel %vm730, %v819, 0.0
      %v869 = vadd.f32 %v867, %v868
      %v870 = vsel %vm730, %v820, 0.0
      %v871 = vadd.f32 %v869, %v870
      %v872 = vsel %vm730, %v821, 0.0
      %v873 = vadd.f32 %v871, %v872
      %v874 = vsel %vm730, %v822, 0.0
      %v875 = vadd.f32 %v873, %v874
      %v876 = vsel %vm730, %v823, 0.0
      %v877 = vadd.f32 %v875, %v876
      %v878 = vsel %vm730, %v824, 0.0
      %v879 = vadd.f32 %v877, %v878
      %v880 = vsel %vm730, %v825, 0.0
      %v881 = vadd.f32 %v879, %v880
      %v882 = vsel %vm730, %v826, 0.0
      %v883 = vadd.f32 %v881, %v882
      %v884 = vsel %vm730, %v827, 0.0
      %v885 = vadd.f32 %v883, %v884
      %v886 = vsel %vm730, %v828, 0.0
      %v887 = vadd.f32 %v885, %v886
      %v888 = vsel %vm730, %v829, 0.0
      %v889 = vadd.f32 %v887, %v888
      %v890 = vsel %vm730, %v830, 0.0
      %v891 = vadd.f32 %v889, %v890
      %v892 = vsel %vm730, %v831, 0.0
      %v893 = vadd.f32 %v891, %v892
      %v894 = vsel %vm730, %v832, 0.0
      %v895 = vadd.f32 %v893, %v894
      %v896 = vrot.slane %v895, 4
      %v897 = vadd.f32 %v895, %v896
      %v898 = vrot.slane %v897, 2
      %v899 = vadd.f32 %v897, %v898
      %v900 = vrot.slane %v899, 1
      %v901 = vadd.f32 %v899, %v900
      %v902 = vadd.f32 %v901, 0.0
      %903 = vxpose.xlu0.b32.start [1/16] %v604, 128
      %904 = vxpose.xlu0.b32.cont [2/16] %v607, 128
      %905 = vxpose.xlu0.b32.cont [3/16] %v612, 128
      %906 = vxpose.xlu0.b32.cont [4/16] %v615, 128
      %907 = vxpose.xlu0.b32.cont [5/16] %v620, 128
      %908 = vxpose.xlu0.b32.cont [6/16] %v623, 128
      %909 = vxpose.xlu0.b32.cont [7/16] %v628, 128
      %910 = vxpose.xlu0.b32.cont [8/16] %v631, 128
      %911 = vxpose.xlu0.b32.cont [9/16] %v636, 128
      %912 = vxpose.xlu0.b32.cont [10/16] %v639, 128
      %913 = vxpose.xlu0.b32.cont [11/16] %v644, 128
      %914 = vxpose.xlu0.b32.cont [12/16] %v647, 128
      %915 = vxpose.xlu0.b32.cont [13/16] %v652, 128
      %916 = vxpose.xlu0.b32.cont [14/16] %v655, 128
      %917 = vxpose.xlu0.b32.cont [15/16] %v660, 128
      %918 = vxpose.xlu0.b32.end [16/16] %v663, 128
      %v919 = vpop.trf.xlu0
      %v920 = vpop.trf.xlu0
      %v921 = vpop.trf.xlu0
      %v922 = vpop.trf.xlu0
      %v923 = vpop.trf.xlu0
      %v924 = vpop.trf.xlu0
      %v925 = vpop.trf.xlu0
      %v926 = vpop.trf.xlu0
      %v927 = vpop.trf.xlu0
      %v928 = vpop.trf.xlu0
      %v929 = vpop.trf.xlu0
      %v930 = vpop.trf.xlu0
      %v931 = vpop.trf.xlu0
      %v932 = vpop.trf.xlu0
      %v933 = vpop.trf.xlu0
      %v934 = vpop.trf.xlu0
      %935 = vxpose.xlu0.b32.start [1/16] %v668, 128
      %936 = vxpose.xlu0.b32.cont [2/16] %v671, 128
      %937 = vxpose.xlu0.b32.cont [3/16] %v676, 128
      %938 = vxpose.xlu0.b32.cont [4/16] %v679, 128
      %939 = vxpose.xlu0.b32.cont [5/16] %v684, 128
      %940 = vxpose.xlu0.b32.cont [6/16] %v687, 128
      %941 = vxpose.xlu0.b32.cont [7/16] %v692, 128
      %942 = vxpose.xlu0.b32.cont [8/16] %v695, 128
      %943 = vxpose.xlu0.b32.cont [9/16] %v700, 128
      %944 = vxpose.xlu0.b32.cont [10/16] %v703, 128
      %945 = vxpose.xlu0.b32.cont [11/16] %v708, 128
      %946 = vxpose.xlu0.b32.cont [12/16] %v711, 128
      %947 = vxpose.xlu0.b32.cont [13/16] %v716, 128
      %948 = vxpose.xlu0.b32.cont [14/16] %v719, 128
      %949 = vxpose.xlu0.b32.cont [15/16] %v724, 128
      %950 = vxpose.xlu0.b32.end [16/16] %v727, 128
      %v951 = vpop.trf.xlu0
      %v952 = vpop.trf.xlu0
      %v953 = vpop.trf.xlu0
      %v954 = vpop.trf.xlu0
      %v955 = vpop.trf.xlu0
      %v956 = vpop.trf.xlu0
      %v957 = vpop.trf.xlu0
      %v958 = vpop.trf.xlu0
      %v959 = vpop.trf.xlu0
      %v960 = vpop.trf.xlu0
      %v961 = vpop.trf.xlu0
      %v962 = vpop.trf.xlu0
      %v963 = vpop.trf.xlu0
      %v964 = vpop.trf.xlu0
      %v965 = vpop.trf.xlu0
      %v966 = vpop.trf.xlu0
      %v967 = vpack.c.bf16 %v919, %v919
      %v968 = vpack.c.bf16 %v951, %v951
      %v971 = vunpack.c.l.b16 %v967
      %v972 = vunpack.c.l.b16 %v968
      %v973 = vpack.c.b16 %v972, %v971
      %975 = vst [vmem:[%s389] sm:$0xff] %v973
      %v976 = vld [vmem:[%s364] sm:$0xf]
      %v977 = vld [vmem:[%s364 + $0x4] sm:$0xf]
      %v978 = vld [vmem:[%s364 + $0x8] sm:$0x1]
      %v979 = vld [vmem:[%s364 + $0xc] sm:$0xf]
      %v980 = vld [vmem:[%s364 + $0x10] sm:$0xf]
      %v981 = vld [vmem:[%s364 + $0x14] sm:$0x1]
      %v982 = vld [vmem:[%s364 + $0x18] sm:$0xf]
      %v983 = vld [vmem:[%s364 + $0x1c] sm:$0xf]
      %v984 = vld [vmem:[%s364 + $0x20] sm:$0x1]
      %v985 = vld [vmem:[%s364 + $0x24] sm:$0xf]
      %v986 = vld [vmem:[%s364 + $0x28] sm:$0xf]
      %v987 = vld [vmem:[%s364 + $0x2c] sm:$0x1]
      %v988 = vld [vmem:[%s364 + $0x30] sm:$0xf]
      %v989 = vld [vmem:[%s364 + $0x34] sm:$0xf]
      %v990 = vld [vmem:[%s364 + $0x38] sm:$0x1]
      %v991 = vld [vmem:[%s364 + $0x3c] sm:$0xf]
      %v992 = vld [vmem:[%s364 + $0x40] sm:$0xf]
      %v993 = vld [vmem:[%s364 + $0x44] sm:$0x1]
      %v994 = vld [vmem:[%s364 + $0x48] sm:$0xf]
      %v995 = vld [vmem:[%s364 + $0x4c] sm:$0xf]
      %v996 = vld [vmem:[%s364 + $0x50] sm:$0x1]
      %v997 = vld [vmem:[%s364 + $0x54] sm:$0xf]
      %v998 = vld [vmem:[%s364 + $0x58] sm:$0xf]
      %v999 = vld [vmem:[%s364 + $0x5c] sm:$0x1]
      %v1000 = vld [vmem:[%s364 + $0x60] sm:$0xf]
      %v1001 = vld [vmem:[%s364 + $0x64] sm:$0xf]
      %v1002 = vld [vmem:[%s364 + $0x68] sm:$0x1]
      %v1003 = vld [vmem:[%s364 + $0x6c] sm:$0xf]
      %v1004 = vld [vmem:[%s364 + $0x70] sm:$0xf]
      %v1005 = vld [vmem:[%s364 + $0x74] sm:$0x1]
      %v1006 = vld [vmem:[%s364 + $0x78] sm:$0xf]
      %v1007 = vld [vmem:[%s364 + $0x7c] sm:$0xf]
      %v1008 = vld [vmem:[%s364 + $0x80] sm:$0x1]
      %v1009 = vld [vmem:[%s364 + $0x84] sm:$0xf]
      %v1010 = vld [vmem:[%s364 + $0x88] sm:$0xf]
      %v1011 = vld [vmem:[%s364 + $0x8c] sm:$0x1]
      %v1012 = vld [vmem:[%s364 + $0x90] sm:$0xf]
      %v1013 = vld [vmem:[%s364 + $0x94] sm:$0xf]
      %v1014 = vld [vmem:[%s364 + $0x98] sm:$0x1]
      %v1015 = vld [vmem:[%s364 + $0x9c] sm:$0xf]
      %v1016 = vld [vmem:[%s364 + $0xa0] sm:$0xf]
      %v1017 = vld [vmem:[%s364 + $0xa4] sm:$0x1]
      %v1018 = vld [vmem:[%s364 + $0xa8] sm:$0xf]
      %v1019 = vld [vmem:[%s364 + $0xac] sm:$0xf]
      %v1020 = vld [vmem:[%s364 + $0xb0] sm:$0x1]
      %v1021 = vld [vmem:[%s364 + $0xb4] sm:$0xf]
      %v1022 = vld [vmem:[%s364 + $0xb8] sm:$0xf]
      %v1023 = vld [vmem:[%s364 + $0xbc] sm:$0x1]
      %v1072 = vunpack.c.l.b16 %v976
      %v1073 = vunpack.c.l.b16 %v977
      %v1074 = vunpack.c.l.b16 %v978
      %v1075 = vunpack.c.l.b16 %v979
      %v1076 = vunpack.c.l.b16 %v980
      %v1077 = vunpack.c.l.b16 %v981
      %v1078 = vunpack.c.l.b16 %v982
      %v1079 = vunpack.c.l.b16 %v983
      %v1080 = vunpack.c.l.b16 %v984
      %v1081 = vunpack.c.l.b16 %v985
      %v1082 = vunpack.c.l.b16 %v986
      %v1083 = vunpack.c.l.b16 %v987
      %v1084 = vunpack.c.l.b16 %v988
      %v1085 = vunpack.c.l.b16 %v989
      %v1086 = vunpack.c.l.b16 %v990
      %v1087 = vunpack.c.l.b16 %v991
      %v1088 = vunpack.c.l.b16 %v992
      %v1089 = vunpack.c.l.b16 %v993
      %v1090 = vunpack.c.l.b16 %v994
      %v1091 = vunpack.c.l.b16 %v995
      %v1092 = vunpack.c.l.b16 %v996
      %v1093 = vunpack.c.l.b16 %v997
      %v1094 = vunpack.c.l.b16 %v998
      %v1095 = vunpack.c.l.b16 %v999
      %v1096 = vunpack.c.l.b16 %v1000
      %v1097 = vunpack.c.l.b16 %v1001
      %v1098 = vunpack.c.l.b16 %v1002
      %v1099 = vunpack.c.l.b16 %v1003
      %v1100 = vunpack.c.l.b16 %v1004
      %v1101 = vunpack.c.l.b16 %v1005
      %v1102 = vunpack.c.l.b16 %v1006
      %v1103 = vunpack.c.l.b16 %v1007
      %v1104 = vunpack.c.l.b16 %v1008
      %v1105 = vunpack.c.l.b16 %v1009
      %v1106 = vunpack.c.l.b16 %v1010
      %v1107 = vunpack.c.l.b16 %v1011
      %v1108 = vunpack.c.l.b16 %v1012
      %v1109 = vunpack.c.l.b16 %v1013
      %v1110 = vunpack.c.l.b16 %v1014
      %v1111 = vunpack.c.l.b16 %v1015
      %v1112 = vunpack.c.l.b16 %v1016
      %v1113 = vunpack.c.l.b16 %v1017
      %v1114 = vunpack.c.l.b16 %v1018
      %v1115 = vunpack.c.l.b16 %v1019
      %v1116 = vunpack.c.l.b16 %v1020
      %v1117 = vunpack.c.l.b16 %v1021
      %v1118 = vunpack.c.l.b16 %v1022
      %v1119 = vunpack.c.l.b16 %v1023
      %v1120 = vpack.c.b16 %v1073, %v1072
      %v1121 = vpack.c.b16 %v1074, %v1074
      %v1122 = vpack.c.b16 %v1076, %v1075
      %v1123 = vpack.c.b16 %v1077, %v1077
      %v1124 = vpack.c.b16 %v1079, %v1078
      %v1125 = vpack.c.b16 %v1080, %v1080
      %v1126 = vpack.c.b16 %v1082, %v1081
      %v1127 = vpack.c.b16 %v1083, %v1083
      %v1128 = vpack.c.b16 %v1085, %v1084
      %v1129 = vpack.c.b16 %v1086, %v1086
      %v1130 = vpack.c.b16 %v1088, %v1087
      %v1131 = vpack.c.b16 %v1089, %v1089
      %v1132 = vpack.c.b16 %v1091, %v1090
      %v1133 = vpack.c.b16 %v1092, %v1092
      %v1134 = vpack.c.b16 %v1094, %v1093
      %v1135 = vpack.c.b16 %v1095, %v1095
      %v1136 = vpack.c.b16 %v1097, %v1096
      %v1137 = vpack.c.b16 %v1098, %v1098
      %v1138 = vpack.c.b16 %v1100, %v1099
      %v1139 = vpack.c.b16 %v1101, %v1101
      %v1140 = vpack.c.b16 %v1103, %v1102
      %v1141 = vpack.c.b16 %v1104, %v1104
      %v1142 = vpack.c.b16 %v1106, %v1105
      %v1143 = vpack.c.b16 %v1107, %v1107
      %v1144 = vpack.c.b16 %v1109, %v1108
      %v1145 = vpack.c.b16 %v1110, %v1110
      %v1146 = vpack.c.b16 %v1112, %v1111
      %v1147 = vpack.c.b16 %v1113, %v1113
      %v1148 = vpack.c.b16 %v1115, %v1114
      %v1149 = vpack.c.b16 %v1116, %v1116
      %v1150 = vpack.c.b16 %v1118, %v1117
      %v1151 = vpack.c.b16 %v1119, %v1119
      %v1153 = vshrl.u32 %v1120, 16
      %v1155 = vrot.slane %v1153, 7
      %v1156 = vshll.u32 %v1120, 16
      %v1158 = vor.u32 %v1155, %v1156
      %v1160 = vshrl.u32 %v1122, 16
      %v1162 = vrot.slane %v1160, 7
      %v1163 = vshll.u32 %v1122, 16
      %v1165 = vor.u32 %v1162, %v1163
      %v1167 = vshrl.u32 %v1124, 16
      %v1169 = vrot.slane %v1167, 7
      %v1170 = vshll.u32 %v1124, 16
      %v1172 = vor.u32 %v1169, %v1170
      %v1174 = vshrl.u32 %v1126, 16
      %v1176 = vrot.slane %v1174, 7
      %v1177 = vshll.u32 %v1126, 16
      %v1179 = vor.u32 %v1176, %v1177
      %v1181 = vshrl.u32 %v1128, 16
      %v1183 = vrot.slane %v1181, 7
      %v1184 = vshll.u32 %v1128, 16
      %v1186 = vor.u32 %v1183, %v1184
      %v1188 = vshrl.u32 %v1130, 16
      %v1190 = vrot.slane %v1188, 7
      %v1191 = vshll.u32 %v1130, 16
      %v1193 = vor.u32 %v1190, %v1191
      %v1195 = vshrl.u32 %v1132, 16
      %v1197 = vrot.slane %v1195, 7
      %v1198 = vshll.u32 %v1132, 16
      %v1200 = vor.u32 %v1197, %v1198
      %v1202 = vshrl.u32 %v1134, 16
      %v1204 = vrot.slane %v1202, 7
      %v1205 = vshll.u32 %v1134, 16
      %v1207 = vor.u32 %v1204, %v1205
      %v1209 = vshrl.u32 %v1136, 16
      %v1211 = vrot.slane %v1209, 7
      %v1212 = vshll.u32 %v1136, 16
      %v1214 = vor.u32 %v1211, %v1212
      %v1216 = vshrl.u32 %v1138, 16
      %v1218 = vrot.slane %v1216, 7
      %v1219 = vshll.u32 %v1138, 16
      %v1221 = vor.u32 %v1218, %v1219
      %v1223 = vshrl.u32 %v1140, 16
      %v1225 = vrot.slane %v1223, 7
      %v1226 = vshll.u32 %v1140, 16
      %v1228 = vor.u32 %v1225, %v1226
      %v1230 = vshrl.u32 %v1142, 16
      %v1232 = vrot.slane %v1230, 7
      %v1233 = vshll.u32 %v1142, 16
      %v1235 = vor.u32 %v1232, %v1233
      %v1237 = vshrl.u32 %v1144, 16
      %v1239 = vrot.slane %v1237, 7
      %v1240 = vshll.u32 %v1144, 16
      %v1242 = vor.u32 %v1239, %v1240
      %v1244 = vshrl.u32 %v1146, 16
      %v1246 = vrot.slane %v1244, 7
      %v1247 = vshll.u32 %v1146, 16
      %v1249 = vor.u32 %v1246, %v1247
      %v1251 = vshrl.u32 %v1148, 16
      %v1253 = vrot.slane %v1251, 7
      %v1254 = vshll.u32 %v1148, 16
      %v1256 = vor.u32 %v1253, %v1254
      %v1258 = vshrl.u32 %v1150, 16
      %v1260 = vrot.slane %v1258, 7
      %v1261 = vshll.u32 %v1150, 16
      %v1263 = vor.u32 %v1260, %v1261
      %1264 = vrot.lane.b32.xlu0 %v1158, 4
      %v1265 = vpop.permute.xlu0 %1264
      %1266 = vrot.lane.b32.xlu0 %v1155, 4
      %v1267 = vpop.permute.xlu0 %1266
      %1268 = vrot.lane.b32.xlu0 %v1165, 4
      %v1269 = vpop.permute.xlu0 %1268
      %1270 = vrot.lane.b32.xlu0 %v1162, 4
      %v1271 = vpop.permute.xlu0 %1270
      %1272 = vrot.lane.b32.xlu0 %v1172, 4
      %v1273 = vpop.permute.xlu0 %1272
      %1274 = vrot.lane.b32.xlu0 %v1169, 4
      %v1275 = vpop.permute.xlu0 %1274
      %1276 = vrot.lane.b32.xlu0 %v1179, 4
      %v1277 = vpop.permute.xlu0 %1276
      %1278 = vrot.lane.b32.xlu0 %v1176, 4
      %v1279 = vpop.permute.xlu0 %1278
      %1280 = vrot.lane.b32.xlu0 %v1186, 4
      %v1281 = vpop.permute.xlu0 %1280
      %1282 = vrot.lane.b32.xlu0 %v1183, 4
      %v1283 = vpop.permute.xlu0 %1282
      %1284 = vrot.lane.b32.xlu0 %v1193, 4
      %v1285 = vpop.permute.xlu0 %1284
      %1286 = vrot.lane.b32.xlu0 %v1190, 4
      %v1287 = vpop.permute.xlu0 %1286
      %1288 = vrot.lane.b32.xlu0 %v1200, 4
      %v1289 = vpop.permute.xlu0 %1288
      %1290 = vrot.lane.b32.xlu0 %v1197, 4
      %v1291 = vpop.permute.xlu0 %1290
      %1292 = vrot.lane.b32.xlu0 %v1207, 4
      %v1293 = vpop.permute.xlu0 %1292
      %1294 = vrot.lane.b32.xlu0 %v1204, 4
      %v1295 = vpop.permute.xlu0 %1294
      %1296 = vrot.lane.b32.xlu0 %v1214, 4
      %v1297 = vpop.permute.xlu0 %1296
      %1298 = vrot.lane.b32.xlu0 %v1211, 4
      %v1299 = vpop.permute.xlu0 %1298
      %1300 = vrot.lane.b32.xlu0 %v1221, 4
      %v1301 = vpop.permute.xlu0 %1300
      %1302 = vrot.lane.b32.xlu0 %v1218, 4
      %v1303 = vpop.permute.xlu0 %1302
      %1304 = vrot.lane.b32.xlu0 %v1228, 4
      %v1305 = vpop.permute.xlu0 %1304
      %1306 = vrot.lane.b32.xlu0 %v1225, 4
      %v1307 = vpop.permute.xlu0 %1306
      %1308 = vrot.lane.b32.xlu0 %v1235, 4
      %v1309 = vpop.permute.xlu0 %1308
      %1310 = vrot.lane.b32.xlu0 %v1232, 4
      %v1311 = vpop.permute.xlu0 %1310
      %1312 = vrot.lane.b32.xlu0 %v1242, 4
      %v1313 = vpop.permute.xlu0 %1312
      %1314 = vrot.lane.b32.xlu0 %v1239, 4
      %v1315 = vpop.permute.xlu0 %1314
      %1316 = vrot.lane.b32.xlu0 %v1249, 4
      %v1317 = vpop.permute.xlu0 %1316
      %1318 = vrot.lane.b32.xlu0 %v1246, 4
      %v1319 = vpop.permute.xlu0 %1318
      %1320 = vrot.lane.b32.xlu0 %v1256, 4
      %v1321 = vpop.permute.xlu0 %1320
      %1322 = vrot.lane.b32.xlu0 %v1253, 4
      %v1323 = vpop.permute.xlu0 %1322
      %1324 = vrot.lane.b32.xlu0 %v1263, 4
      %v1325 = vpop.permute.xlu0 %1324
      %1326 = vrot.lane.b32.xlu0 %v1260, 4
      %v1327 = vpop.permute.xlu0 %1326
      %v1329 = vsel %vm516, %v1120, %v1265
      %v1332 = vsel %vm516, %v1121, %v1267
      %v1334 = vsel %vm516, %v1122, %v1269
      %v1337 = vsel %vm516, %v1123, %v1271
      %v1339 = vsel %vm516, %v1124, %v1273
      %v1342 = vsel %vm516, %v1125, %v1275
      %v1344 = vsel %vm516, %v1126, %v1277
      %v1347 = vsel %vm516, %v1127, %v1279
      %v1349 = vsel %vm516, %v1128, %v1281
      %v1352 = vsel %vm516, %v1129, %v1283
      %v1354 = vsel %vm516, %v1130, %v1285
      %v1357 = vsel %vm516, %v1131, %v1287
      %v1359 = vsel %vm516, %v1132, %v1289
      %v1362 = vsel %vm516, %v1133, %v1291
      %v1364 = vsel %vm516, %v1134, %v1293
      %v1367 = vsel %vm516, %v1135, %v1295
      %v1369 = vsel %vm516, %v1136, %v1297
      %v1372 = vsel %vm516, %v1137, %v1299
      %v1374 = vsel %vm516, %v1138, %v1301
      %v1377 = vsel %vm516, %v1139, %v1303
      %v1379 = vsel %vm516, %v1140, %v1305
      %v1382 = vsel %vm516, %v1141, %v1307
      %v1384 = vsel %vm516, %v1142, %v1309
      %v1387 = vsel %vm516, %v1143, %v1311
      %v1389 = vsel %vm516, %v1144, %v1313
      %v1392 = vsel %vm516, %v1145, %v1315
      %v1394 = vsel %vm516, %v1146, %v1317
      %v1397 = vsel %vm516, %v1147, %v1319
      %v1399 = vsel %vm516, %v1148, %v1321
      %v1402 = vsel %vm516, %v1149, %v1323
      %v1404 = vsel %vm516, %v1150, %v1325
      %v1407 = vsel %vm516, %v1151, %v1327
      %vm1408 = vsmask.f32 7424
      %v1409 = vshrl.u32 %v1329, 16
      %v1411 = vshll.u32 %v1329, 16
      %v1413 = vrot.slane %v1411, 1
      %v1414 = vor.u32 %v1409, %v1413
      %v1415 = vshll.u32 %v1332, 16
      %v1417 = vrot.slane %v1415, 1
      %v1418 = vsel %vm1408, %v1414, %v1417
      %v1419 = vshrl.u32 %v1334, 16
      %v1421 = vshll.u32 %v1334, 16
      %v1423 = vrot.slane %v1421, 1
      %v1424 = vor.u32 %v1419, %v1423
      %v1425 = vshll.u32 %v1337, 16
      %v1427 = vrot.slane %v1425, 1
      %v1428 = vsel %vm1408, %v1424, %v1427
      %v1429 = vshrl.u32 %v1339, 16
      %v1431 = vshll.u32 %v1339, 16
      %v1433 = vrot.slane %v1431, 1
      %v1434 = vor.u32 %v1429, %v1433
      %v1435 = vshll.u32 %v1342, 16
      %v1437 = vrot.slane %v1435, 1
      %v1438 = vsel %vm1408, %v1434, %v1437
      %v1439 = vshrl.u32 %v1344, 16
      %v1441 = vshll.u32 %v1344, 16
      %v1443 = vrot.slane %v1441, 1
      %v1444 = vor.u32 %v1439, %v1443
      %v1445 = vshll.u32 %v1347, 16
      %v1447 = vrot.slane %v1445, 1
      %v1448 = vsel %vm1408, %v1444, %v1447
      %v1449 = vshrl.u32 %v1349, 16
      %v1451 = vshll.u32 %v1349, 16
      %v1453 = vrot.slane %v1451, 1
      %v1454 = vor.u32 %v1449, %v1453
      %v1455 = vshll.u32 %v1352, 16
      %v1457 = vrot.slane %v1455, 1
      %v1458 = vsel %vm1408, %v1454, %v1457
      %v1459 = vshrl.u32 %v1354, 16
      %v1461 = vshll.u32 %v1354, 16
      %v1463 = vrot.slane %v1461, 1
      %v1464 = vor.u32 %v1459, %v1463
      %v1465 = vshll.u32 %v1357, 16
      %v1467 = vrot.slane %v1465, 1
      %v1468 = vsel %vm1408, %v1464, %v1467
      %v1469 = vshrl.u32 %v1359, 16
      %v1471 = vshll.u32 %v1359, 16
      %v1473 = vrot.slane %v1471, 1
      %v1474 = vor.u32 %v1469, %v1473
      %v1475 = vshll.u32 %v1362, 16
      %v1477 = vrot.slane %v1475, 1
      %v1478 = vsel %vm1408, %v1474, %v1477
      %v1479 = vshrl.u32 %v1364, 16
      %v1481 = vshll.u32 %v1364, 16
      %v1483 = vrot.slane %v1481, 1
      %v1484 = vor.u32 %v1479, %v1483
      %v1485 = vshll.u32 %v1367, 16
      %v1487 = vrot.slane %v1485, 1
      %v1488 = vsel %vm1408, %v1484, %v1487
      %v1489 = vshrl.u32 %v1369, 16
      %v1491 = vshll.u32 %v1369, 16
      %v1493 = vrot.slane %v1491, 1
      %v1494 = vor.u32 %v1489, %v1493
      %v1495 = vshll.u32 %v1372, 16
      %v1497 = vrot.slane %v1495, 1
      %v1498 = vsel %vm1408, %v1494, %v1497
      %v1499 = vshrl.u32 %v1374, 16
      %v1501 = vshll.u32 %v1374, 16
      %v1503 = vrot.slane %v1501, 1
      %v1504 = vor.u32 %v1499, %v1503
      %v1505 = vshll.u32 %v1377, 16
      %v1507 = vrot.slane %v1505, 1
      %v1508 = vsel %vm1408, %v1504, %v1507
      %v1509 = vshrl.u32 %v1379, 16
      %v1511 = vshll.u32 %v1379, 16
      %v1513 = vrot.slane %v1511, 1
      %v1514 = vor.u32 %v1509, %v1513
      %v1515 = vshll.u32 %v1382, 16
      %v1517 = vrot.slane %v1515, 1
      %v1518 = vsel %vm1408, %v1514, %v1517
      %v1519 = vshrl.u32 %v1384, 16
      %v1521 = vshll.u32 %v1384, 16
      %v1523 = vrot.slane %v1521, 1
      %v1524 = vor.u32 %v1519, %v1523
      %v1525 = vshll.u32 %v1387, 16
      %v1527 = vrot.slane %v1525, 1
      %v1528 = vsel %vm1408, %v1524, %v1527
      %v1529 = vshrl.u32 %v1389, 16
      %v1531 = vshll.u32 %v1389, 16
      %v1533 = vrot.slane %v1531, 1
      %v1534 = vor.u32 %v1529, %v1533
      %v1535 = vshll.u32 %v1392, 16
      %v1537 = vrot.slane %v1535, 1
      %v1538 = vsel %vm1408, %v1534, %v1537
      %v1539 = vshrl.u32 %v1394, 16
      %v1541 = vshll.u32 %v1394, 16
      %v1543 = vrot.slane %v1541, 1
      %v1544 = vor.u32 %v1539, %v1543
      %v1545 = vshll.u32 %v1397, 16
      %v1547 = vrot.slane %v1545, 1
      %v1548 = vsel %vm1408, %v1544, %v1547
      %v1549 = vshrl.u32 %v1399, 16
      %v1551 = vshll.u32 %v1399, 16
      %v1553 = vrot.slane %v1551, 1
      %v1554 = vor.u32 %v1549, %v1553
      %v1555 = vshll.u32 %v1402, 16
      %v1557 = vrot.slane %v1555, 1
      %v1558 = vsel %vm1408, %v1554, %v1557
      %v1559 = vshrl.u32 %v1404, 16
      %v1561 = vshll.u32 %v1404, 16
      %v1563 = vrot.slane %v1561, 1
      %v1564 = vor.u32 %v1559, %v1563
      %v1565 = vshll.u32 %v1407, 16
      %v1567 = vrot.slane %v1565, 1
      %v1568 = vsel %vm1408, %v1564, %v1567
      %v1569 = vld [vmem:[%s372] sm:$0xf]
      %v1571 = vsel %vm730, %v1418, 0
      %v1574 = vsel %vm730, %v1428, 0
      %v1577 = vsel %vm730, %v1438, 0
      %v1580 = vsel %vm730, %v1448, 0
      %v1583 = vsel %vm730, %v1458, 0
      %v1586 = vsel %vm730, %v1468, 0
      %v1589 = vsel %vm730, %v1478, 0
      %v1592 = vsel %vm730, %v1488, 0
      %v1595 = vsel %vm730, %v1498, 0
      %v1598 = vsel %vm730, %v1508, 0
      %v1601 = vsel %vm730, %v1518, 0
      %v1604 = vsel %vm730, %v1528, 0
      %v1607 = vsel %vm730, %v1538, 0
      %v1610 = vsel %vm730, %v1548, 0
      %v1613 = vsel %vm730, %v1558, 0
      %v1616 = vsel %vm730, %v1568, 0
      %vm1618 = vcmask 1043456
      %v1620 = vsel %vm1618, %v1569, 0
      %1622 = vmatprep.subr.bf16.mxu0 0
      %1623 = vmatpush1.bf16.msra.mxu0 0
      %1624 = vmatprep.subr.bf16.mxu0 0
      %1625 = vmatpush1.bf16.msra.mxu0 0
      %1626 = vmatprep.subr.bf16.mxu0 0
      %1627 = vmatpush1.bf16.msra.mxu0 0
      %1628 = vmatprep.subr.bf16.mxu0 0
      %1629 = vmatpush1.bf16.msra.mxu0 0
      %1630 = vmatprep.subr.bf16.mxu0 0
      %1631 = vmatpush1.bf16.msra.mxu0 0
      %1632 = vmatprep.subr.bf16.mxu0 0
      %1633 = vmatpush1.bf16.msra.mxu0 0
      %1634 = vmatprep.subr.bf16.mxu0 0
      %1635 = vmatpush1.bf16.msra.mxu0 0
      %1636 = vmatprep.subr.bf16.mxu0 0
      %1637 = vmatpush1.bf16.msra.mxu0 %v1620
      %1638 = vmatprep.subr.bf16.mxu0 0
      %1639 = vmatpush2.bf16.msra.mxu0 0
      %1640 = vmatprep.subr.bf16.mxu0 0
      %1641 = vmatpush2.bf16.msra.mxu0 0
      %1642 = vmatprep.subr.bf16.mxu0 0
      %1643 = vmatpush2.bf16.msra.mxu0 0
      %1644 = vmatprep.subr.bf16.mxu0 0
      %1645 = vmatpush2.bf16.msra.mxu0 0
      %1646 = vmatprep.subr.bf16.mxu0 0
      %1647 = vmatpush2.bf16.msra.mxu0 0
      %1648 = vmatprep.subr.bf16.mxu0 0
      %1649 = vmatpush2.bf16.msra.mxu0 0
      %1650 = vmatprep.subr.bf16.mxu0 0
      %1651 = vmatpush2.bf16.msra.mxu0 0
      %1652 = vmatprep.subr.bf16.mxu0 0
      %1653 = vmatpush2.bf16.msra.mxu0 0
      %1654 = vmatprep.mubr.bf16.mxu0 0
      %1655 = vmatmul.mubr.bf16.gmra.mxu0 %v1571
      %v1656 = vpop.f32.mrf.mxu0
      %v1657 = vadd.f32 0.0, %v1656
      %v1658 = vpop.f32.mrf.mxu0
      %v1659 = vpop.f32.mrf.mxu0
      %v1660 = vadd.f32 0.0, %v1659
      %v1661 = vpop.f32.mrf.mxu0
      %1662 = vmatprep.mubr.bf16.mxu0 0
      %1663 = vmatmul.mubr.bf16.gmra.mxu0 %v1574
      %v1664 = vpop.f32.mrf.mxu0
      %v1665 = vadd.f32 0.0, %v1664
      %v1666 = vpop.f32.mrf.mxu0
      %v1667 = vpop.f32.mrf.mxu0
      %v1668 = vadd.f32 0.0, %v1667
      %v1669 = vpop.f32.mrf.mxu0
      %1670 = vmatprep.mubr.bf16.mxu0 0
      %1671 = vmatmul.mubr.bf16.gmra.mxu0 %v1577
      %v1672 = vpop.f32.mrf.mxu0
      %v1673 = vadd.f32 0.0, %v1672
      %v1674 = vpop.f32.mrf.mxu0
      %v1675 = vpop.f32.mrf.mxu0
      %v1676 = vadd.f32 0.0, %v1675
      %v1677 = vpop.f32.mrf.mxu0
      %1678 = vmatprep.mubr.bf16.mxu0 0
      %1679 = vmatmul.mubr.bf16.gmra.mxu0 %v1580
      %v1680 = vpop.f32.mrf.mxu0
      %v1681 = vadd.f32 0.0, %v1680
      %v1682 = vpop.f32.mrf.mxu0
      %v1683 = vpop.f32.mrf.mxu0
      %v1684 = vadd.f32 0.0, %v1683
      %v1685 = vpop.f32.mrf.mxu0
      %1686 = vmatprep.mubr.bf16.mxu0 0
      %1687 = vmatmul.mubr.bf16.gmra.mxu0 %v1583
      %v1688 = vpop.f32.mrf.mxu0
      %v1689 = vadd.f32 0.0, %v1688
      %v1690 = vpop.f32.mrf.mxu0
      %v1691 = vpop.f32.mrf.mxu0
      %v1692 = vadd.f32 0.0, %v1691
      %v1693 = vpop.f32.mrf.mxu0
      %1694 = vmatprep.mubr.bf16.mxu0 0
      %1695 = vmatmul.mubr.bf16.gmra.mxu0 %v1586
      %v1696 = vpop.f32.mrf.mxu0
      %v1697 = vadd.f32 0.0, %v1696
      %v1698 = vpop.f32.mrf.mxu0
      %v1699 = vpop.f32.mrf.mxu0
      %v1700 = vadd.f32 0.0, %v1699
      %v1701 = vpop.f32.mrf.mxu0
      %1702 = vmatprep.mubr.bf16.mxu0 0
      %1703 = vmatmul.mubr.bf16.gmra.mxu0 %v1589
      %v1704 = vpop.f32.mrf.mxu0
      %v1705 = vadd.f32 0.0, %v1704
      %v1706 = vpop.f32.mrf.mxu0
      %v1707 = vpop.f32.mrf.mxu0
      %v1708 = vadd.f32 0.0, %v1707
      %v1709 = vpop.f32.mrf.mxu0
      %1710 = vmatprep.mubr.bf16.mxu0 0
      %1711 = vmatmul.mubr.bf16.gmra.mxu0 %v1592
      %v1712 = vpop.f32.mrf.mxu0
      %v1713 = vadd.f32 0.0, %v1712
      %v1714 = vpop.f32.mrf.mxu0
      %v1715 = vpop.f32.mrf.mxu0
      %v1716 = vadd.f32 0.0, %v1715
      %v1717 = vpop.f32.mrf.mxu0
      %1718 = vmatprep.mubr.bf16.mxu0 0
      %1719 = vmatmul.mubr.bf16.gmra.mxu0 %v1595
      %v1720 = vpop.f32.mrf.mxu0
      %v1721 = vadd.f32 0.0, %v1720
      %v1722 = vpop.f32.mrf.mxu0
      %v1723 = vpop.f32.mrf.mxu0
      %v1724 = vadd.f32 0.0, %v1723
      %v1725 = vpop.f32.mrf.mxu0
      %1726 = vmatprep.mubr.bf16.mxu0 0
      %1727 = vmatmul.mubr.bf16.gmra.mxu0 %v1598
      %v1728 = vpop.f32.mrf.mxu0
      %v1729 = vadd.f32 0.0, %v1728
      %v1730 = vpop.f32.mrf.mxu0
      %v1731 = vpop.f32.mrf.mxu0
      %v1732 = vadd.f32 0.0, %v1731
      %v1733 = vpop.f32.mrf.mxu0
      %1734 = vmatprep.mubr.bf16.mxu0 0
      %1735 = vmatmul.mubr.bf16.gmra.mxu0 %v1601
      %v1736 = vpop.f32.mrf.mxu0
      %v1737 = vadd.f32 0.0, %v1736
      %v1738 = vpop.f32.mrf.mxu0
      %v1739 = vpop.f32.mrf.mxu0
      %v1740 = vadd.f32 0.0, %v1739
      %v1741 = vpop.f32.mrf.mxu0
      %1742 = vmatprep.mubr.bf16.mxu0 0
      %1743 = vmatmul.mubr.bf16.gmra.mxu0 %v1604
      %v1744 = vpop.f32.mrf.mxu0
      %v1745 = vadd.f32 0.0, %v1744
      %v1746 = vpop.f32.mrf.mxu0
      %v1747 = vpop.f32.mrf.mxu0
      %v1748 = vadd.f32 0.0, %v1747
      %v1749 = vpop.f32.mrf.mxu0
      %1750 = vmatprep.mubr.bf16.mxu0 0
      %1751 = vmatmul.mubr.bf16.gmra.mxu0 %v1607
      %v1752 = vpop.f32.mrf.mxu0
      %v1753 = vadd.f32 0.0, %v1752
      %v1754 = vpop.f32.mrf.mxu0
      %v1755 = vpop.f32.mrf.mxu0
      %v1756 = vadd.f32 0.0, %v1755
      %v1757 = vpop.f32.mrf.mxu0
      %1758 = vmatprep.mubr.bf16.mxu0 0
      %1759 = vmatmul.mubr.bf16.gmra.mxu0 %v1610
      %v1760 = vpop.f32.mrf.mxu0
      %v1761 = vadd.f32 0.0, %v1760
      %v1762 = vpop.f32.mrf.mxu0
      %v1763 = vpop.f32.mrf.mxu0
      %v1764 = vadd.f32 0.0, %v1763
      %v1765 = vpop.f32.mrf.mxu0
      %1766 = vmatprep.mubr.bf16.mxu0 0
      %1767 = vmatmul.mubr.bf16.gmra.mxu0 %v1613
      %v1768 = vpop.f32.mrf.mxu0
      %v1769 = vadd.f32 0.0, %v1768
      %v1770 = vpop.f32.mrf.mxu0
      %v1771 = vpop.f32.mrf.mxu0
      %v1772 = vadd.f32 0.0, %v1771
      %v1773 = vpop.f32.mrf.mxu0
      %1774 = vmatprep.mubr.bf16.mxu0 0
      %1775 = vmatmul.mubr.bf16.gmra.mxu0 %v1616
      %v1776 = vpop.f32.mrf.mxu0
      %v1777 = vadd.f32 0.0, %v1776
      %v1778 = vpop.f32.mrf.mxu0
      %v1779 = vpop.f32.mrf.mxu0
      %v1780 = vadd.f32 0.0, %v1779
      %v1781 = vpop.f32.mrf.mxu0
      %1782 = vdwg.mxu0
      %v1783 = vsel %vm730, %v1657, 0.0
      %v1784 = vsel %vm730, %v1660, 0.0
      %v1785 = vadd.f32 %v1783, %v1784
      %v1786 = vsel %vm730, %v1665, 0.0
      %v1787 = vadd.f32 %v1785, %v1786
      %v1788 = vsel %vm730, %v1668, 0.0
      %v1789 = vadd.f32 %v1787, %v1788
      %v1790 = vsel %vm730, %v1673, 0.0
      %v1791 = vadd.f32 %v1789, %v1790
      %v1792 = vsel %vm730, %v1676, 0.0
      %v1793 = vadd.f32 %v1791, %v1792
      %v1794 = vsel %vm730, %v1681, 0.0
      %v1795 = vadd.f32 %v1793, %v1794
      %v1796 = vsel %vm730, %v1684, 0.0
      %v1797 = vadd.f32 %v1795, %v1796
      %v1798 = vsel %vm730, %v1689, 0.0
      %v1799 = vadd.f32 %v1797, %v1798
      %v1800 = vsel %vm730, %v1692, 0.0
      %v1801 = vadd.f32 %v1799, %v1800
      %v1802 = vsel %vm730, %v1697, 0.0
      %v1803 = vadd.f32 %v1801, %v1802
      %v1804 = vsel %vm730, %v1700, 0.0
      %v1805 = vadd.f32 %v1803, %v1804
      %v1806 = vsel %vm730, %v1705, 0.0
      %v1807 = vadd.f32 %v1805, %v1806
      %v1808 = vsel %vm730, %v1708, 0.0
      %v1809 = vadd.f32 %v1807, %v1808
      %v1810 = vsel %vm730, %v1713, 0.0
      %v1811 = vadd.f32 %v1809, %v1810
      %v1812 = vsel %vm730, %v1716, 0.0
      %v1813 = vadd.f32 %v1811, %v1812
      %v1814 = vsel %vm730, %v1721, 0.0
      %v1815 = vadd.f32 %v1813, %v1814
      %v1816 = vsel %vm730, %v1724, 0.0
      %v1817 = vadd.f32 %v1815, %v1816
      %v1818 = vsel %vm730, %v1729, 0.0
      %v1819 = vadd.f32 %v1817, %v1818
      %v1820 = vsel %vm730, %v1732, 0.0
      %v1821 = vadd.f32 %v1819, %v1820
      %v1822 = vsel %vm730, %v1737, 0.0
      %v1823 = vadd.f32 %v1821, %v1822
      %v1824 = vsel %vm730, %v1740, 0.0
      %v1825 = vadd.f32 %v1823, %v1824
      %v1826 = vsel %vm730, %v1745, 0.0
      %v1827 = vadd.f32 %v1825, %v1826
      %v1828 = vsel %vm730, %v1748, 0.0
      %v1829 = vadd.f32 %v1827, %v1828
      %v1830 = vsel %vm730, %v1753, 0.0
      %v1831 = vadd.f32 %v1829, %v1830
      %v1832 = vsel %vm730, %v1756, 0.0
      %v1833 = vadd.f32 %v1831, %v1832
      %v1834 = vsel %vm730, %v1761, 0.0
      %v1835 = vadd.f32 %v1833, %v1834
      %v1836 = vsel %vm730, %v1764, 0.0
      %v1837 = vadd.f32 %v1835, %v1836
      %v1838 = vsel %vm730, %v1769, 0.0
      %v1839 = vadd.f32 %v1837, %v1838
      %v1840 = vsel %vm730, %v1772, 0.0
      %v1841 = vadd.f32 %v1839, %v1840
      %v1842 = vsel %vm730, %v1777, 0.0
      %v1843 = vadd.f32 %v1841, %v1842
      %v1844 = vsel %vm730, %v1780, 0.0
      %v1845 = vadd.f32 %v1843, %v1844
      %v1846 = vrot.slane %v1845, 4
      %v1847 = vadd.f32 %v1845, %v1846
      %v1848 = vrot.slane %v1847, 2
      %v1849 = vadd.f32 %v1847, %v1848
      %v1850 = vrot.slane %v1849, 1
      %v1851 = vadd.f32 %v1849, %v1850
      %v1852 = vadd.f32 %v800, %v1851
      %v1853 = vmul.f32 %v1657, %v1657
      %v1854 = vmul.f32 %v1660, %v1660
      %v1855 = vmul.f32 %v1665, %v1665
      %v1856 = vmul.f32 %v1668, %v1668
      %v1857 = vmul.f32 %v1673, %v1673
      %v1858 = vmul.f32 %v1676, %v1676
      %v1859 = vmul.f32 %v1681, %v1681
      %v1860 = vmul.f32 %v1684, %v1684
      %v1861 = vmul.f32 %v1689, %v1689
      %v1862 = vmul.f32 %v1692, %v1692
      %v1863 = vmul.f32 %v1697, %v1697
      %v1864 = vmul.f32 %v1700, %v1700
      %v1865 = vmul.f32 %v1705, %v1705
      %v1866 = vmul.f32 %v1708, %v1708
      %v1867 = vmul.f32 %v1713, %v1713
      %v1868 = vmul.f32 %v1716, %v1716
      %v1869 = vmul.f32 %v1721, %v1721
      %v1870 = vmul.f32 %v1724, %v1724
      %v1871 = vmul.f32 %v1729, %v1729
      %v1872 = vmul.f32 %v1732, %v1732
      %v1873 = vmul.f32 %v1737, %v1737
      %v1874 = vmul.f32 %v1740, %v1740
      %v1875 = vmul.f32 %v1745, %v1745
      %v1876 = vmul.f32 %v1748, %v1748
      %v1877 = vmul.f32 %v1753, %v1753
      %v1878 = vmul.f32 %v1756, %v1756
      %v1879 = vmul.f32 %v1761, %v1761
      %v1880 = vmul.f32 %v1764, %v1764
      %v1881 = vmul.f32 %v1769, %v1769
      %v1882 = vmul.f32 %v1772, %v1772
      %v1883 = vmul.f32 %v1777, %v1777
      %v1884 = vmul.f32 %v1780, %v1780
      %v1885 = vsel %vm730, %v1853, 0.0
      %v1886 = vsel %vm730, %v1854, 0.0
      %v1887 = vadd.f32 %v1885, %v1886
      %v1888 = vsel %vm730, %v1855, 0.0
      %v1889 = vadd.f32 %v1887, %v1888
      %v1890 = vsel %vm730, %v1856, 0.0
      %v1891 = vadd.f32 %v1889, %v1890
      %v1892 = vsel %vm730, %v1857, 0.0
      %v1893 = vadd.f32 %v1891, %v1892
      %v1894 = vsel %vm730, %v1858, 0.0
      %v1895 = vadd.f32 %v1893, %v1894
      %v1896 = vsel %vm730, %v1859, 0.0
      %v1897 = vadd.f32 %v1895, %v1896
      %v1898 = vsel %vm730, %v1860, 0.0
      %v1899 = vadd.f32 %v1897, %v1898
      %v1900 = vsel %vm730, %v1861, 0.0
      %v1901 = vadd.f32 %v1899, %v1900
      %v1902 = vsel %vm730, %v1862, 0.0
      %v1903 = vadd.f32 %v1901, %v1902
      %v1904 = vsel %vm730, %v1863, 0.0
      %v1905 = vadd.f32 %v1903, %v1904
      %v1906 = vsel %vm730, %v1864, 0.0
      %v1907 = vadd.f32 %v1905, %v1906
      %v1908 = vsel %vm730, %v1865, 0.0
      %v1909 = vadd.f32 %v1907, %v1908
      %v1910 = vsel %vm730, %v1866, 0.0
      %v1911 = vadd.f32 %v1909, %v1910
      %v1912 = vsel %vm730, %v1867, 0.0
      %v1913 = vadd.f32 %v1911, %v1912
      %v1914 = vsel %vm730, %v1868, 0.0
      %v1915 = vadd.f32 %v1913, %v1914
      %v1916 = vsel %vm730, %v1869, 0.0
      %v1917 = vadd.f32 %v1915, %v1916
      %v1918 = vsel %vm730, %v1870, 0.0
      %v1919 = vadd.f32 %v1917, %v1918
      %v1920 = vsel %vm730, %v1871, 0.0
      %v1921 = vadd.f32 %v1919, %v1920
      %v1922 = vsel %vm730, %v1872, 0.0
      %v1923 = vadd.f32 %v1921, %v1922
      %v1924 = vsel %vm730, %v1873, 0.0
      %v1925 = vadd.f32 %v1923, %v1924
      %v1926 = vsel %vm730, %v1874, 0.0
      %v1927 = vadd.f32 %v1925, %v1926
      %v1928 = vsel %vm730, %v1875, 0.0
      %v1929 = vadd.f32 %v1927, %v1928
      %v1930 = vsel %vm730, %v1876, 0.0
      %v1931 = vadd.f32 %v1929, %v1930
      %v1932 = vsel %vm730, %v1877, 0.0
      %v1933 = vadd.f32 %v1931, %v1932
      %v1934 = vsel %vm730, %v1878, 0.0
      %v1935 = vadd.f32 %v1933, %v1934
      %v1936 = vsel %vm730, %v1879, 0.0
      %v1937 = vadd.f32 %v1935, %v1936
      %v1938 = vsel %vm730, %v1880, 0.0
      %v1939 = vadd.f32 %v1937, %v1938
      %v1940 = vsel %vm730, %v1881, 0.0
      %v1941 = vadd.f32 %v1939, %v1940
      %v1942 = vsel %vm730, %v1882, 0.0
      %v1943 = vadd.f32 %v1941, %v1942
      %v1944 = vsel %vm730, %v1883, 0.0
      %v1945 = vadd.f32 %v1943, %v1944
      %v1946 = vsel %vm730, %v1884, 0.0
      %v1947 = vadd.f32 %v1945, %v1946
      %v1948 = vrot.slane %v1947, 4
      %v1949 = vadd.f32 %v1947, %v1948
      %v1950 = vrot.slane %v1949, 2
      %v1951 = vadd.f32 %v1949, %v1950
      %v1952 = vrot.slane %v1951, 1
      %v1953 = vadd.f32 %v1951, %v1952
      %v1954 = vadd.f32 %v902, %v1953
      %1955 = vxpose.xlu0.b32.start [1/16] %v1657, 128
      %1956 = vxpose.xlu0.b32.cont [2/16] %v1660, 128
      %1957 = vxpose.xlu0.b32.cont [3/16] %v1665, 128
      %1958 = vxpose.xlu0.b32.cont [4/16] %v1668, 128
      %1959 = vxpose.xlu0.b32.cont [5/16] %v1673, 128
      %1960 = vxpose.xlu0.b32.cont [6/16] %v1676, 128
      %1961 = vxpose.xlu0.b32.cont [7/16] %v1681, 128
      %1962 = vxpose.xlu0.b32.cont [8/16] %v1684, 128
      %1963 = vxpose.xlu0.b32.cont [9/16] %v1689, 128
      %1964 = vxpose.xlu0.b32.cont [10/16] %v1692, 128
      %1965 = vxpose.xlu0.b32.cont [11/16] %v1697, 128
      %1966 = vxpose.xlu0.b32.cont [12/16] %v1700, 128
      %1967 = vxpose.xlu0.b32.cont [13/16] %v1705, 128
      %1968 = vxpose.xlu0.b32.cont [14/16] %v1708, 128
      %1969 = vxpose.xlu0.b32.cont [15/16] %v1713, 128
      %1970 = vxpose.xlu0.b32.end [16/16] %v1716, 128
      %v1971 = vpop.trf.xlu0
      %v1972 = vpop.trf.xlu0
      %v1973 = vpop.trf.xlu0
      %v1974 = vpop.trf.xlu0
      %v1975 = vpop.trf.xlu0
      %v1976 = vpop.trf.xlu0
      %v1977 = vpop.trf.xlu0
      %v1978 = vpop.trf.xlu0
      %v1979 = vpop.trf.xlu0
      %v1980 = vpop.trf.xlu0
      %v1981 = vpop.trf.xlu0
      %v1982 = vpop.trf.xlu0
      %v1983 = vpop.trf.xlu0
      %v1984 = vpop.trf.xlu0
      %v1985 = vpop.trf.xlu0
      %v1986 = vpop.trf.xlu0
      %1987 = vxpose.xlu0.b32.start [1/16] %v1721, 128
      %1988 = vxpose.xlu0.b32.cont [2/16] %v1724, 128
      %1989 = vxpose.xlu0.b32.cont [3/16] %v1729, 128
      %1990 = vxpose.xlu0.b32.cont [4/16] %v1732, 128
      %1991 = vxpose.xlu0.b32.cont [5/16] %v1737, 128
      %1992 = vxpose.xlu0.b32.cont [6/16] %v1740, 128
      %1993 = vxpose.xlu0.b32.cont [7/16] %v1745, 128
      %1994 = vxpose.xlu0.b32.cont [8/16] %v1748, 128
      %1995 = vxpose.xlu0.b32.cont [9/16] %v1753, 128
      %1996 = vxpose.xlu0.b32.cont [10/16] %v1756, 128
      %1997 = vxpose.xlu0.b32.cont [11/16] %v1761, 128
      %1998 = vxpose.xlu0.b32.cont [12/16] %v1764, 128
      %1999 = vxpose.xlu0.b32.cont [13/16] %v1769, 128
      %2000 = vxpose.xlu0.b32.cont [14/16] %v1772, 128
      %2001 = vxpose.xlu0.b32.cont [15/16] %v1777, 128
      %2002 = vxpose.xlu0.b32.end [16/16] %v1780, 128
      %v2003 = vpop.trf.xlu0
      %v2004 = vpop.trf.xlu0
      %v2005 = vpop.trf.xlu0
      %v2006 = vpop.trf.xlu0
      %v2007 = vpop.trf.xlu0
      %v2008 = vpop.trf.xlu0
      %v2009 = vpop.trf.xlu0
      %v2010 = vpop.trf.xlu0
      %v2011 = vpop.trf.xlu0
      %v2012 = vpop.trf.xlu0
      %v2013 = vpop.trf.xlu0
      %v2014 = vpop.trf.xlu0
      %v2015 = vpop.trf.xlu0
      %v2016 = vpop.trf.xlu0
      %v2017 = vpop.trf.xlu0
      %v2018 = vpop.trf.xlu0
      %v2019 = vpack.c.bf16 %v1971, %v1971
      %v2020 = vpack.c.bf16 %v2003, %v2003
      %v2023 = vunpack.c.l.b16 %v2019
      %v2024 = vunpack.c.l.b16 %v2020
      %v2025 = vpack.c.b16 %v2024, %v2023
      %s2027 = scalar_lea.vmem %s389, 8
      %2028 = vst [vmem:[%s2027] sm:$0xff] %v2025
      %s2029 = scalar_lea.vmem %s364, 12
      %v2030 = vld [vmem:[%s2029] sm:$0xf]
      %v2031 = vld [vmem:[%s2029 + $0x4] sm:$0xf]
      %v2032 = vld [vmem:[%s2029 + $0xc] sm:$0xf]
      %v2033 = vld [vmem:[%s2029 + $0x10] sm:$0xf]
      %v2034 = vld [vmem:[%s2029 + $0x18] sm:$0xf]
      %v2035 = vld [vmem:[%s2029 + $0x1c] sm:$0xf]
      %v2036 = vld [vmem:[%s2029 + $0x24] sm:$0xf]
      %v2037 = vld [vmem:[%s2029 + $0x28] sm:$0xf]
      %v2038 = vld [vmem:[%s2029 + $0x30] sm:$0xf]
      %v2039 = vld [vmem:[%s2029 + $0x34] sm:$0xf]
      %v2040 = vld [vmem:[%s2029 + $0x3c] sm:$0xf]
      %v2041 = vld [vmem:[%s2029 + $0x40] sm:$0xf]
      %v2042 = vld [vmem:[%s2029 + $0x48] sm:$0xf]
      %v2043 = vld [vmem:[%s2029 + $0x4c] sm:$0xf]
      %v2044 = vld [vmem:[%s2029 + $0x54] sm:$0xf]
      %v2045 = vld [vmem:[%s2029 + $0x58] sm:$0xf]
      %v2046 = vld [vmem:[%s2029 + $0x60] sm:$0xf]
      %v2047 = vld [vmem:[%s2029 + $0x64] sm:$0xf]
      %v2048 = vld [vmem:[%s2029 + $0x6c] sm:$0xf]
      %v2049 = vld [vmem:[%s2029 + $0x70] sm:$0xf]
      %v2050 = vld [vmem:[%s2029 + $0x78] sm:$0xf]
      %v2051 = vld [vmem:[%s2029 + $0x7c] sm:$0xf]
      %v2052 = vld [vmem:[%s2029 + $0x84] sm:$0xf]
      %v2053 = vld [vmem:[%s2029 + $0x88] sm:$0xf]
      %v2054 = vld [vmem:[%s2029 + $0x90] sm:$0xf]
      %v2055 = vld [vmem:[%s2029 + $0x94] sm:$0xf]
      %v2056 = vld [vmem:[%s2029 + $0x9c] sm:$0xf]
      %v2057 = vld [vmem:[%s2029 + $0xa0] sm:$0xf]
      %v2058 = vld [vmem:[%s2029 + $0xa8] sm:$0xf]
      %v2059 = vld [vmem:[%s2029 + $0xac] sm:$0xf]
      %v2060 = vld [vmem:[%s2029 + $0xb4] sm:$0xf]
      %v2061 = vld [vmem:[%s2029 + $0xb8] sm:$0xf]
      %v2062 = vld [vmem:[%s364] sm:$0xf]
      %v2063 = vld [vmem:[%s364 + $0x4] sm:$0xf]
      %v2064 = vld [vmem:[%s364 + $0xc] sm:$0xf]
      %v2065 = vld [vmem:[%s364 + $0x10] sm:$0xf]
      %v2066 = vld [vmem:[%s364 + $0x18] sm:$0xf]
      %v2067 = vld [vmem:[%s364 + $0x1c] sm:$0xf]
      %v2068 = vld [vmem:[%s364 + $0x24] sm:$0xf]
      %v2069 = vld [vmem:[%s364 + $0x28] sm:$0xf]
      %v2070 = vld [vmem:[%s364 + $0x30] sm:$0xf]
      %v2071 = vld [vmem:[%s364 + $0x34] sm:$0xf]
      %v2072 = vld [vmem:[%s364 + $0x3c] sm:$0xf]
      %v2073 = vld [vmem:[%s364 + $0x40] sm:$0xf]
      %v2074 = vld [vmem:[%s364 + $0x48] sm:$0xf]
      %v2075 = vld [vmem:[%s364 + $0x4c] sm:$0xf]
      %v2076 = vld [vmem:[%s364 + $0x54] sm:$0xf]
      %v2077 = vld [vmem:[%s364 + $0x58] sm:$0xf]
      %v2078 = vld [vmem:[%s364 + $0x60] sm:$0xf]
      %v2079 = vld [vmem:[%s364 + $0x64] sm:$0xf]
      %v2080 = vld [vmem:[%s364 + $0x6c] sm:$0xf]
      %v2081 = vld [vmem:[%s364 + $0x70] sm:$0xf]
      %v2082 = vld [vmem:[%s364 + $0x78] sm:$0xf]
      %v2083 = vld [vmem:[%s364 + $0x7c] sm:$0xf]
      %v2084 = vld [vmem:[%s364 + $0x84] sm:$0xf]
      %v2085 = vld [vmem:[%s364 + $0x88] sm:$0xf]
      %v2086 = vld [vmem:[%s364 + $0x90] sm:$0xf]
      %v2087 = vld [vmem:[%s364 + $0x94] sm:$0xf]
      %v2088 = vld [vmem:[%s364 + $0x9c] sm:$0xf]
      %v2089 = vld [vmem:[%s364 + $0xa0] sm:$0xf]
      %v2090 = vld [vmem:[%s364 + $0xa8] sm:$0xf]
      %v2091 = vld [vmem:[%s364 + $0xac] sm:$0xf]
      %v2092 = vld [vmem:[%s364 + $0xb4] sm:$0xf]
      %v2093 = vld [vmem:[%s364 + $0xb8] sm:$0xf]
      %v2126 = vunpack.c.l.b16 %v2030
      %v2127 = vunpack.c.l.b16 %v2031
      %v2128 = vunpack.c.l.b16 %v2032
      %v2129 = vunpack.c.l.b16 %v2033
      %v2130 = vunpack.c.l.b16 %v2034
      %v2131 = vunpack.c.l.b16 %v2035
      %v2132 = vunpack.c.l.b16 %v2036
      %v2133 = vunpack.c.l.b16 %v2037
      %v2134 = vunpack.c.l.b16 %v2038
      %v2135 = vunpack.c.l.b16 %v2039
      %v2136 = vunpack.c.l.b16 %v2040
      %v2137 = vunpack.c.l.b16 %v2041
      %v2138 = vunpack.c.l.b16 %v2042
      %v2139 = vunpack.c.l.b16 %v2043
      %v2140 = vunpack.c.l.b16 %v2044
      %v2141 = vunpack.c.l.b16 %v2045
      %v2142 = vunpack.c.l.b16 %v2046
      %v2143 = vunpack.c.l.b16 %v2047
      %v2144 = vunpack.c.l.b16 %v2048
      %v2145 = vunpack.c.l.b16 %v2049
      %v2146 = vunpack.c.l.b16 %v2050
      %v2147 = vunpack.c.l.b16 %v2051
      %v2148 = vunpack.c.l.b16 %v2052
      %v2149 = vunpack.c.l.b16 %v2053
      %v2150 = vunpack.c.l.b16 %v2054
      %v2151 = vunpack.c.l.b16 %v2055
      %v2152 = vunpack.c.l.b16 %v2056
      %v2153 = vunpack.c.l.b16 %v2057
      %v2154 = vunpack.c.l.b16 %v2058
      %v2155 = vunpack.c.l.b16 %v2059
      %v2156 = vunpack.c.l.b16 %v2060
      %v2157 = vunpack.c.l.b16 %v2061
      %v2158 = vpack.c.b16 %v2127, %v2126
      %v2159 = vpack.c.b16 %v2129, %v2128
      %v2160 = vpack.c.b16 %v2131, %v2130
      %v2161 = vpack.c.b16 %v2133, %v2132
      %v2162 = vpack.c.b16 %v2135, %v2134
      %v2163 = vpack.c.b16 %v2137, %v2136
      %v2164 = vpack.c.b16 %v2139, %v2138
      %v2165 = vpack.c.b16 %v2141, %v2140
      %v2166 = vpack.c.b16 %v2143, %v2142
      %v2167 = vpack.c.b16 %v2145, %v2144
      %v2168 = vpack.c.b16 %v2147, %v2146
      %v2169 = vpack.c.b16 %v2149, %v2148
      %v2170 = vpack.c.b16 %v2151, %v2150
      %v2171 = vpack.c.b16 %v2153, %v2152
      %v2172 = vpack.c.b16 %v2155, %v2154
      %v2173 = vpack.c.b16 %v2157, %v2156
      %v2206 = vunpack.c.l.b16 %v2062
      %v2207 = vunpack.c.l.b16 %v2063
      %v2208 = vunpack.c.l.b16 %v2064
      %v2209 = vunpack.c.l.b16 %v2065
      %v2210 = vunpack.c.l.b16 %v2066
      %v2211 = vunpack.c.l.b16 %v2067
      %v2212 = vunpack.c.l.b16 %v2068
      %v2213 = vunpack.c.l.b16 %v2069
      %v2214 = vunpack.c.l.b16 %v2070
      %v2215 = vunpack.c.l.b16 %v2071
      %v2216 = vunpack.c.l.b16 %v2072
      %v2217 = vunpack.c.l.b16 %v2073
      %v2218 = vunpack.c.l.b16 %v2074
      %v2219 = vunpack.c.l.b16 %v2075
      %v2220 = vunpack.c.l.b16 %v2076
      %v2221 = vunpack.c.l.b16 %v2077
      %v2222 = vunpack.c.l.b16 %v2078
      %v2223 = vunpack.c.l.b16 %v2079
      %v2224 = vunpack.c.l.b16 %v2080
      %v2225 = vunpack.c.l.b16 %v2081
      %v2226 = vunpack.c.l.b16 %v2082
      %v2227 = vunpack.c.l.b16 %v2083
      %v2228 = vunpack.c.l.b16 %v2084
      %v2229 = vunpack.c.l.b16 %v2085
      %v2230 = vunpack.c.l.b16 %v2086
      %v2231 = vunpack.c.l.b16 %v2087
      %v2232 = vunpack.c.l.b16 %v2088
      %v2233 = vunpack.c.l.b16 %v2089
      %v2234 = vunpack.c.l.b16 %v2090
      %v2235 = vunpack.c.l.b16 %v2091
      %v2236 = vunpack.c.l.b16 %v2092
      %v2237 = vunpack.c.l.b16 %v2093
      %v2238 = vpack.c.b16 %v2207, %v2206
      %v2239 = vpack.c.b16 %v2209, %v2208
      %v2240 = vpack.c.b16 %v2211, %v2210
      %v2241 = vpack.c.b16 %v2213, %v2212
      %v2242 = vpack.c.b16 %v2215, %v2214
      %v2243 = vpack.c.b16 %v2217, %v2216
      %v2244 = vpack.c.b16 %v2219, %v2218
      %v2245 = vpack.c.b16 %v2221, %v2220
      %v2246 = vpack.c.b16 %v2223, %v2222
      %v2247 = vpack.c.b16 %v2225, %v2224
      %v2248 = vpack.c.b16 %v2227, %v2226
      %v2249 = vpack.c.b16 %v2229, %v2228
      %v2250 = vpack.c.b16 %v2231, %v2230
      %v2251 = vpack.c.b16 %v2233, %v2232
      %v2252 = vpack.c.b16 %v2235, %v2234
      %v2253 = vpack.c.b16 %v2237, %v2236
      %2254 = vrot.lane.b32.xlu0 %v2238, 4
      %v2255 = vpop.permute.xlu0 %2254
      %2256 = vrot.lane.b32.xlu0 %v2239, 4
      %v2257 = vpop.permute.xlu0 %2256
      %2258 = vrot.lane.b32.xlu0 %v2240, 4
      %v2259 = vpop.permute.xlu0 %2258
      %2260 = vrot.lane.b32.xlu0 %v2241, 4
      %v2261 = vpop.permute.xlu0 %2260
      %2262 = vrot.lane.b32.xlu0 %v2242, 4
      %v2263 = vpop.permute.xlu0 %2262
      %2264 = vrot.lane.b32.xlu0 %v2243, 4
      %v2265 = vpop.permute.xlu0 %2264
      %2266 = vrot.lane.b32.xlu0 %v2244, 4
      %v2267 = vpop.permute.xlu0 %2266
      %2268 = vrot.lane.b32.xlu0 %v2245, 4
      %v2269 = vpop.permute.xlu0 %2268
      %2270 = vrot.lane.b32.xlu0 %v2246, 4
      %v2271 = vpop.permute.xlu0 %2270
      %2272 = vrot.lane.b32.xlu0 %v2247, 4
      %v2273 = vpop.permute.xlu0 %2272
      %2274 = vrot.lane.b32.xlu0 %v2248, 4
      %v2275 = vpop.permute.xlu0 %2274
      %2276 = vrot.lane.b32.xlu0 %v2249, 4
      %v2277 = vpop.permute.xlu0 %2276
      %2278 = vrot.lane.b32.xlu0 %v2250, 4
      %v2279 = vpop.permute.xlu0 %2278
      %2280 = vrot.lane.b32.xlu0 %v2251, 4
      %v2281 = vpop.permute.xlu0 %2280
      %2282 = vrot.lane.b32.xlu0 %v2252, 4
      %v2283 = vpop.permute.xlu0 %2282
      %2284 = vrot.lane.b32.xlu0 %v2253, 4
      %v2285 = vpop.permute.xlu0 %2284
      %v2288 = vsel %vm516, %v2158, %v2255
      %v2291 = vsel %vm516, %v2159, %v2257
      %v2294 = vsel %vm516, %v2160, %v2259
      %v2297 = vsel %vm516, %v2161, %v2261
      %v2300 = vsel %vm516, %v2162, %v2263
      %v2303 = vsel %vm516, %v2163, %v2265
      %v2306 = vsel %vm516, %v2164, %v2267
      %v2309 = vsel %vm516, %v2165, %v2269
      %v2312 = vsel %vm516, %v2166, %v2271
      %v2315 = vsel %vm516, %v2167, %v2273
      %v2318 = vsel %vm516, %v2168, %v2275
      %v2321 = vsel %vm516, %v2169, %v2277
      %v2324 = vsel %vm516, %v2170, %v2279
      %v2327 = vsel %vm516, %v2171, %v2281
      %v2330 = vsel %vm516, %v2172, %v2283
      %v2333 = vsel %vm516, %v2173, %v2285
      %v2334 = vld [vmem:[%s376] sm:$0xf]
      %v2335 = vsel %vm730, %v2288, 0
      %v2337 = vsel %vm730, %v2291, 0
      %v2339 = vsel %vm730, %v2294, 0
      %v2341 = vsel %vm730, %v2297, 0
      %v2343 = vsel %vm730, %v2300, 0
      %v2345 = vsel %vm730, %v2303, 0
      %v2347 = vsel %vm730, %v2306, 0
      %v2349 = vsel %vm730, %v2309, 0
      %v2351 = vsel %vm730, %v2312, 0
      %v2353 = vsel %vm730, %v2315, 0
      %v2355 = vsel %vm730, %v2318, 0
      %v2357 = vsel %vm730, %v2321, 0
      %v2359 = vsel %vm730, %v2324, 0
      %v2361 = vsel %vm730, %v2327, 0
      %v2363 = vsel %vm730, %v2330, 0
      %v2365 = vsel %vm730, %v2333, 0
      %v2368 = vsel %vm1618, %v2334, 0
      %2370 = vmatprep.subr.bf16.mxu0 0
      %2371 = vmatpush1.bf16.msra.mxu0 0
      %2372 = vmatprep.subr.bf16.mxu0 0
      %2373 = vmatpush1.bf16.msra.mxu0 0
      %2374 = vmatprep.subr.bf16.mxu0 0
      %2375 = vmatpush1.bf16.msra.mxu0 0
      %2376 = vmatprep.subr.bf16.mxu0 0
      %2377 = vmatpush1.bf16.msra.mxu0 0
      %2378 = vmatprep.subr.bf16.mxu0 0
      %2379 = vmatpush1.bf16.msra.mxu0 0
      %2380 = vmatprep.subr.bf16.mxu0 0
      %2381 = vmatpush1.bf16.msra.mxu0 0
      %2382 = vmatprep.subr.bf16.mxu0 0
      %2383 = vmatpush1.bf16.msra.mxu0 0
      %2384 = vmatprep.subr.bf16.mxu0 0
      %2385 = vmatpush1.bf16.msra.mxu0 %v2368
      %2386 = vmatprep.subr.bf16.mxu0 0
      %2387 = vmatpush2.bf16.msra.mxu0 0
      %2388 = vmatprep.subr.bf16.mxu0 0
      %2389 = vmatpush2.bf16.msra.mxu0 0
      %2390 = vmatprep.subr.bf16.mxu0 0
      %2391 = vmatpush2.bf16.msra.mxu0 0
      %2392 = vmatprep.subr.bf16.mxu0 0
      %2393 = vmatpush2.bf16.msra.mxu0 0
      %2394 = vmatprep.subr.bf16.mxu0 0
      %2395 = vmatpush2.bf16.msra.mxu0 0
      %2396 = vmatprep.subr.bf16.mxu0 0
      %2397 = vmatpush2.bf16.msra.mxu0 0
      %2398 = vmatprep.subr.bf16.mxu0 0
      %2399 = vmatpush2.bf16.msra.mxu0 0
      %2400 = vmatprep.subr.bf16.mxu0 0
      %2401 = vmatpush2.bf16.msra.mxu0 0
      %2402 = vmatprep.mubr.bf16.mxu0 0
      %2403 = vmatmul.mubr.bf16.gmra.mxu0 %v2335
      %v2404 = vpop.f32.mrf.mxu0
      %v2405 = vadd.f32 0.0, %v2404
      %v2406 = vpop.f32.mrf.mxu0
      %v2407 = vpop.f32.mrf.mxu0
      %v2408 = vadd.f32 0.0, %v2407
      %v2409 = vpop.f32.mrf.mxu0
      %2410 = vmatprep.mubr.bf16.mxu0 0
      %2411 = vmatmul.mubr.bf16.gmra.mxu0 %v2337
      %v2412 = vpop.f32.mrf.mxu0
      %v2413 = vadd.f32 0.0, %v2412
      %v2414 = vpop.f32.mrf.mxu0
      %v2415 = vpop.f32.mrf.mxu0
      %v2416 = vadd.f32 0.0, %v2415
      %v2417 = vpop.f32.mrf.mxu0
      %2418 = vmatprep.mubr.bf16.mxu0 0
      %2419 = vmatmul.mubr.bf16.gmra.mxu0 %v2339
      %v2420 = vpop.f32.mrf.mxu0
      %v2421 = vadd.f32 0.0, %v2420
      %v2422 = vpop.f32.mrf.mxu0
      %v2423 = vpop.f32.mrf.mxu0
      %v2424 = vadd.f32 0.0, %v2423
      %v2425 = vpop.f32.mrf.mxu0
      %2426 = vmatprep.mubr.bf16.mxu0 0
      %2427 = vmatmul.mubr.bf16.gmra.mxu0 %v2341
      %v2428 = vpop.f32.mrf.mxu0
      %v2429 = vadd.f32 0.0, %v2428
      %v2430 = vpop.f32.mrf.mxu0
      %v2431 = vpop.f32.mrf.mxu0
      %v2432 = vadd.f32 0.0, %v2431
      %v2433 = vpop.f32.mrf.mxu0
      %2434 = vmatprep.mubr.bf16.mxu0 0
      %2435 = vmatmul.mubr.bf16.gmra.mxu0 %v2343
      %v2436 = vpop.f32.mrf.mxu0
      %v2437 = vadd.f32 0.0, %v2436
      %v2438 = vpop.f32.mrf.mxu0
      %v2439 = vpop.f32.mrf.mxu0
      %v2440 = vadd.f32 0.0, %v2439
      %v2441 = vpop.f32.mrf.mxu0
      %2442 = vmatprep.mubr.bf16.mxu0 0
      %2443 = vmatmul.mubr.bf16.gmra.mxu0 %v2345
      %v2444 = vpop.f32.mrf.mxu0
      %v2445 = vadd.f32 0.0, %v2444
      %v2446 = vpop.f32.mrf.mxu0
      %v2447 = vpop.f32.mrf.mxu0
      %v2448 = vadd.f32 0.0, %v2447
      %v2449 = vpop.f32.mrf.mxu0
      %2450 = vmatprep.mubr.bf16.mxu0 0
      %2451 = vmatmul.mubr.bf16.gmra.mxu0 %v2347
      %v2452 = vpop.f32.mrf.mxu0
      %v2453 = vadd.f32 0.0, %v2452
      %v2454 = vpop.f32.mrf.mxu0
      %v2455 = vpop.f32.mrf.mxu0
      %v2456 = vadd.f32 0.0, %v2455
      %v2457 = vpop.f32.mrf.mxu0
      %2458 = vmatprep.mubr.bf16.mxu0 0
      %2459 = vmatmul.mubr.bf16.gmra.mxu0 %v2349
      %v2460 = vpop.f32.mrf.mxu0
      %v2461 = vadd.f32 0.0, %v2460
      %v2462 = vpop.f32.mrf.mxu0
      %v2463 = vpop.f32.mrf.mxu0
      %v2464 = vadd.f32 0.0, %v2463
      %v2465 = vpop.f32.mrf.mxu0
      %2466 = vmatprep.mubr.bf16.mxu0 0
      %2467 = vmatmul.mubr.bf16.gmra.mxu0 %v2351
      %v2468 = vpop.f32.mrf.mxu0
      %v2469 = vadd.f32 0.0, %v2468
      %v2470 = vpop.f32.mrf.mxu0
      %v2471 = vpop.f32.mrf.mxu0
      %v2472 = vadd.f32 0.0, %v2471
      %v2473 = vpop.f32.mrf.mxu0
      %2474 = vmatprep.mubr.bf16.mxu0 0
      %2475 = vmatmul.mubr.bf16.gmra.mxu0 %v2353
      %v2476 = vpop.f32.mrf.mxu0
      %v2477 = vadd.f32 0.0, %v2476
      %v2478 = vpop.f32.mrf.mxu0
      %v2479 = vpop.f32.mrf.mxu0
      %v2480 = vadd.f32 0.0, %v2479
      %v2481 = vpop.f32.mrf.mxu0
      %2482 = vmatprep.mubr.bf16.mxu0 0
      %2483 = vmatmul.mubr.bf16.gmra.mxu0 %v2355
      %v2484 = vpop.f32.mrf.mxu0
      %v2485 = vadd.f32 0.0, %v2484
      %v2486 = vpop.f32.mrf.mxu0
      %v2487 = vpop.f32.mrf.mxu0
      %v2488 = vadd.f32 0.0, %v2487
      %v2489 = vpop.f32.mrf.mxu0
      %2490 = vmatprep.mubr.bf16.mxu0 0
      %2491 = vmatmul.mubr.bf16.gmra.mxu0 %v2357
      %v2492 = vpop.f32.mrf.mxu0
      %v2493 = vadd.f32 0.0, %v2492
      %v2494 = vpop.f32.mrf.mxu0
      %v2495 = vpop.f32.mrf.mxu0
      %v2496 = vadd.f32 0.0, %v2495
      %v2497 = vpop.f32.mrf.mxu0
      %2498 = vmatprep.mubr.bf16.mxu0 0
      %2499 = vmatmul.mubr.bf16.gmra.mxu0 %v2359
      %v2500 = vpop.f32.mrf.mxu0
      %v2501 = vadd.f32 0.0, %v2500
      %v2502 = vpop.f32.mrf.mxu0
      %v2503 = vpop.f32.mrf.mxu0
      %v2504 = vadd.f32 0.0, %v2503
      %v2505 = vpop.f32.mrf.mxu0
      %2506 = vmatprep.mubr.bf16.mxu0 0
      %2507 = vmatmul.mubr.bf16.gmra.mxu0 %v2361
      %v2508 = vpop.f32.mrf.mxu0
      %v2509 = vadd.f32 0.0, %v2508
      %v2510 = vpop.f32.mrf.mxu0
      %v2511 = vpop.f32.mrf.mxu0
      %v2512 = vadd.f32 0.0, %v2511
      %v2513 = vpop.f32.mrf.mxu0
      %2514 = vmatprep.mubr.bf16.mxu0 0
      %2515 = vmatmul.mubr.bf16.gmra.mxu0 %v2363
      %v2516 = vpop.f32.mrf.mxu0
      %v2517 = vadd.f32 0.0, %v2516
      %v2518 = vpop.f32.mrf.mxu0
      %v2519 = vpop.f32.mrf.mxu0
      %v2520 = vadd.f32 0.0, %v2519
      %v2521 = vpop.f32.mrf.mxu0
      %2522 = vmatprep.mubr.bf16.mxu0 0
      %2523 = vmatmul.mubr.bf16.gmra.mxu0 %v2365
      %v2524 = vpop.f32.mrf.mxu0
      %v2525 = vadd.f32 0.0, %v2524
      %v2526 = vpop.f32.mrf.mxu0
      %v2527 = vpop.f32.mrf.mxu0
      %v2528 = vadd.f32 0.0, %v2527
      %v2529 = vpop.f32.mrf.mxu0
      %2530 = vdwg.mxu0
      %v2531 = vsel %vm730, %v2405, 0.0
      %v2532 = vsel %vm730, %v2408, 0.0
      %v2533 = vadd.f32 %v2531, %v2532
      %v2534 = vsel %vm730, %v2413, 0.0
      %v2535 = vadd.f32 %v2533, %v2534
      %v2536 = vsel %vm730, %v2416, 0.0
      %v2537 = vadd.f32 %v2535, %v2536
      %v2538 = vsel %vm730, %v2421, 0.0
      %v2539 = vadd.f32 %v2537, %v2538
      %v2540 = vsel %vm730, %v2424, 0.0
      %v2541 = vadd.f32 %v2539, %v2540
      %v2542 = vsel %vm730, %v2429, 0.0
      %v2543 = vadd.f32 %v2541, %v2542
      %v2544 = vsel %vm730, %v2432, 0.0
      %v2545 = vadd.f32 %v2543, %v2544
      %v2546 = vsel %vm730, %v2437, 0.0
      %v2547 = vadd.f32 %v2545, %v2546
      %v2548 = vsel %vm730, %v2440, 0.0
      %v2549 = vadd.f32 %v2547, %v2548
      %v2550 = vsel %vm730, %v2445, 0.0
      %v2551 = vadd.f32 %v2549, %v2550
      %v2552 = vsel %vm730, %v2448, 0.0
      %v2553 = vadd.f32 %v2551, %v2552
      %v2554 = vsel %vm730, %v2453, 0.0
      %v2555 = vadd.f32 %v2553, %v2554
      %v2556 = vsel %vm730, %v2456, 0.0
      %v2557 = vadd.f32 %v2555, %v2556
      %v2558 = vsel %vm730, %v2461, 0.0
      %v2559 = vadd.f32 %v2557, %v2558
      %v2560 = vsel %vm730, %v2464, 0.0
      %v2561 = vadd.f32 %v2559, %v2560
      %v2562 = vsel %vm730, %v2469, 0.0
      %v2563 = vadd.f32 %v2561, %v2562
      %v2564 = vsel %vm730, %v2472, 0.0
      %v2565 = vadd.f32 %v2563, %v2564
      %v2566 = vsel %vm730, %v2477, 0.0
      %v2567 = vadd.f32 %v2565, %v2566
      %v2568 = vsel %vm730, %v2480, 0.0
      %v2569 = vadd.f32 %v2567, %v2568
      %v2570 = vsel %vm730, %v2485, 0.0
      %v2571 = vadd.f32 %v2569, %v2570
      %v2572 = vsel %vm730, %v2488, 0.0
      %v2573 = vadd.f32 %v2571, %v2572
      %v2574 = vsel %vm730, %v2493, 0.0
      %v2575 = vadd.f32 %v2573, %v2574
      %v2576 = vsel %vm730, %v2496, 0.0
      %v2577 = vadd.f32 %v2575, %v2576
      %v2578 = vsel %vm730, %v2501, 0.0
      %v2579 = vadd.f32 %v2577, %v2578
      %v2580 = vsel %vm730, %v2504, 0.0
      %v2581 = vadd.f32 %v2579, %v2580
      %v2582 = vsel %vm730, %v2509, 0.0
      %v2583 = vadd.f32 %v2581, %v2582
      %v2584 = vsel %vm730, %v2512, 0.0
      %v2585 = vadd.f32 %v2583, %v2584
      %v2586 = vsel %vm730, %v2517, 0.0
      %v2587 = vadd.f32 %v2585, %v2586
      %v2588 = vsel %vm730, %v2520, 0.0
      %v2589 = vadd.f32 %v2587, %v2588
      %v2590 = vsel %vm730, %v2525, 0.0
      %v2591 = vadd.f32 %v2589, %v2590
      %v2592 = vsel %vm730, %v2528, 0.0
      %v2593 = vadd.f32 %v2591, %v2592
      %v2594 = vrot.slane %v2593, 4
      %v2595 = vadd.f32 %v2593, %v2594
      %v2596 = vrot.slane %v2595, 2
      %v2597 = vadd.f32 %v2595, %v2596
      %v2598 = vrot.slane %v2597, 1
      %v2599 = vadd.f32 %v2597, %v2598
      %v2600 = vadd.f32 %v1852, %v2599
      %v2601 = vmul.f32 %v2405, %v2405
      %v2602 = vmul.f32 %v2408, %v2408
      %v2603 = vmul.f32 %v2413, %v2413
      %v2604 = vmul.f32 %v2416, %v2416
      %v2605 = vmul.f32 %v2421, %v2421
      %v2606 = vmul.f32 %v2424, %v2424
      %v2607 = vmul.f32 %v2429, %v2429
      %v2608 = vmul.f32 %v2432, %v2432
      %v2609 = vmul.f32 %v2437, %v2437
      %v2610 = vmul.f32 %v2440, %v2440
      %v2611 = vmul.f32 %v2445, %v2445
      %v2612 = vmul.f32 %v2448, %v2448
      %v2613 = vmul.f32 %v2453, %v2453
      %v2614 = vmul.f32 %v2456, %v2456
      %v2615 = vmul.f32 %v2461, %v2461
      %v2616 = vmul.f32 %v2464, %v2464
      %v2617 = vmul.f32 %v2469, %v2469
      %v2618 = vmul.f32 %v2472, %v2472
      %v2619 = vmul.f32 %v2477, %v2477
      %v2620 = vmul.f32 %v2480, %v2480
      %v2621 = vmul.f32 %v2485, %v2485
      %v2622 = vmul.f32 %v2488, %v2488
      %v2623 = vmul.f32 %v2493, %v2493
      %v2624 = vmul.f32 %v2496, %v2496
      %v2625 = vmul.f32 %v2501, %v2501
      %v2626 = vmul.f32 %v2504, %v2504
      %v2627 = vmul.f32 %v2509, %v2509
      %v2628 = vmul.f32 %v2512, %v2512
      %v2629 = vmul.f32 %v2517, %v2517
      %v2630 = vmul.f32 %v2520, %v2520
      %v2631 = vmul.f32 %v2525, %v2525
      %v2632 = vmul.f32 %v2528, %v2528
      %v2633 = vsel %vm730, %v2601, 0.0
      %v2634 = vsel %vm730, %v2602, 0.0
      %v2635 = vadd.f32 %v2633, %v2634
      %v2636 = vsel %vm730, %v2603, 0.0
      %v2637 = vadd.f32 %v2635, %v2636
      %v2638 = vsel %vm730, %v2604, 0.0
      %v2639 = vadd.f32 %v2637, %v2638
      %v2640 = vsel %vm730, %v2605, 0.0
      %v2641 = vadd.f32 %v2639, %v2640
      %v2642 = vsel %vm730, %v2606, 0.0
      %v2643 = vadd.f32 %v2641, %v2642
      %v2644 = vsel %vm730, %v2607, 0.0
      %v2645 = vadd.f32 %v2643, %v2644
      %v2646 = vsel %vm730, %v2608, 0.0
      %v2647 = vadd.f32 %v2645, %v2646
      %v2648 = vsel %vm730, %v2609, 0.0
      %v2649 = vadd.f32 %v2647, %v2648
      %v2650 = vsel %vm730, %v2610, 0.0
      %v2651 = vadd.f32 %v2649, %v2650
      %v2652 = vsel %vm730, %v2611, 0.0
      %v2653 = vadd.f32 %v2651, %v2652
      %v2654 = vsel %vm730, %v2612, 0.0
      %v2655 = vadd.f32 %v2653, %v2654
      %v2656 = vsel %vm730, %v2613, 0.0
      %v2657 = vadd.f32 %v2655, %v2656
      %v2658 = vsel %vm730, %v2614, 0.0
      %v2659 = vadd.f32 %v2657, %v2658
      %v2660 = vsel %vm730, %v2615, 0.0
      %v2661 = vadd.f32 %v2659, %v2660
      %v2662 = vsel %vm730, %v2616, 0.0
      %v2663 = vadd.f32 %v2661, %v2662
      %v2664 = vsel %vm730, %v2617, 0.0
      %v2665 = vadd.f32 %v2663, %v2664
      %v2666 = vsel %vm730, %v2618, 0.0
      %v2667 = vadd.f32 %v2665, %v2666
      %v2668 = vsel %vm730, %v2619, 0.0
      %v2669 = vadd.f32 %v2667, %v2668
      %v2670 = vsel %vm730, %v2620, 0.0
      %v2671 = vadd.f32 %v2669, %v2670
      %v2672 = vsel %vm730, %v2621, 0.0
      %v2673 = vadd.f32 %v2671, %v2672
      %v2674 = vsel %vm730, %v2622, 0.0
      %v2675 = vadd.f32 %v2673, %v2674
      %v2676 = vsel %vm730, %v2623, 0.0
      %v2677 = vadd.f32 %v2675, %v2676
      %v2678 = vsel %vm730, %v2624, 0.0
      %v2679 = vadd.f32 %v2677, %v2678
      %v2680 = vsel %vm730, %v2625, 0.0
      %v2681 = vadd.f32 %v2679, %v2680
      %v2682 = vsel %vm730, %v2626, 0.0
      %v2683 = vadd.f32 %v2681, %v2682
      %v2684 = vsel %vm730, %v2627, 0.0
      %v2685 = vadd.f32 %v2683, %v2684
      %v2686 = vsel %vm730, %v2628, 0.0
      %v2687 = vadd.f32 %v2685, %v2686
      %v2688 = vsel %vm730, %v2629, 0.0
      %v2689 = vadd.f32 %v2687, %v2688
      %v2690 = vsel %vm730, %v2630, 0.0
      %v2691 = vadd.f32 %v2689, %v2690
      %v2692 = vsel %vm730, %v2631, 0.0
      %v2693 = vadd.f32 %v2691, %v2692
      %v2694 = vsel %vm730, %v2632, 0.0
      %v2695 = vadd.f32 %v2693, %v2694
      %v2696 = vrot.slane %v2695, 4
      %v2697 = vadd.f32 %v2695, %v2696
      %v2698 = vrot.slane %v2697, 2
      %v2699 = vadd.f32 %v2697, %v2698
      %v2700 = vrot.slane %v2699, 1
      %v2701 = vadd.f32 %v2699, %v2700
      %v2702 = vadd.f32 %v1954, %v2701
      %2703 = vxpose.xlu0.b32.start [1/16] %v2405, 128
      %2704 = vxpose.xlu0.b32.cont [2/16] %v2408, 128
      %2705 = vxpose.xlu0.b32.cont [3/16] %v2413, 128
      %2706 = vxpose.xlu0.b32.cont [4/16] %v2416, 128
      %2707 = vxpose.xlu0.b32.cont [5/16] %v2421, 128
      %2708 = vxpose.xlu0.b32.cont [6/16] %v2424, 128
      %2709 = vxpose.xlu0.b32.cont [7/16] %v2429, 128
      %2710 = vxpose.xlu0.b32.cont [8/16] %v2432, 128
      %2711 = vxpose.xlu0.b32.cont [9/16] %v2437, 128
      %2712 = vxpose.xlu0.b32.cont [10/16] %v2440, 128
      %2713 = vxpose.xlu0.b32.cont [11/16] %v2445, 128
      %2714 = vxpose.xlu0.b32.cont [12/16] %v2448, 128
      %2715 = vxpose.xlu0.b32.cont [13/16] %v2453, 128
      %2716 = vxpose.xlu0.b32.cont [14/16] %v2456, 128
      %2717 = vxpose.xlu0.b32.cont [15/16] %v2461, 128
      %2718 = vxpose.xlu0.b32.end [16/16] %v2464, 128
      %v2719 = vpop.trf.xlu0
      %v2720 = vpop.trf.xlu0
      %v2721 = vpop.trf.xlu0
      %v2722 = vpop.trf.xlu0
      %v2723 = vpop.trf.xlu0
      %v2724 = vpop.trf.xlu0
      %v2725 = vpop.trf.xlu0
      %v2726 = vpop.trf.xlu0
      %v2727 = vpop.trf.xlu0
      %v2728 = vpop.trf.xlu0
      %v2729 = vpop.trf.xlu0
      %v2730 = vpop.trf.xlu0
      %v2731 = vpop.trf.xlu0
      %v2732 = vpop.trf.xlu0
      %v2733 = vpop.trf.xlu0
      %v2734 = vpop.trf.xlu0
      %2735 = vxpose.xlu0.b32.start [1/16] %v2469, 128
      %2736 = vxpose.xlu0.b32.cont [2/16] %v2472, 128
      %2737 = vxpose.xlu0.b32.cont [3/16] %v2477, 128
      %2738 = vxpose.xlu0.b32.cont [4/16] %v2480, 128
      %2739 = vxpose.xlu0.b32.cont [5/16] %v2485, 128
      %2740 = vxpose.xlu0.b32.cont [6/16] %v2488, 128
      %2741 = vxpose.xlu0.b32.cont [7/16] %v2493, 128
      %2742 = vxpose.xlu0.b32.cont [8/16] %v2496, 128
      %2743 = vxpose.xlu0.b32.cont [9/16] %v2501, 128
      %2744 = vxpose.xlu0.b32.cont [10/16] %v2504, 128
      %2745 = vxpose.xlu0.b32.cont [11/16] %v2509, 128
      %2746 = vxpose.xlu0.b32.cont [12/16] %v2512, 128
      %2747 = vxpose.xlu0.b32.cont [13/16] %v2517, 128
      %2748 = vxpose.xlu0.b32.cont [14/16] %v2520, 128
      %2749 = vxpose.xlu0.b32.cont [15/16] %v2525, 128
      %2750 = vxpose.xlu0.b32.end [16/16] %v2528, 128
      %v2751 = vpop.trf.xlu0
      %v2752 = vpop.trf.xlu0
      %v2753 = vpop.trf.xlu0
      %v2754 = vpop.trf.xlu0
      %v2755 = vpop.trf.xlu0
      %v2756 = vpop.trf.xlu0
      %v2757 = vpop.trf.xlu0
      %v2758 = vpop.trf.xlu0
      %v2759 = vpop.trf.xlu0
      %v2760 = vpop.trf.xlu0
      %v2761 = vpop.trf.xlu0
      %v2762 = vpop.trf.xlu0
      %v2763 = vpop.trf.xlu0
      %v2764 = vpop.trf.xlu0
      %v2765 = vpop.trf.xlu0
      %v2766 = vpop.trf.xlu0
      %v2767 = vpack.c.bf16 %v2719, %v2719
      %v2768 = vpack.c.bf16 %v2751, %v2751
      %v2771 = vunpack.c.l.b16 %v2767
      %v2772 = vunpack.c.l.b16 %v2768
      %v2773 = vpack.c.b16 %v2772, %v2771
      %s2775 = scalar_lea.vmem %s389, 16
      %2776 = vst [vmem:[%s2775] sm:$0xff] %v2773
      %v2777 = vld [vmem:[%s2029] sm:$0xf]
      %v2778 = vld [vmem:[%s2029 + $0x4] sm:$0xf]
      %v2779 = vld [vmem:[%s2029 + $0x8] sm:$0x1]
      %v2780 = vld [vmem:[%s2029 + $0xc] sm:$0xf]
      %v2781 = vld [vmem:[%s2029 + $0x10] sm:$0xf]
      %v2782 = vld [vmem:[%s2029 + $0x14] sm:$0x1]
      %v2783 = vld [vmem:[%s2029 + $0x18] sm:$0xf]
      %v2784 = vld [vmem:[%s2029 + $0x1c] sm:$0xf]
      %v2785 = vld [vmem:[%s2029 + $0x20] sm:$0x1]
      %v2786 = vld [vmem:[%s2029 + $0x24] sm:$0xf]
      %v2787 = vld [vmem:[%s2029 + $0x28] sm:$0xf]
      %v2788 = vld [vmem:[%s2029 + $0x2c] sm:$0x1]
      %v2789 = vld [vmem:[%s2029 + $0x30] sm:$0xf]
      %v2790 = vld [vmem:[%s2029 + $0x34] sm:$0xf]
      %v2791 = vld [vmem:[%s2029 + $0x38] sm:$0x1]
      %v2792 = vld [vmem:[%s2029 + $0x3c] sm:$0xf]
      %v2793 = vld [vmem:[%s2029 + $0x40] sm:$0xf]
      %v2794 = vld [vmem:[%s2029 + $0x44] sm:$0x1]
      %v2795 = vld [vmem:[%s2029 + $0x48] sm:$0xf]
      %v2796 = vld [vmem:[%s2029 + $0x4c] sm:$0xf]
      %v2797 = vld [vmem:[%s2029 + $0x50] sm:$0x1]
      %v2798 = vld [vmem:[%s2029 + $0x54] sm:$0xf]
      %v2799 = vld [vmem:[%s2029 + $0x58] sm:$0xf]
      %v2800 = vld [vmem:[%s2029 + $0x5c] sm:$0x1]
      %v2801 = vld [vmem:[%s2029 + $0x60] sm:$0xf]
      %v2802 = vld [vmem:[%s2029 + $0x64] sm:$0xf]
      %v2803 = vld [vmem:[%s2029 + $0x68] sm:$0x1]
      %v2804 = vld [vmem:[%s2029 + $0x6c] sm:$0xf]
      %v2805 = vld [vmem:[%s2029 + $0x70] sm:$0xf]
      %v2806 = vld [vmem:[%s2029 + $0x74] sm:$0x1]
      %v2807 = vld [vmem:[%s2029 + $0x78] sm:$0xf]
      %v2808 = vld [vmem:[%s2029 + $0x7c] sm:$0xf]
      %v2809 = vld [vmem:[%s2029 + $0x80] sm:$0x1]
      %v2810 = vld [vmem:[%s2029 + $0x84] sm:$0xf]
      %v2811 = vld [vmem:[%s2029 + $0x88] sm:$0xf]
      %v2812 = vld [vmem:[%s2029 + $0x8c] sm:$0x1]
      %v2813 = vld [vmem:[%s2029 + $0x90] sm:$0xf]
      %v2814 = vld [vmem:[%s2029 + $0x94] sm:$0xf]
      %v2815 = vld [vmem:[%s2029 + $0x98] sm:$0x1]
      %v2816 = vld [vmem:[%s2029 + $0x9c] sm:$0xf]
      %v2817 = vld [vmem:[%s2029 + $0xa0] sm:$0xf]
      %v2818 = vld [vmem:[%s2029 + $0xa4] sm:$0x1]
      %v2819 = vld [vmem:[%s2029 + $0xa8] sm:$0xf]
      %v2820 = vld [vmem:[%s2029 + $0xac] sm:$0xf]
      %v2821 = vld [vmem:[%s2029 + $0xb0] sm:$0x1]
      %v2822 = vld [vmem:[%s2029 + $0xb4] sm:$0xf]
      %v2823 = vld [vmem:[%s2029 + $0xb8] sm:$0xf]
      %v2824 = vld [vmem:[%s2029 + $0xbc] sm:$0x1]
      %v2825 = vld [vmem:[%s364] sm:$0xf]
      %v2826 = vld [vmem:[%s364 + $0x4] sm:$0xf]
      %v2827 = vld [vmem:[%s364 + $0x8] sm:$0x1]
      %v2828 = vld [vmem:[%s364 + $0xc] sm:$0xf]
      %v2829 = vld [vmem:[%s364 + $0x10] sm:$0xf]
      %v2830 = vld [vmem:[%s364 + $0x14] sm:$0x1]
      %v2831 = vld [vmem:[%s364 + $0x18] sm:$0xf]
      %v2832 = vld [vmem:[%s364 + $0x1c] sm:$0xf]
      %v2833 = vld [vmem:[%s364 + $0x20] sm:$0x1]
      %v2834 = vld [vmem:[%s364 + $0x24] sm:$0xf]
      %v2835 = vld [vmem:[%s364 + $0x28] sm:$0xf]
      %v2836 = vld [vmem:[%s364 + $0x2c] sm:$0x1]
      %v2837 = vld [vmem:[%s364 + $0x30] sm:$0xf]
      %v2838 = vld [vmem:[%s364 + $0x34] sm:$0xf]
      %v2839 = vld [vmem:[%s364 + $0x38] sm:$0x1]
      %v2840 = vld [vmem:[%s364 + $0x3c] sm:$0xf]
      %v2841 = vld [vmem:[%s364 + $0x40] sm:$0xf]
      %v2842 = vld [vmem:[%s364 + $0x44] sm:$0x1]
      %v2843 = vld [vmem:[%s364 + $0x48] sm:$0xf]
      %v2844 = vld [vmem:[%s364 + $0x4c] sm:$0xf]
      %v2845 = vld [vmem:[%s364 + $0x50] sm:$0x1]
      %v2846 = vld [vmem:[%s364 + $0x54] sm:$0xf]
      %v2847 = vld [vmem:[%s364 + $0x58] sm:$0xf]
      %v2848 = vld [vmem:[%s364 + $0x5c] sm:$0x1]
      %v2849 = vld [vmem:[%s364 + $0x60] sm:$0xf]
      %v2850 = vld [vmem:[%s364 + $0x64] sm:$0xf]
      %v2851 = vld [vmem:[%s364 + $0x68] sm:$0x1]
      %v2852 = vld [vmem:[%s364 + $0x6c] sm:$0xf]
      %v2853 = vld [vmem:[%s364 + $0x70] sm:$0xf]
      %v2854 = vld [vmem:[%s364 + $0x74] sm:$0x1]
      %v2855 = vld [vmem:[%s364 + $0x78] sm:$0xf]
      %v2856 = vld [vmem:[%s364 + $0x7c] sm:$0xf]
      %v2857 = vld [vmem:[%s364 + $0x80] sm:$0x1]
      %v2858 = vld [vmem:[%s364 + $0x84] sm:$0xf]
      %v2859 = vld [vmem:[%s364 + $0x88] sm:$0xf]
      %v2860 = vld [vmem:[%s364 + $0x8c] sm:$0x1]
      %v2861 = vld [vmem:[%s364 + $0x90] sm:$0xf]
      %v2862 = vld [vmem:[%s364 + $0x94] sm:$0xf]
      %v2863 = vld [vmem:[%s364 + $0x98] sm:$0x1]
      %v2864 = vld [vmem:[%s364 + $0x9c] sm:$0xf]
      %v2865 = vld [vmem:[%s364 + $0xa0] sm:$0xf]
      %v2866 = vld [vmem:[%s364 + $0xa4] sm:$0x1]
      %v2867 = vld [vmem:[%s364 + $0xa8] sm:$0xf]
      %v2868 = vld [vmem:[%s364 + $0xac] sm:$0xf]
      %v2869 = vld [vmem:[%s364 + $0xb0] sm:$0x1]
      %v2870 = vld [vmem:[%s364 + $0xb4] sm:$0xf]
      %v2871 = vld [vmem:[%s364 + $0xb8] sm:$0xf]
      %v2872 = vld [vmem:[%s364 + $0xbc] sm:$0x1]
      %v2921 = vunpack.c.l.b16 %v2777
      %v2922 = vunpack.c.l.b16 %v2778
      %v2923 = vunpack.c.l.b16 %v2779
      %v2924 = vunpack.c.l.b16 %v2780
      %v2925 = vunpack.c.l.b16 %v2781
      %v2926 = vunpack.c.l.b16 %v2782
      %v2927 = vunpack.c.l.b16 %v2783
      %v2928 = vunpack.c.l.b16 %v2784
      %v2929 = vunpack.c.l.b16 %v2785
      %v2930 = vunpack.c.l.b16 %v2786
      %v2931 = vunpack.c.l.b16 %v2787
      %v2932 = vunpack.c.l.b16 %v2788
      %v2933 = vunpack.c.l.b16 %v2789
      %v2934 = vunpack.c.l.b16 %v2790
      %v2935 = vunpack.c.l.b16 %v2791
      %v2936 = vunpack.c.l.b16 %v2792
      %v2937 = vunpack.c.l.b16 %v2793
      %v2938 = vunpack.c.l.b16 %v2794
      %v2939 = vunpack.c.l.b16 %v2795
      %v2940 = vunpack.c.l.b16 %v2796
      %v2941 = vunpack.c.l.b16 %v2797
      %v2942 = vunpack.c.l.b16 %v2798
      %v2943 = vunpack.c.l.b16 %v2799
      %v2944 = vunpack.c.l.b16 %v2800
      %v2945 = vunpack.c.l.b16 %v2801
      %v2946 = vunpack.c.l.b16 %v2802
      %v2947 = vunpack.c.l.b16 %v2803
      %v2948 = vunpack.c.l.b16 %v2804
      %v2949 = vunpack.c.l.b16 %v2805
      %v2950 = vunpack.c.l.b16 %v2806
      %v2951 = vunpack.c.l.b16 %v2807
      %v2952 = vunpack.c.l.b16 %v2808
      %v2953 = vunpack.c.l.b16 %v2809
      %v2954 = vunpack.c.l.b16 %v2810
      %v2955 = vunpack.c.l.b16 %v2811
      %v2956 = vunpack.c.l.b16 %v2812
      %v2957 = vunpack.c.l.b16 %v2813
      %v2958 = vunpack.c.l.b16 %v2814
      %v2959 = vunpack.c.l.b16 %v2815
      %v2960 = vunpack.c.l.b16 %v2816
      %v2961 = vunpack.c.l.b16 %v2817
      %v2962 = vunpack.c.l.b16 %v2818
      %v2963 = vunpack.c.l.b16 %v2819
      %v2964 = vunpack.c.l.b16 %v2820
      %v2965 = vunpack.c.l.b16 %v2821
      %v2966 = vunpack.c.l.b16 %v2822
      %v2967 = vunpack.c.l.b16 %v2823
      %v2968 = vunpack.c.l.b16 %v2824
      %v2969 = vpack.c.b16 %v2922, %v2921
      %v2970 = vpack.c.b16 %v2923, %v2923
      %v2971 = vpack.c.b16 %v2925, %v2924
      %v2972 = vpack.c.b16 %v2926, %v2926
      %v2973 = vpack.c.b16 %v2928, %v2927
      %v2974 = vpack.c.b16 %v2929, %v2929
      %v2975 = vpack.c.b16 %v2931, %v2930
      %v2976 = vpack.c.b16 %v2932, %v2932
      %v2977 = vpack.c.b16 %v2934, %v2933
      %v2978 = vpack.c.b16 %v2935, %v2935
      %v2979 = vpack.c.b16 %v2937, %v2936
      %v2980 = vpack.c.b16 %v2938, %v2938
      %v2981 = vpack.c.b16 %v2940, %v2939
      %v2982 = vpack.c.b16 %v2941, %v2941
      %v2983 = vpack.c.b16 %v2943, %v2942
      %v2984 = vpack.c.b16 %v2944, %v2944
      %v2985 = vpack.c.b16 %v2946, %v2945
      %v2986 = vpack.c.b16 %v2947, %v2947
      %v2987 = vpack.c.b16 %v2949, %v2948
      %v2988 = vpack.c.b16 %v2950, %v2950
      %v2989 = vpack.c.b16 %v2952, %v2951
      %v2990 = vpack.c.b16 %v2953, %v2953
      %v2991 = vpack.c.b16 %v2955, %v2954
      %v2992 = vpack.c.b16 %v2956, %v2956
      %v2993 = vpack.c.b16 %v2958, %v2957
      %v2994 = vpack.c.b16 %v2959, %v2959
      %v2995 = vpack.c.b16 %v2961, %v2960
      %v2996 = vpack.c.b16 %v2962, %v2962
      %v2997 = vpack.c.b16 %v2964, %v2963
      %v2998 = vpack.c.b16 %v2965, %v2965
      %v2999 = vpack.c.b16 %v2967, %v2966
      %v3000 = vpack.c.b16 %v2968, %v2968
      %v3002 = vshrl.u32 %v2969, 16
      %v3004 = vrot.slane %v3002, 7
      %v3005 = vshll.u32 %v2969, 16
      %v3007 = vor.u32 %v3004, %v3005
      %v3009 = vshrl.u32 %v2971, 16
      %v3011 = vrot.slane %v3009, 7
      %v3012 = vshll.u32 %v2971, 16
      %v3014 = vor.u32 %v3011, %v3012
      %v3016 = vshrl.u32 %v2973, 16
      %v3018 = vrot.slane %v3016, 7
      %v3019 = vshll.u32 %v2973, 16
      %v3021 = vor.u32 %v3018, %v3019
      %v3023 = vshrl.u32 %v2975, 16
      %v3025 = vrot.slane %v3023, 7
      %v3026 = vshll.u32 %v2975, 16
      %v3028 = vor.u32 %v3025, %v3026
      %v3030 = vshrl.u32 %v2977, 16
      %v3032 = vrot.slane %v3030, 7
      %v3033 = vshll.u32 %v2977, 16
      %v3035 = vor.u32 %v3032, %v3033
      %v3037 = vshrl.u32 %v2979, 16
      %v3039 = vrot.slane %v3037, 7
      %v3040 = vshll.u32 %v2979, 16
      %v3042 = vor.u32 %v3039, %v3040
      %v3044 = vshrl.u32 %v2981, 16
      %v3046 = vrot.slane %v3044, 7
      %v3047 = vshll.u32 %v2981, 16
      %v3049 = vor.u32 %v3046, %v3047
      %v3051 = vshrl.u32 %v2983, 16
      %v3053 = vrot.slane %v3051, 7
      %v3054 = vshll.u32 %v2983, 16
      %v3056 = vor.u32 %v3053, %v3054
      %v3058 = vshrl.u32 %v2985, 16
      %v3060 = vrot.slane %v3058, 7
      %v3061 = vshll.u32 %v2985, 16
      %v3063 = vor.u32 %v3060, %v3061
      %v3065 = vshrl.u32 %v2987, 16
      %v3067 = vrot.slane %v3065, 7
      %v3068 = vshll.u32 %v2987, 16
      %v3070 = vor.u32 %v3067, %v3068
      %v3072 = vshrl.u32 %v2989, 16
      %v3074 = vrot.slane %v3072, 7
      %v3075 = vshll.u32 %v2989, 16
      %v3077 = vor.u32 %v3074, %v3075
      %v3079 = vshrl.u32 %v2991, 16
      %v3081 = vrot.slane %v3079, 7
      %v3082 = vshll.u32 %v2991, 16
      %v3084 = vor.u32 %v3081, %v3082
      %v3086 = vshrl.u32 %v2993, 16
      %v3088 = vrot.slane %v3086, 7
      %v3089 = vshll.u32 %v2993, 16
      %v3091 = vor.u32 %v3088, %v3089
      %v3093 = vshrl.u32 %v2995, 16
      %v3095 = vrot.slane %v3093, 7
      %v3096 = vshll.u32 %v2995, 16
      %v3098 = vor.u32 %v3095, %v3096
      %v3100 = vshrl.u32 %v2997, 16
      %v3102 = vrot.slane %v3100, 7
      %v3103 = vshll.u32 %v2997, 16
      %v3105 = vor.u32 %v3102, %v3103
      %v3107 = vshrl.u32 %v2999, 16
      %v3109 = vrot.slane %v3107, 7
      %v3110 = vshll.u32 %v2999, 16
      %v3112 = vor.u32 %v3109, %v3110
      %3113 = vrot.lane.b32.xlu0 %v3007, 4
      %v3114 = vpop.permute.xlu0 %3113
      %3115 = vrot.lane.b32.xlu0 %v3004, 4
      %v3116 = vpop.permute.xlu0 %3115
      %3117 = vrot.lane.b32.xlu0 %v3014, 4
      %v3118 = vpop.permute.xlu0 %3117
      %3119 = vrot.lane.b32.xlu0 %v3011, 4
      %v3120 = vpop.permute.xlu0 %3119
      %3121 = vrot.lane.b32.xlu0 %v3021, 4
      %v3122 = vpop.permute.xlu0 %3121
      %3123 = vrot.lane.b32.xlu0 %v3018, 4
      %v3124 = vpop.permute.xlu0 %3123
      %3125 = vrot.lane.b32.xlu0 %v3028, 4
      %v3126 = vpop.permute.xlu0 %3125
      %3127 = vrot.lane.b32.xlu0 %v3025, 4
      %v3128 = vpop.permute.xlu0 %3127
      %3129 = vrot.lane.b32.xlu0 %v3035, 4
      %v3130 = vpop.permute.xlu0 %3129
      %3131 = vrot.lane.b32.xlu0 %v3032, 4
      %v3132 = vpop.permute.xlu0 %3131
      %3133 = vrot.lane.b32.xlu0 %v3042, 4
      %v3134 = vpop.permute.xlu0 %3133
      %3135 = vrot.lane.b32.xlu0 %v3039, 4
      %v3136 = vpop.permute.xlu0 %3135
      %3137 = vrot.lane.b32.xlu0 %v3049, 4
      %v3138 = vpop.permute.xlu0 %3137
      %3139 = vrot.lane.b32.xlu0 %v3046, 4
      %v3140 = vpop.permute.xlu0 %3139
      %3141 = vrot.lane.b32.xlu0 %v3056, 4
      %v3142 = vpop.permute.xlu0 %3141
      %3143 = vrot.lane.b32.xlu0 %v3053, 4
      %v3144 = vpop.permute.xlu0 %3143
      %3145 = vrot.lane.b32.xlu0 %v3063, 4
      %v3146 = vpop.permute.xlu0 %3145
      %3147 = vrot.lane.b32.xlu0 %v3060, 4
      %v3148 = vpop.permute.xlu0 %3147
      %3149 = vrot.lane.b32.xlu0 %v3070, 4
      %v3150 = vpop.permute.xlu0 %3149
      %3151 = vrot.lane.b32.xlu0 %v3067, 4
      %v3152 = vpop.permute.xlu0 %3151
      %3153 = vrot.lane.b32.xlu0 %v3077, 4
      %v3154 = vpop.permute.xlu0 %3153
      %3155 = vrot.lane.b32.xlu0 %v3074, 4
      %v3156 = vpop.permute.xlu0 %3155
      %3157 = vrot.lane.b32.xlu0 %v3084, 4
      %v3158 = vpop.permute.xlu0 %3157
      %3159 = vrot.lane.b32.xlu0 %v3081, 4
      %v3160 = vpop.permute.xlu0 %3159
      %3161 = vrot.lane.b32.xlu0 %v3091, 4
      %v3162 = vpop.permute.xlu0 %3161
      %3163 = vrot.lane.b32.xlu0 %v3088, 4
      %v3164 = vpop.permute.xlu0 %3163
      %3165 = vrot.lane.b32.xlu0 %v3098, 4
      %v3166 = vpop.permute.xlu0 %3165
      %3167 = vrot.lane.b32.xlu0 %v3095, 4
      %v3168 = vpop.permute.xlu0 %3167
      %3169 = vrot.lane.b32.xlu0 %v3105, 4
      %v3170 = vpop.permute.xlu0 %3169
      %3171 = vrot.lane.b32.xlu0 %v3102, 4
      %v3172 = vpop.permute.xlu0 %3171
      %3173 = vrot.lane.b32.xlu0 %v3112, 4
      %v3174 = vpop.permute.xlu0 %3173
      %3175 = vrot.lane.b32.xlu0 %v3109, 4
      %v3176 = vpop.permute.xlu0 %3175
      %v3225 = vunpack.c.l.b16 %v2825
      %v3226 = vunpack.c.l.b16 %v2826
      %v3227 = vunpack.c.l.b16 %v2827
      %v3228 = vunpack.c.l.b16 %v2828
      %v3229 = vunpack.c.l.b16 %v2829
      %v3230 = vunpack.c.l.b16 %v2830
      %v3231 = vunpack.c.l.b16 %v2831
      %v3232 = vunpack.c.l.b16 %v2832
      %v3233 = vunpack.c.l.b16 %v2833
      %v3234 = vunpack.c.l.b16 %v2834
      %v3235 = vunpack.c.l.b16 %v2835
      %v3236 = vunpack.c.l.b16 %v2836
      %v3237 = vunpack.c.l.b16 %v2837
      %v3238 = vunpack.c.l.b16 %v2838
      %v3239 = vunpack.c.l.b16 %v2839
      %v3240 = vunpack.c.l.b16 %v2840
      %v3241 = vunpack.c.l.b16 %v2841
      %v3242 = vunpack.c.l.b16 %v2842
      %v3243 = vunpack.c.l.b16 %v2843
      %v3244 = vunpack.c.l.b16 %v2844
      %v3245 = vunpack.c.l.b16 %v2845
      %v3246 = vunpack.c.l.b16 %v2846
      %v3247 = vunpack.c.l.b16 %v2847
      %v3248 = vunpack.c.l.b16 %v2848
      %v3249 = vunpack.c.l.b16 %v2849
      %v3250 = vunpack.c.l.b16 %v2850
      %v3251 = vunpack.c.l.b16 %v2851
      %v3252 = vunpack.c.l.b16 %v2852
      %v3253 = vunpack.c.l.b16 %v2853
      %v3254 = vunpack.c.l.b16 %v2854
      %v3255 = vunpack.c.l.b16 %v2855
      %v3256 = vunpack.c.l.b16 %v2856
      %v3257 = vunpack.c.l.b16 %v2857
      %v3258 = vunpack.c.l.b16 %v2858
      %v3259 = vunpack.c.l.b16 %v2859
      %v3260 = vunpack.c.l.b16 %v2860
      %v3261 = vunpack.c.l.b16 %v2861
      %v3262 = vunpack.c.l.b16 %v2862
      %v3263 = vunpack.c.l.b16 %v2863
      %v3264 = vunpack.c.l.b16 %v2864
      %v3265 = vunpack.c.l.b16 %v2865
      %v3266 = vunpack.c.l.b16 %v2866
      %v3267 = vunpack.c.l.b16 %v2867
      %v3268 = vunpack.c.l.b16 %v2868
      %v3269 = vunpack.c.l.b16 %v2869
      %v3270 = vunpack.c.l.b16 %v2870
      %v3271 = vunpack.c.l.b16 %v2871
      %v3272 = vunpack.c.l.b16 %v2872
      %v3273 = vpack.c.b16 %v3226, %v3225
      %v3274 = vpack.c.b16 %v3227, %v3227
      %v3275 = vpack.c.b16 %v3229, %v3228
      %v3276 = vpack.c.b16 %v3230, %v3230
      %v3277 = vpack.c.b16 %v3232, %v3231
      %v3278 = vpack.c.b16 %v3233, %v3233
      %v3279 = vpack.c.b16 %v3235, %v3234
      %v3280 = vpack.c.b16 %v3236, %v3236
      %v3281 = vpack.c.b16 %v3238, %v3237
      %v3282 = vpack.c.b16 %v3239, %v3239
      %v3283 = vpack.c.b16 %v3241, %v3240
      %v3284 = vpack.c.b16 %v3242, %v3242
      %v3285 = vpack.c.b16 %v3244, %v3243
      %v3286 = vpack.c.b16 %v3245, %v3245
      %v3287 = vpack.c.b16 %v3247, %v3246
      %v3288 = vpack.c.b16 %v3248, %v3248
      %v3289 = vpack.c.b16 %v3250, %v3249
      %v3290 = vpack.c.b16 %v3251, %v3251
      %v3291 = vpack.c.b16 %v3253, %v3252
      %v3292 = vpack.c.b16 %v3254, %v3254
      %v3293 = vpack.c.b16 %v3256, %v3255
      %v3294 = vpack.c.b16 %v3257, %v3257
      %v3295 = vpack.c.b16 %v3259, %v3258
      %v3296 = vpack.c.b16 %v3260, %v3260
      %v3297 = vpack.c.b16 %v3262, %v3261
      %v3298 = vpack.c.b16 %v3263, %v3263
      %v3299 = vpack.c.b16 %v3265, %v3264
      %v3300 = vpack.c.b16 %v3266, %v3266
      %v3301 = vpack.c.b16 %v3268, %v3267
      %v3302 = vpack.c.b16 %v3269, %v3269
      %v3303 = vpack.c.b16 %v3271, %v3270
      %v3304 = vpack.c.b16 %v3272, %v3272
      %3305 = vrot.lane.b32.xlu0 %v3273, 8
      %v3306 = vpop.permute.xlu0 %3305
      %3307 = vrot.lane.b32.xlu0 %v3274, 8
      %v3308 = vpop.permute.xlu0 %3307
      %3309 = vrot.lane.b32.xlu0 %v3275, 8
      %v3310 = vpop.permute.xlu0 %3309
      %3311 = vrot.lane.b32.xlu0 %v3276, 8
      %v3312 = vpop.permute.xlu0 %3311
      %3313 = vrot.lane.b32.xlu0 %v3277, 8
      %v3314 = vpop.permute.xlu0 %3313
      %3315 = vrot.lane.b32.xlu0 %v3278, 8
      %v3316 = vpop.permute.xlu0 %3315
      %3317 = vrot.lane.b32.xlu0 %v3279, 8
      %v3318 = vpop.permute.xlu0 %3317
      %3319 = vrot.lane.b32.xlu0 %v3280, 8
      %v3320 = vpop.permute.xlu0 %3319
      %3321 = vrot.lane.b32.xlu0 %v3281, 8
      %v3322 = vpop.permute.xlu0 %3321
      %3323 = vrot.lane.b32.xlu0 %v3282, 8
      %v3324 = vpop.permute.xlu0 %3323
      %3325 = vrot.lane.b32.xlu0 %v3283, 8
      %v3326 = vpop.permute.xlu0 %3325
      %3327 = vrot.lane.b32.xlu0 %v3284, 8
      %v3328 = vpop.permute.xlu0 %3327
      %3329 = vrot.lane.b32.xlu0 %v3285, 8
      %v3330 = vpop.permute.xlu0 %3329
      %3331 = vrot.lane.b32.xlu0 %v3286, 8
      %v3332 = vpop.permute.xlu0 %3331
      %3333 = vrot.lane.b32.xlu0 %v3287, 8
      %v3334 = vpop.permute.xlu0 %3333
      %3335 = vrot.lane.b32.xlu0 %v3288, 8
      %v3336 = vpop.permute.xlu0 %3335
      %3337 = vrot.lane.b32.xlu0 %v3289, 8
      %v3338 = vpop.permute.xlu0 %3337
      %3339 = vrot.lane.b32.xlu0 %v3290, 8
      %v3340 = vpop.permute.xlu0 %3339
      %3341 = vrot.lane.b32.xlu0 %v3291, 8
      %v3342 = vpop.permute.xlu0 %3341
      %3343 = vrot.lane.b32.xlu0 %v3292, 8
      %v3344 = vpop.permute.xlu0 %3343
      %3345 = vrot.lane.b32.xlu0 %v3293, 8
      %v3346 = vpop.permute.xlu0 %3345
      %3347 = vrot.lane.b32.xlu0 %v3294, 8
      %v3348 = vpop.permute.xlu0 %3347
      %3349 = vrot.lane.b32.xlu0 %v3295, 8
      %v3350 = vpop.permute.xlu0 %3349
      %3351 = vrot.lane.b32.xlu0 %v3296, 8
      %v3352 = vpop.permute.xlu0 %3351
      %3353 = vrot.lane.b32.xlu0 %v3297, 8
      %v3354 = vpop.permute.xlu0 %3353
      %3355 = vrot.lane.b32.xlu0 %v3298, 8
      %v3356 = vpop.permute.xlu0 %3355
      %3357 = vrot.lane.b32.xlu0 %v3299, 8
      %v3358 = vpop.permute.xlu0 %3357
      %3359 = vrot.lane.b32.xlu0 %v3300, 8
      %v3360 = vpop.permute.xlu0 %3359
      %3361 = vrot.lane.b32.xlu0 %v3301, 8
      %v3362 = vpop.permute.xlu0 %3361
      %3363 = vrot.lane.b32.xlu0 %v3302, 8
      %v3364 = vpop.permute.xlu0 %3363
      %3365 = vrot.lane.b32.xlu0 %v3303, 8
      %v3366 = vpop.permute.xlu0 %3365
      %3367 = vrot.lane.b32.xlu0 %v3304, 8
      %v3368 = vpop.permute.xlu0 %3367
      %v3370 = vshrl.u32 %v3273, 16
      %v3372 = vrot.slane %v3370, 7
      %v3373 = vshll.u32 %v3273, 16
      %v3375 = vor.u32 %v3372, %v3373
      %v3377 = vshrl.u32 %v3275, 16
      %v3379 = vrot.slane %v3377, 7
      %v3380 = vshll.u32 %v3275, 16
      %v3382 = vor.u32 %v3379, %v3380
      %v3384 = vshrl.u32 %v3277, 16
      %v3386 = vrot.slane %v3384, 7
      %v3387 = vshll.u32 %v3277, 16
      %v3389 = vor.u32 %v3386, %v3387
      %v3391 = vshrl.u32 %v3279, 16
      %v3393 = vrot.slane %v3391, 7
      %v3394 = vshll.u32 %v3279, 16
      %v3396 = vor.u32 %v3393, %v3394
      %v3398 = vshrl.u32 %v3281, 16
      %v3400 = vrot.slane %v3398, 7
      %v3401 = vshll.u32 %v3281, 16
      %v3403 = vor.u32 %v3400, %v3401
      %v3405 = vshrl.u32 %v3283, 16
      %v3407 = vrot.slane %v3405, 7
      %v3408 = vshll.u32 %v3283, 16
      %v3410 = vor.u32 %v3407, %v3408
      %v3412 = vshrl.u32 %v3285, 16
      %v3414 = vrot.slane %v3412, 7
      %v3415 = vshll.u32 %v3285, 16
      %v3417 = vor.u32 %v3414, %v3415
      %v3419 = vshrl.u32 %v3287, 16
      %v3421 = vrot.slane %v3419, 7
      %v3422 = vshll.u32 %v3287, 16
      %v3424 = vor.u32 %v3421, %v3422
      %v3426 = vshrl.u32 %v3289, 16
      %v3428 = vrot.slane %v3426, 7
      %v3429 = vshll.u32 %v3289, 16
      %v3431 = vor.u32 %v3428, %v3429
      %v3433 = vshrl.u32 %v3291, 16
      %v3435 = vrot.slane %v3433, 7
      %v3436 = vshll.u32 %v3291, 16
      %v3438 = vor.u32 %v3435, %v3436
      %v3440 = vshrl.u32 %v3293, 16
      %v3442 = vrot.slane %v3440, 7
      %v3443 = vshll.u32 %v3293, 16
      %v3445 = vor.u32 %v3442, %v3443
      %v3447 = vshrl.u32 %v3295, 16
      %v3449 = vrot.slane %v3447, 7
      %v3450 = vshll.u32 %v3295, 16
      %v3452 = vor.u32 %v3449, %v3450
      %v3454 = vshrl.u32 %v3297, 16
      %v3456 = vrot.slane %v3454, 7
      %v3457 = vshll.u32 %v3297, 16
      %v3459 = vor.u32 %v3456, %v3457
      %v3461 = vshrl.u32 %v3299, 16
      %v3463 = vrot.slane %v3461, 7
      %v3464 = vshll.u32 %v3299, 16
      %v3466 = vor.u32 %v3463, %v3464
      %v3468 = vshrl.u32 %v3301, 16
      %v3470 = vrot.slane %v3468, 7
      %v3471 = vshll.u32 %v3301, 16
      %v3473 = vor.u32 %v3470, %v3471
      %v3475 = vshrl.u32 %v3303, 16
      %v3477 = vrot.slane %v3475, 7
      %v3478 = vshll.u32 %v3303, 16
      %v3480 = vor.u32 %v3477, %v3478
      %3481 = vrot.lane.b32.xlu0 %v3375, 12
      %v3482 = vpop.permute.xlu0 %3481
      %3483 = vrot.lane.b32.xlu0 %v3372, 12
      %v3484 = vpop.permute.xlu0 %3483
      %3485 = vrot.lane.b32.xlu0 %v3382, 12
      %v3486 = vpop.permute.xlu0 %3485
      %3487 = vrot.lane.b32.xlu0 %v3379, 12
      %v3488 = vpop.permute.xlu0 %3487
      %3489 = vrot.lane.b32.xlu0 %v3389, 12
      %v3490 = vpop.permute.xlu0 %3489
      %3491 = vrot.lane.b32.xlu0 %v3386, 12
      %v3492 = vpop.permute.xlu0 %3491
      %3493 = vrot.lane.b32.xlu0 %v3396, 12
      %v3494 = vpop.permute.xlu0 %3493
      %3495 = vrot.lane.b32.xlu0 %v3393, 12
      %v3496 = vpop.permute.xlu0 %3495
      %3497 = vrot.lane.b32.xlu0 %v3403, 12
      %v3498 = vpop.permute.xlu0 %3497
      %3499 = vrot.lane.b32.xlu0 %v3400, 12
      %v3500 = vpop.permute.xlu0 %3499
      %3501 = vrot.lane.b32.xlu0 %v3410, 12
      %v3502 = vpop.permute.xlu0 %3501
      %3503 = vrot.lane.b32.xlu0 %v3407, 12
      %v3504 = vpop.permute.xlu0 %3503
      %3505 = vrot.lane.b32.xlu0 %v3417, 12
      %v3506 = vpop.permute.xlu0 %3505
      %3507 = vrot.lane.b32.xlu0 %v3414, 12
      %v3508 = vpop.permute.xlu0 %3507
      %3509 = vrot.lane.b32.xlu0 %v3424, 12
      %v3510 = vpop.permute.xlu0 %3509
      %3511 = vrot.lane.b32.xlu0 %v3421, 12
      %v3512 = vpop.permute.xlu0 %3511
      %3513 = vrot.lane.b32.xlu0 %v3431, 12
      %v3514 = vpop.permute.xlu0 %3513
      %3515 = vrot.lane.b32.xlu0 %v3428, 12
      %v3516 = vpop.permute.xlu0 %3515
      %3517 = vrot.lane.b32.xlu0 %v3438, 12
      %v3518 = vpop.permute.xlu0 %3517
      %3519 = vrot.lane.b32.xlu0 %v3435, 12
      %v3520 = vpop.permute.xlu0 %3519
      %3521 = vrot.lane.b32.xlu0 %v3445, 12
      %v3522 = vpop.permute.xlu0 %3521
      %3523 = vrot.lane.b32.xlu0 %v3442, 12
      %v3524 = vpop.permute.xlu0 %3523
      %3525 = vrot.lane.b32.xlu0 %v3452, 12
      %v3526 = vpop.permute.xlu0 %3525
      %3527 = vrot.lane.b32.xlu0 %v3449, 12
      %v3528 = vpop.permute.xlu0 %3527
      %3529 = vrot.lane.b32.xlu0 %v3459, 12
      %v3530 = vpop.permute.xlu0 %3529
      %3531 = vrot.lane.b32.xlu0 %v3456, 12
      %v3532 = vpop.permute.xlu0 %3531
      %3533 = vrot.lane.b32.xlu0 %v3466, 12
      %v3534 = vpop.permute.xlu0 %3533
      %3535 = vrot.lane.b32.xlu0 %v3463, 12
      %v3536 = vpop.permute.xlu0 %3535
      %3537 = vrot.lane.b32.xlu0 %v3473, 12
      %v3538 = vpop.permute.xlu0 %3537
      %3539 = vrot.lane.b32.xlu0 %v3470, 12
      %v3540 = vpop.permute.xlu0 %3539
      %3541 = vrot.lane.b32.xlu0 %v3480, 12
      %v3542 = vpop.permute.xlu0 %3541
      %3543 = vrot.lane.b32.xlu0 %v3477, 12
      %v3544 = vpop.permute.xlu0 %3543
      %v3546 = vsel %vm516, %v2969, %v3114
      %v3549 = vsel %vm516, %v2970, %v3116
      %v3551 = vsel %vm516, %v2971, %v3118
      %v3554 = vsel %vm516, %v2972, %v3120
      %v3556 = vsel %vm516, %v2973, %v3122
      %v3559 = vsel %vm516, %v2974, %v3124
      %v3561 = vsel %vm516, %v2975, %v3126
      %v3564 = vsel %vm516, %v2976, %v3128
      %v3566 = vsel %vm516, %v2977, %v3130
      %v3569 = vsel %vm516, %v2978, %v3132
      %v3571 = vsel %vm516, %v2979, %v3134
      %v3574 = vsel %vm516, %v2980, %v3136
      %v3576 = vsel %vm516, %v2981, %v3138
      %v3579 = vsel %vm516, %v2982, %v3140
      %v3581 = vsel %vm516, %v2983, %v3142
      %v3584 = vsel %vm516, %v2984, %v3144
      %v3586 = vsel %vm516, %v2985, %v3146
      %v3589 = vsel %vm516, %v2986, %v3148
      %v3591 = vsel %vm516, %v2987, %v3150
      %v3594 = vsel %vm516, %v2988, %v3152
      %v3596 = vsel %vm516, %v2989, %v3154
      %v3599 = vsel %vm516, %v2990, %v3156
      %v3601 = vsel %vm516, %v2991, %v3158
      %v3604 = vsel %vm516, %v2992, %v3160
      %v3606 = vsel %vm516, %v2993, %v3162
      %v3609 = vsel %vm516, %v2994, %v3164
      %v3611 = vsel %vm516, %v2995, %v3166
      %v3614 = vsel %vm516, %v2996, %v3168
      %v3616 = vsel %vm516, %v2997, %v3170
      %v3619 = vsel %vm516, %v2998, %v3172
      %v3621 = vsel %vm516, %v2999, %v3174
      %v3624 = vsel %vm516, %v3000, %v3176
      %v3626 = vsel %vm730, %v3546, %v3306
      %v3628 = vsel %vm730, %v3549, %v3308
      %v3630 = vsel %vm730, %v3551, %v3310
      %v3632 = vsel %vm730, %v3554, %v3312
      %v3634 = vsel %vm730, %v3556, %v3314
      %v3636 = vsel %vm730, %v3559, %v3316
      %v3638 = vsel %vm730, %v3561, %v3318
      %v3640 = vsel %vm730, %v3564, %v3320
      %v3642 = vsel %vm730, %v3566, %v3322
      %v3644 = vsel %vm730, %v3569, %v3324
      %v3646 = vsel %vm730, %v3571, %v3326
      %v3648 = vsel %vm730, %v3574, %v3328
      %v3650 = vsel %vm730, %v3576, %v3330
      %v3652 = vsel %vm730, %v3579, %v3332
      %v3654 = vsel %vm730, %v3581, %v3334
      %v3656 = vsel %vm730, %v3584, %v3336
      %v3658 = vsel %vm730, %v3586, %v3338
      %v3660 = vsel %vm730, %v3589, %v3340
      %v3662 = vsel %vm730, %v3591, %v3342
      %v3664 = vsel %vm730, %v3594, %v3344
      %v3666 = vsel %vm730, %v3596, %v3346
      %v3668 = vsel %vm730, %v3599, %v3348
      %v3670 = vsel %vm730, %v3601, %v3350
      %v3672 = vsel %vm730, %v3604, %v3352
      %v3674 = vsel %vm730, %v3606, %v3354
      %v3676 = vsel %vm730, %v3609, %v3356
      %v3678 = vsel %vm730, %v3611, %v3358
      %v3680 = vsel %vm730, %v3614, %v3360
      %v3682 = vsel %vm730, %v3616, %v3362
      %v3684 = vsel %vm730, %v3619, %v3364
      %v3686 = vsel %vm730, %v3621, %v3366
      %v3688 = vsel %vm730, %v3624, %v3368
      %vm3689 = vcmask 97280
      %v3691 = vsel %vm3689, %v3626, %v3482
      %v3693 = vsel %vm3689, %v3628, %v3484
      %v3695 = vsel %vm3689, %v3630, %v3486
      %v3697 = vsel %vm3689, %v3632, %v3488
      %v3699 = vsel %vm3689, %v3634, %v3490
      %v3701 = vsel %vm3689, %v3636, %v3492
      %v3703 = vsel %vm3689, %v3638, %v3494
      %v3705 = vsel %vm3689, %v3640, %v3496
      %v3707 = vsel %vm3689, %v3642, %v3498
      %v3709 = vsel %vm3689, %v3644, %v3500
      %v3711 = vsel %vm3689, %v3646, %v3502
      %v3713 = vsel %vm3689, %v3648, %v3504
      %v3715 = vsel %vm3689, %v3650, %v3506
      %v3717 = vsel %vm3689, %v3652, %v3508
      %v3719 = vsel %vm3689, %v3654, %v3510
      %v3721 = vsel %vm3689, %v3656, %v3512
      %v3723 = vsel %vm3689, %v3658, %v3514
      %v3725 = vsel %vm3689, %v3660, %v3516
      %v3727 = vsel %vm3689, %v3662, %v3518
      %v3729 = vsel %vm3689, %v3664, %v3520
      %v3731 = vsel %vm3689, %v3666, %v3522
      %v3733 = vsel %vm3689, %v3668, %v3524
      %v3735 = vsel %vm3689, %v3670, %v3526
      %v3737 = vsel %vm3689, %v3672, %v3528
      %v3739 = vsel %vm3689, %v3674, %v3530
      %v3741 = vsel %vm3689, %v3676, %v3532
      %v3743 = vsel %vm3689, %v3678, %v3534
      %v3745 = vsel %vm3689, %v3680, %v3536
      %v3747 = vsel %vm3689, %v3682, %v3538
      %v3749 = vsel %vm3689, %v3684, %v3540
      %v3751 = vsel %vm3689, %v3686, %v3542
      %v3753 = vsel %vm3689, %v3688, %v3544
      %v3754 = vshrl.u32 %v3691, 16
      %v3756 = vshll.u32 %v3691, 16
      %v3758 = vrot.slane %v3756, 1
      %v3759 = vor.u32 %v3754, %v3758
      %v3760 = vshll.u32 %v3693, 16
      %v3762 = vrot.slane %v3760, 1
      %v3763 = vsel %vm1408, %v3759, %v3762
      %v3764 = vshrl.u32 %v3695, 16
      %v3766 = vshll.u32 %v3695, 16
      %v3768 = vrot.slane %v3766, 1
      %v3769 = vor.u32 %v3764, %v3768
      %v3770 = vshll.u32 %v3697, 16
      %v3772 = vrot.slane %v3770, 1
      %v3773 = vsel %vm1408, %v3769, %v3772
      %v3774 = vshrl.u32 %v3699, 16
      %v3776 = vshll.u32 %v3699, 16
      %v3778 = vrot.slane %v3776, 1
      %v3779 = vor.u32 %v3774, %v3778
      %v3780 = vshll.u32 %v3701, 16
      %v3782 = vrot.slane %v3780, 1
      %v3783 = vsel %vm1408, %v3779, %v3782
      %v3784 = vshrl.u32 %v3703, 16
      %v3786 = vshll.u32 %v3703, 16
      %v3788 = vrot.slane %v3786, 1
      %v3789 = vor.u32 %v3784, %v3788
      %v3790 = vshll.u32 %v3705, 16
      %v3792 = vrot.slane %v3790, 1
      %v3793 = vsel %vm1408, %v3789, %v3792
      %v3794 = vshrl.u32 %v3707, 16
      %v3796 = vshll.u32 %v3707, 16
      %v3798 = vrot.slane %v3796, 1
      %v3799 = vor.u32 %v3794, %v3798
      %v3800 = vshll.u32 %v3709, 16
      %v3802 = vrot.slane %v3800, 1
      %v3803 = vsel %vm1408, %v3799, %v3802
      %v3804 = vshrl.u32 %v3711, 16
      %v3806 = vshll.u32 %v3711, 16
      %v3808 = vrot.slane %v3806, 1
      %v3809 = vor.u32 %v3804, %v3808
      %v3810 = vshll.u32 %v3713, 16
      %v3812 = vrot.slane %v3810, 1
      %v3813 = vsel %vm1408, %v3809, %v3812
      %v3814 = vshrl.u32 %v3715, 16
      %v3816 = vshll.u32 %v3715, 16
      %v3818 = vrot.slane %v3816, 1
      %v3819 = vor.u32 %v3814, %v3818
      %v3820 = vshll.u32 %v3717, 16
      %v3822 = vrot.slane %v3820, 1
      %v3823 = vsel %vm1408, %v3819, %v3822
      %v3824 = vshrl.u32 %v3719, 16
      %v3826 = vshll.u32 %v3719, 16
      %v3828 = vrot.slane %v3826, 1
      %v3829 = vor.u32 %v3824, %v3828
      %v3830 = vshll.u32 %v3721, 16
      %v3832 = vrot.slane %v3830, 1
      %v3833 = vsel %vm1408, %v3829, %v3832
      %v3834 = vshrl.u32 %v3723, 16
      %v3836 = vshll.u32 %v3723, 16
      %v3838 = vrot.slane %v3836, 1
      %v3839 = vor.u32 %v3834, %v3838
      %v3840 = vshll.u32 %v3725, 16
      %v3842 = vrot.slane %v3840, 1
      %v3843 = vsel %vm1408, %v3839, %v3842
      %v3844 = vshrl.u32 %v3727, 16
      %v3846 = vshll.u32 %v3727, 16
      %v3848 = vrot.slane %v3846, 1
      %v3849 = vor.u32 %v3844, %v3848
      %v3850 = vshll.u32 %v3729, 16
      %v3852 = vrot.slane %v3850, 1
      %v3853 = vsel %vm1408, %v3849, %v3852
      %v3854 = vshrl.u32 %v3731, 16
      %v3856 = vshll.u32 %v3731, 16
      %v3858 = vrot.slane %v3856, 1
      %v3859 = vor.u32 %v3854, %v3858
      %v3860 = vshll.u32 %v3733, 16
      %v3862 = vrot.slane %v3860, 1
      %v3863 = vsel %vm1408, %v3859, %v3862
      %v3864 = vshrl.u32 %v3735, 16
      %v3866 = vshll.u32 %v3735, 16
      %v3868 = vrot.slane %v3866, 1
      %v3869 = vor.u32 %v3864, %v3868
      %v3870 = vshll.u32 %v3737, 16
      %v3872 = vrot.slane %v3870, 1
      %v3873 = vsel %vm1408, %v3869, %v3872
      %v3874 = vshrl.u32 %v3739, 16
      %v3876 = vshll.u32 %v3739, 16
      %v3878 = vrot.slane %v3876, 1
      %v3879 = vor.u32 %v3874, %v3878
      %v3880 = vshll.u32 %v3741, 16
      %v3882 = vrot.slane %v3880, 1
      %v3883 = vsel %vm1408, %v3879, %v3882
      %v3884 = vshrl.u32 %v3743, 16
      %v3886 = vshll.u32 %v3743, 16
      %v3888 = vrot.slane %v3886, 1
      %v3889 = vor.u32 %v3884, %v3888
      %v3890 = vshll.u32 %v3745, 16
      %v3892 = vrot.slane %v3890, 1
      %v3893 = vsel %vm1408, %v3889, %v3892
      %v3894 = vshrl.u32 %v3747, 16
      %v3896 = vshll.u32 %v3747, 16
      %v3898 = vrot.slane %v3896, 1
      %v3899 = vor.u32 %v3894, %v3898
      %v3900 = vshll.u32 %v3749, 16
      %v3902 = vrot.slane %v3900, 1
      %v3903 = vsel %vm1408, %v3899, %v3902
      %v3904 = vshrl.u32 %v3751, 16
      %v3906 = vshll.u32 %v3751, 16
      %v3908 = vrot.slane %v3906, 1
      %v3909 = vor.u32 %v3904, %v3908
      %v3910 = vshll.u32 %v3753, 16
      %v3912 = vrot.slane %v3910, 1
      %v3913 = vsel %vm1408, %v3909, %v3912
      %v3914 = vld [vmem:[%s380] sm:$0xf]
      %v3915 = vld [vmem:[%s380 + $0x4] sm:$0xf]
      %v3918 = vunpack.c.l.b16 %v3914
      %v3919 = vunpack.c.l.b16 %v3915
      %v3920 = vpack.c.b16 %v3919, %v3918
      %vm3922 = vcmask 130048
      %v3924 = vsel %vm3922, %v3763, 0
      %v3927 = vsel %vm3922, %v3773, 0
      %v3930 = vsel %vm3922, %v3783, 0
      %v3933 = vsel %vm3922, %v3793, 0
      %v3936 = vsel %vm3922, %v3803, 0
      %v3939 = vsel %vm3922, %v3813, 0
      %v3942 = vsel %vm3922, %v3823, 0
      %v3945 = vsel %vm3922, %v3833, 0
      %v3948 = vsel %vm3922, %v3843, 0
      %v3951 = vsel %vm3922, %v3853, 0
      %v3954 = vsel %vm3922, %v3863, 0
      %v3957 = vsel %vm3922, %v3873, 0
      %v3960 = vsel %vm3922, %v3883, 0
      %v3963 = vsel %vm3922, %v3893, 0
      %v3966 = vsel %vm3922, %v3903, 0
      %v3969 = vsel %vm3922, %v3913, 0
      %3971 = vmatprep.subr.bf16.mxu0 0
      %3972 = vmatpush1.bf16.msra.mxu0 0
      %3973 = vmatprep.subr.bf16.mxu0 0
      %3974 = vmatpush1.bf16.msra.mxu0 0
      %3975 = vmatprep.subr.bf16.mxu0 0
      %3976 = vmatpush1.bf16.msra.mxu0 0
      %3977 = vmatprep.subr.bf16.mxu0 0
      %3978 = vmatpush1.bf16.msra.mxu0 0
      %3979 = vmatprep.subr.bf16.mxu0 0
      %3980 = vmatpush1.bf16.msra.mxu0 0
      %3981 = vmatprep.subr.bf16.mxu0 0
      %3982 = vmatpush1.bf16.msra.mxu0 0
      %3983 = vmatprep.subr.bf16.mxu0 0
      %3984 = vmatpush1.bf16.msra.mxu0 0
      %3985 = vmatprep.subr.bf16.mxu0 0
      %3986 = vmatpush1.bf16.msra.mxu0 %v3920
      %3987 = vmatprep.subr.bf16.mxu0 0
      %3988 = vmatpush2.bf16.msra.mxu0 0
      %3989 = vmatprep.subr.bf16.mxu0 0
      %3990 = vmatpush2.bf16.msra.mxu0 0
      %3991 = vmatprep.subr.bf16.mxu0 0
      %3992 = vmatpush2.bf16.msra.mxu0 0
      %3993 = vmatprep.subr.bf16.mxu0 0
      %3994 = vmatpush2.bf16.msra.mxu0 0
      %3995 = vmatprep.subr.bf16.mxu0 0
      %3996 = vmatpush2.bf16.msra.mxu0 0
      %3997 = vmatprep.subr.bf16.mxu0 0
      %3998 = vmatpush2.bf16.msra.mxu0 0
      %3999 = vmatprep.subr.bf16.mxu0 0
      %4000 = vmatpush2.bf16.msra.mxu0 0
      %4001 = vmatprep.subr.bf16.mxu0 0
      %4002 = vmatpush2.bf16.msra.mxu0 0
      %4003 = vmatprep.mubr.bf16.mxu0 0
      %4004 = vmatmul.mubr.bf16.gmra.mxu0 %v3924
      %v4005 = vpop.f32.mrf.mxu0
      %v4006 = vadd.f32 0.0, %v4005
      %v4007 = vpop.f32.mrf.mxu0
      %v4008 = vpop.f32.mrf.mxu0
      %v4009 = vadd.f32 0.0, %v4008
      %v4010 = vpop.f32.mrf.mxu0
      %4011 = vmatprep.mubr.bf16.mxu0 0
      %4012 = vmatmul.mubr.bf16.gmra.mxu0 %v3927
      %v4013 = vpop.f32.mrf.mxu0
      %v4014 = vadd.f32 0.0, %v4013
      %v4015 = vpop.f32.mrf.mxu0
      %v4016 = vpop.f32.mrf.mxu0
      %v4017 = vadd.f32 0.0, %v4016
      %v4018 = vpop.f32.mrf.mxu0
      %4019 = vmatprep.mubr.bf16.mxu0 0
      %4020 = vmatmul.mubr.bf16.gmra.mxu0 %v3930
      %v4021 = vpop.f32.mrf.mxu0
      %v4022 = vadd.f32 0.0, %v4021
      %v4023 = vpop.f32.mrf.mxu0
      %v4024 = vpop.f32.mrf.mxu0
      %v4025 = vadd.f32 0.0, %v4024
      %v4026 = vpop.f32.mrf.mxu0
      %4027 = vmatprep.mubr.bf16.mxu0 0
      %4028 = vmatmul.mubr.bf16.gmra.mxu0 %v3933
      %v4029 = vpop.f32.mrf.mxu0
      %v4030 = vadd.f32 0.0, %v4029
      %v4031 = vpop.f32.mrf.mxu0
      %v4032 = vpop.f32.mrf.mxu0
      %v4033 = vadd.f32 0.0, %v4032
      %v4034 = vpop.f32.mrf.mxu0
      %4035 = vmatprep.mubr.bf16.mxu0 0
      %4036 = vmatmul.mubr.bf16.gmra.mxu0 %v3936
      %v4037 = vpop.f32.mrf.mxu0
      %v4038 = vadd.f32 0.0, %v4037
      %v4039 = vpop.f32.mrf.mxu0
      %v4040 = vpop.f32.mrf.mxu0
      %v4041 = vadd.f32 0.0, %v4040
      %v4042 = vpop.f32.mrf.mxu0
      %4043 = vmatprep.mubr.bf16.mxu0 0
      %4044 = vmatmul.mubr.bf16.gmra.mxu0 %v3939
      %v4045 = vpop.f32.mrf.mxu0
      %v4046 = vadd.f32 0.0, %v4045
      %v4047 = vpop.f32.mrf.mxu0
      %v4048 = vpop.f32.mrf.mxu0
      %v4049 = vadd.f32 0.0, %v4048
      %v4050 = vpop.f32.mrf.mxu0
      %4051 = vmatprep.mubr.bf16.mxu0 0
      %4052 = vmatmul.mubr.bf16.gmra.mxu0 %v3942
      %v4053 = vpop.f32.mrf.mxu0
      %v4054 = vadd.f32 0.0, %v4053
      %v4055 = vpop.f32.mrf.mxu0
      %v4056 = vpop.f32.mrf.mxu0
      %v4057 = vadd.f32 0.0, %v4056
      %v4058 = vpop.f32.mrf.mxu0
      %4059 = vmatprep.mubr.bf16.mxu0 0
      %4060 = vmatmul.mubr.bf16.gmra.mxu0 %v3945
      %v4061 = vpop.f32.mrf.mxu0
      %v4062 = vadd.f32 0.0, %v4061
      %v4063 = vpop.f32.mrf.mxu0
      %v4064 = vpop.f32.mrf.mxu0
      %v4065 = vadd.f32 0.0, %v4064
      %v4066 = vpop.f32.mrf.mxu0
      %4067 = vmatprep.mubr.bf16.mxu0 0
      %4068 = vmatmul.mubr.bf16.gmra.mxu0 %v3948
      %v4069 = vpop.f32.mrf.mxu0
      %v4070 = vadd.f32 0.0, %v4069
      %v4071 = vpop.f32.mrf.mxu0
      %v4072 = vpop.f32.mrf.mxu0
      %v4073 = vadd.f32 0.0, %v4072
      %v4074 = vpop.f32.mrf.mxu0
      %4075 = vmatprep.mubr.bf16.mxu0 0
      %4076 = vmatmul.mubr.bf16.gmra.mxu0 %v3951
      %v4077 = vpop.f32.mrf.mxu0
      %v4078 = vadd.f32 0.0, %v4077
      %v4079 = vpop.f32.mrf.mxu0
      %v4080 = vpop.f32.mrf.mxu0
      %v4081 = vadd.f32 0.0, %v4080
      %v4082 = vpop.f32.mrf.mxu0
      %4083 = vmatprep.mubr.bf16.mxu0 0
      %4084 = vmatmul.mubr.bf16.gmra.mxu0 %v3954
      %v4085 = vpop.f32.mrf.mxu0
      %v4086 = vadd.f32 0.0, %v4085
      %v4087 = vpop.f32.mrf.mxu0
      %v4088 = vpop.f32.mrf.mxu0
      %v4089 = vadd.f32 0.0, %v4088
      %v4090 = vpop.f32.mrf.mxu0
      %4091 = vmatprep.mubr.bf16.mxu0 0
      %4092 = vmatmul.mubr.bf16.gmra.mxu0 %v3957
      %v4093 = vpop.f32.mrf.mxu0
      %v4094 = vadd.f32 0.0, %v4093
      %v4095 = vpop.f32.mrf.mxu0
      %v4096 = vpop.f32.mrf.mxu0
      %v4097 = vadd.f32 0.0, %v4096
      %v4098 = vpop.f32.mrf.mxu0
      %4099 = vmatprep.mubr.bf16.mxu0 0
      %4100 = vmatmul.mubr.bf16.gmra.mxu0 %v3960
      %v4101 = vpop.f32.mrf.mxu0
      %v4102 = vadd.f32 0.0, %v4101
      %v4103 = vpop.f32.mrf.mxu0
      %v4104 = vpop.f32.mrf.mxu0
      %v4105 = vadd.f32 0.0, %v4104
      %v4106 = vpop.f32.mrf.mxu0
      %4107 = vmatprep.mubr.bf16.mxu0 0
      %4108 = vmatmul.mubr.bf16.gmra.mxu0 %v3963
      %v4109 = vpop.f32.mrf.mxu0
      %v4110 = vadd.f32 0.0, %v4109
      %v4111 = vpop.f32.mrf.mxu0
      %v4112 = vpop.f32.mrf.mxu0
      %v4113 = vadd.f32 0.0, %v4112
      %v4114 = vpop.f32.mrf.mxu0
      %4115 = vmatprep.mubr.bf16.mxu0 0
      %4116 = vmatmul.mubr.bf16.gmra.mxu0 %v3966
      %v4117 = vpop.f32.mrf.mxu0
      %v4118 = vadd.f32 0.0, %v4117
      %v4119 = vpop.f32.mrf.mxu0
      %v4120 = vpop.f32.mrf.mxu0
      %v4121 = vadd.f32 0.0, %v4120
      %v4122 = vpop.f32.mrf.mxu0
      %4123 = vmatprep.mubr.bf16.mxu0 0
      %4124 = vmatmul.mubr.bf16.gmra.mxu0 %v3969
      %v4125 = vpop.f32.mrf.mxu0
      %v4126 = vadd.f32 0.0, %v4125
      %v4127 = vpop.f32.mrf.mxu0
      %v4128 = vpop.f32.mrf.mxu0
      %v4129 = vadd.f32 0.0, %v4128
      %v4130 = vpop.f32.mrf.mxu0
      %4131 = vdwg.mxu0
      %v4132 = vsel %vm730, %v4006, 0.0
      %v4133 = vsel %vm730, %v4009, 0.0
      %v4134 = vadd.f32 %v4132, %v4133
      %v4135 = vsel %vm730, %v4014, 0.0
      %v4136 = vadd.f32 %v4134, %v4135
      %v4137 = vsel %vm730, %v4017, 0.0
      %v4138 = vadd.f32 %v4136, %v4137
      %v4139 = vsel %vm730, %v4022, 0.0
      %v4140 = vadd.f32 %v4138, %v4139
      %v4141 = vsel %vm730, %v4025, 0.0
      %v4142 = vadd.f32 %v4140, %v4141
      %v4143 = vsel %vm730, %v4030, 0.0
      %v4144 = vadd.f32 %v4142, %v4143
      %v4145 = vsel %vm730, %v4033, 0.0
      %v4146 = vadd.f32 %v4144, %v4145
      %v4147 = vsel %vm730, %v4038, 0.0
      %v4148 = vadd.f32 %v4146, %v4147
      %v4149 = vsel %vm730, %v4041, 0.0
      %v4150 = vadd.f32 %v4148, %v4149
      %v4151 = vsel %vm730, %v4046, 0.0
      %v4152 = vadd.f32 %v4150, %v4151
      %v4153 = vsel %vm730, %v4049, 0.0
      %v4154 = vadd.f32 %v4152, %v4153
      %v4155 = vsel %vm730, %v4054, 0.0
      %v4156 = vadd.f32 %v4154, %v4155
      %v4157 = vsel %vm730, %v4057, 0.0
      %v4158 = vadd.f32 %v4156, %v4157
      %v4159 = vsel %vm730, %v4062, 0.0
      %v4160 = vadd.f32 %v4158, %v4159
      %v4161 = vsel %vm730, %v4065, 0.0
      %v4162 = vadd.f32 %v4160, %v4161
      %v4163 = vsel %vm730, %v4070, 0.0
      %v4164 = vadd.f32 %v4162, %v4163
      %v4165 = vsel %vm730, %v4073, 0.0
      %v4166 = vadd.f32 %v4164, %v4165
      %v4167 = vsel %vm730, %v4078, 0.0
      %v4168 = vadd.f32 %v4166, %v4167
      %v4169 = vsel %vm730, %v4081, 0.0
      %v4170 = vadd.f32 %v4168, %v4169
      %v4171 = vsel %vm730, %v4086, 0.0
      %v4172 = vadd.f32 %v4170, %v4171
      %v4173 = vsel %vm730, %v4089, 0.0
      %v4174 = vadd.f32 %v4172, %v4173
      %v4175 = vsel %vm730, %v4094, 0.0
      %v4176 = vadd.f32 %v4174, %v4175
      %v4177 = vsel %vm730, %v4097, 0.0
      %v4178 = vadd.f32 %v4176, %v4177
      %v4179 = vsel %vm730, %v4102, 0.0
      %v4180 = vadd.f32 %v4178, %v4179
      %v4181 = vsel %vm730, %v4105, 0.0
      %v4182 = vadd.f32 %v4180, %v4181
      %v4183 = vsel %vm730, %v4110, 0.0
      %v4184 = vadd.f32 %v4182, %v4183
      %v4185 = vsel %vm730, %v4113, 0.0
      %v4186 = vadd.f32 %v4184, %v4185
      %v4187 = vsel %vm730, %v4118, 0.0
      %v4188 = vadd.f32 %v4186, %v4187
      %v4189 = vsel %vm730, %v4121, 0.0
      %v4190 = vadd.f32 %v4188, %v4189
      %v4191 = vsel %vm730, %v4126, 0.0
      %v4192 = vadd.f32 %v4190, %v4191
      %v4193 = vsel %vm730, %v4129, 0.0
      %v4194 = vadd.f32 %v4192, %v4193
      %v4195 = vrot.slane %v4194, 4
      %v4196 = vadd.f32 %v4194, %v4195
      %v4197 = vrot.slane %v4196, 2
      %v4198 = vadd.f32 %v4196, %v4197
      %v4199 = vrot.slane %v4198, 1
      %v4200 = vadd.f32 %v4198, %v4199
      %v4201 = vadd.f32 %v2600, %v4200
      %v4202 = vmul.f32 %v4006, %v4006
      %v4203 = vmul.f32 %v4009, %v4009
      %v4204 = vmul.f32 %v4014, %v4014
      %v4205 = vmul.f32 %v4017, %v4017
      %v4206 = vmul.f32 %v4022, %v4022
      %v4207 = vmul.f32 %v4025, %v4025
      %v4208 = vmul.f32 %v4030, %v4030
      %v4209 = vmul.f32 %v4033, %v4033
      %v4210 = vmul.f32 %v4038, %v4038
      %v4211 = vmul.f32 %v4041, %v4041
      %v4212 = vmul.f32 %v4046, %v4046
      %v4213 = vmul.f32 %v4049, %v4049
      %v4214 = vmul.f32 %v4054, %v4054
      %v4215 = vmul.f32 %v4057, %v4057
      %v4216 = vmul.f32 %v4062, %v4062
      %v4217 = vmul.f32 %v4065, %v4065
      %v4218 = vmul.f32 %v4070, %v4070
      %v4219 = vmul.f32 %v4073, %v4073
      %v4220 = vmul.f32 %v4078, %v4078
      %v4221 = vmul.f32 %v4081, %v4081
      %v4222 = vmul.f32 %v4086, %v4086
      %v4223 = vmul.f32 %v4089, %v4089
      %v4224 = vmul.f32 %v4094, %v4094
      %v4225 = vmul.f32 %v4097, %v4097
      %v4226 = vmul.f32 %v4102, %v4102
      %v4227 = vmul.f32 %v4105, %v4105
      %v4228 = vmul.f32 %v4110, %v4110
      %v4229 = vmul.f32 %v4113, %v4113
      %v4230 = vmul.f32 %v4118, %v4118
      %v4231 = vmul.f32 %v4121, %v4121
      %v4232 = vmul.f32 %v4126, %v4126
      %v4233 = vmul.f32 %v4129, %v4129
      %v4234 = vsel %vm730, %v4202, 0.0
      %v4235 = vsel %vm730, %v4203, 0.0
      %v4236 = vadd.f32 %v4234, %v4235
      %v4237 = vsel %vm730, %v4204, 0.0
      %v4238 = vadd.f32 %v4236, %v4237
      %v4239 = vsel %vm730, %v4205, 0.0
      %v4240 = vadd.f32 %v4238, %v4239
      %v4241 = vsel %vm730, %v4206, 0.0
      %v4242 = vadd.f32 %v4240, %v4241
      %v4243 = vsel %vm730, %v4207, 0.0
      %v4244 = vadd.f32 %v4242, %v4243
      %v4245 = vsel %vm730, %v4208, 0.0
      %v4246 = vadd.f32 %v4244, %v4245
      %v4247 = vsel %vm730, %v4209, 0.0
      %v4248 = vadd.f32 %v4246, %v4247
      %v4249 = vsel %vm730, %v4210, 0.0
      %v4250 = vadd.f32 %v4248, %v4249
      %v4251 = vsel %vm730, %v4211, 0.0
      %v4252 = vadd.f32 %v4250, %v4251
      %v4253 = vsel %vm730, %v4212, 0.0
      %v4254 = vadd.f32 %v4252, %v4253
      %v4255 = vsel %vm730, %v4213, 0.0
      %v4256 = vadd.f32 %v4254, %v4255
      %v4257 = vsel %vm730, %v4214, 0.0
      %v4258 = vadd.f32 %v4256, %v4257
      %v4259 = vsel %vm730, %v4215, 0.0
      %v4260 = vadd.f32 %v4258, %v4259
      %v4261 = vsel %vm730, %v4216, 0.0
      %v4262 = vadd.f32 %v4260, %v4261
      %v4263 = vsel %vm730, %v4217, 0.0
      %v4264 = vadd.f32 %v4262, %v4263
      %v4265 = vsel %vm730, %v4218, 0.0
      %v4266 = vadd.f32 %v4264, %v4265
      %v4267 = vsel %vm730, %v4219, 0.0
      %v4268 = vadd.f32 %v4266, %v4267
      %v4269 = vsel %vm730, %v4220, 0.0
      %v4270 = vadd.f32 %v4268, %v4269
      %v4271 = vsel %vm730, %v4221, 0.0
      %v4272 = vadd.f32 %v4270, %v4271
      %v4273 = vsel %vm730, %v4222, 0.0
      %v4274 = vadd.f32 %v4272, %v4273
      %v4275 = vsel %vm730, %v4223, 0.0
      %v4276 = vadd.f32 %v4274, %v4275
      %v4277 = vsel %vm730, %v4224, 0.0
      %v4278 = vadd.f32 %v4276, %v4277
      %v4279 = vsel %vm730, %v4225, 0.0
      %v4280 = vadd.f32 %v4278, %v4279
      %v4281 = vsel %vm730, %v4226, 0.0
      %v4282 = vadd.f32 %v4280, %v4281
      %v4283 = vsel %vm730, %v4227, 0.0
      %v4284 = vadd.f32 %v4282, %v4283
      %v4285 = vsel %vm730, %v4228, 0.0
      %v4286 = vadd.f32 %v4284, %v4285
      %v4287 = vsel %vm730, %v4229, 0.0
      %v4288 = vadd.f32 %v4286, %v4287
      %v4289 = vsel %vm730, %v4230, 0.0
      %v4290 = vadd.f32 %v4288, %v4289
      %v4291 = vsel %vm730, %v4231, 0.0
      %v4292 = vadd.f32 %v4290, %v4291
      %v4293 = vsel %vm730, %v4232, 0.0
      %v4294 = vadd.f32 %v4292, %v4293
      %v4295 = vsel %vm730, %v4233, 0.0
      %v4296 = vadd.f32 %v4294, %v4295
      %v4297 = vrot.slane %v4296, 4
      %v4298 = vadd.f32 %v4296, %v4297
      %v4299 = vrot.slane %v4298, 2
      %v4300 = vadd.f32 %v4298, %v4299
      %v4301 = vrot.slane %v4300, 1
      %v4302 = vadd.f32 %v4300, %v4301
      %v4303 = vadd.f32 %v2702, %v4302
      %4304 = vxpose.xlu0.b32.start [1/16] %v4006, 128
      %4305 = vxpose.xlu0.b32.cont [2/16] %v4009, 128
      %4306 = vxpose.xlu0.b32.cont [3/16] %v4014, 128
      %4307 = vxpose.xlu0.b32.cont [4/16] %v4017, 128
      %4308 = vxpose.xlu0.b32.cont [5/16] %v4022, 128
      %4309 = vxpose.xlu0.b32.cont [6/16] %v4025, 128
      %4310 = vxpose.xlu0.b32.cont [7/16] %v4030, 128
      %4311 = vxpose.xlu0.b32.cont [8/16] %v4033, 128
      %4312 = vxpose.xlu0.b32.cont [9/16] %v4038, 128
      %4313 = vxpose.xlu0.b32.cont [10/16] %v4041, 128
      %4314 = vxpose.xlu0.b32.cont [11/16] %v4046, 128
      %4315 = vxpose.xlu0.b32.cont [12/16] %v4049, 128
      %4316 = vxpose.xlu0.b32.cont [13/16] %v4054, 128
      %4317 = vxpose.xlu0.b32.cont [14/16] %v4057, 128
      %4318 = vxpose.xlu0.b32.cont [15/16] %v4062, 128
      %4319 = vxpose.xlu0.b32.end [16/16] %v4065, 128
      %v4320 = vpop.trf.xlu0
      %v4321 = vpop.trf.xlu0
      %v4322 = vpop.trf.xlu0
      %v4323 = vpop.trf.xlu0
      %v4324 = vpop.trf.xlu0
      %v4325 = vpop.trf.xlu0
      %v4326 = vpop.trf.xlu0
      %v4327 = vpop.trf.xlu0
      %v4328 = vpop.trf.xlu0
      %v4329 = vpop.trf.xlu0
      %v4330 = vpop.trf.xlu0
      %v4331 = vpop.trf.xlu0
      %v4332 = vpop.trf.xlu0
      %v4333 = vpop.trf.xlu0
      %v4334 = vpop.trf.xlu0
      %v4335 = vpop.trf.xlu0
      %4336 = vxpose.xlu0.b32.start [1/16] %v4070, 128
      %4337 = vxpose.xlu0.b32.cont [2/16] %v4073, 128
      %4338 = vxpose.xlu0.b32.cont [3/16] %v4078, 128
      %4339 = vxpose.xlu0.b32.cont [4/16] %v4081, 128
      %4340 = vxpose.xlu0.b32.cont [5/16] %v4086, 128
      %4341 = vxpose.xlu0.b32.cont [6/16] %v4089, 128
      %4342 = vxpose.xlu0.b32.cont [7/16] %v4094, 128
      %4343 = vxpose.xlu0.b32.cont [8/16] %v4097, 128
      %4344 = vxpose.xlu0.b32.cont [9/16] %v4102, 128
      %4345 = vxpose.xlu0.b32.cont [10/16] %v4105, 128
      %4346 = vxpose.xlu0.b32.cont [11/16] %v4110, 128
      %4347 = vxpose.xlu0.b32.cont [12/16] %v4113, 128
      %4348 = vxpose.xlu0.b32.cont [13/16] %v4118, 128
      %4349 = vxpose.xlu0.b32.cont [14/16] %v4121, 128
      %4350 = vxpose.xlu0.b32.cont [15/16] %v4126, 128
      %4351 = vxpose.xlu0.b32.end [16/16] %v4129, 128
      %v4352 = vpop.trf.xlu0
      %v4353 = vpop.trf.xlu0
      %v4354 = vpop.trf.xlu0
      %v4355 = vpop.trf.xlu0
      %v4356 = vpop.trf.xlu0
      %v4357 = vpop.trf.xlu0
      %v4358 = vpop.trf.xlu0
      %v4359 = vpop.trf.xlu0
      %v4360 = vpop.trf.xlu0
      %v4361 = vpop.trf.xlu0
      %v4362 = vpop.trf.xlu0
      %v4363 = vpop.trf.xlu0
      %v4364 = vpop.trf.xlu0
      %v4365 = vpop.trf.xlu0
      %v4366 = vpop.trf.xlu0
      %v4367 = vpop.trf.xlu0
      %v4368 = vpack.c.bf16 %v4320, %v4320
      %v4369 = vpack.c.bf16 %v4352, %v4352
      %v4372 = vunpack.c.l.b16 %v4368
      %v4373 = vunpack.c.l.b16 %v4369
      %v4374 = vpack.c.b16 %v4373, %v4372
      %s4376 = scalar_lea.vmem %s389, 24
      %4377 = vst [vmem:[%s4376] sm:$0xff] %v4374
      %vm4378 = vcmask 57344
      %4379 = vst.msk [vmem:[%s395] sm:$0x1] %vm4378, %v4201
      %4380 = vst.msk [vmem:[%s401] sm:$0x1] %vm4378, %v4303
      %p4381 = scmp.lt.s32.totalorder %s23, 1
      %s4382 = scalar_select %p4381, %s23, 1
      %p4383 = scmp.lt.s32.totalorder %s24, 0
      %s4384 = scalar_select %p4383, %s24, 0
      %s4385 = smul.addr %s4384, 2
      %s4386 = smul.addr %s4382, 8
      %s4387 = sadd.s32 %s4385, %s4386
      %s4388 = smul.addr %s4387, 4
      %s4389 = scalar_lea.vmem %s5, %s4388
      %p4390 = scmp.lt.s32.totalorder %s23, 1
      %s4391 = scalar_select %p4390, %s23, 1
      %p4392 = scmp.lt.s32.totalorder %s24, 0
      %s4393 = scalar_select %p4392, %s24, 0
      %s4394 = sadd.s32 %s4393, %s4391
      %s4395 = scalar_lea.vmem %s6, %s4394
      %p4396 = scmp.lt.s32.totalorder %s23, 1
      %s4397 = scalar_select %p4396, %s23, 1
      %p4398 = scmp.lt.s32.totalorder %s24, 0
      %s4399 = scalar_select %p4398, %s24, 0
      %s4400 = sadd.s32 %s4399, %s4397
      %s4401 = scalar_lea.vmem %s7, %s4400
      // Predicated region
      $region41: #{unet_deconv_block.1} parent=39 // pred_check
        %p4402 = pneg %p181
      $region42: #{unet_deconv_block.1} parent=39 // pred_check_branch
        %4404 = sbr.rel (%p4402) target = $region44
      $region43: #{unet_deconv_block.1} parent=39 // pred_region
        _
      $region44: #{unet_deconv_block.1} parent=39 // pred_fallthru
        _
      // Predicated region
      $region45: #{unet_deconv_block.1} parent=39 // pred_check
        %p4405 = pneg %p209
      $region46: #{unet_deconv_block.1} parent=39 // pred_check_branch
        %4407 = sbr.rel (%p4405) target = $region48
      $region47: #{unet_deconv_block.1} parent=39 // pred_region
        _
      $region48: #{unet_deconv_block.1} parent=39 // pred_fallthru
        _
      // Predicated region
      $region49: #{unet_deconv_block.1} parent=39 // pred_check
        %p4408 = pneg %p237
      $region50: #{unet_deconv_block.1} parent=39 // pred_check_branch
        %4410 = sbr.rel (%p4408) target = $region52
      $region51: #{unet_deconv_block.1} parent=39 // pred_region
        _
      $region52: #{unet_deconv_block.1} parent=39 // pred_fallthru
        _
    $region40: #{unet_deconv_block.1} parent=5 // pred_fallthru
      _
    %p4411 = scmp.le.s32.totalorder 2, %s14
    // Predicated region
    $region53: #{unet_deconv_block.1} parent=5 // pred_check
      %p4412 = pneg %p4411
    $region54: #{unet_deconv_block.1} parent=5 // pred_check_branch
      %4414 = sbr.rel (%p4412) target = $region56
    $region55: #{unet_deconv_block.1} parent=5 // pred_region
      %s4415 = ssub.s32 %s14, 2
      // Predicated region
      $region57: #{unet_deconv_block.1} parent=55 // pred_check
        %p4416 = pneg %p187
      $region58: #{unet_deconv_block.1} parent=55 // pred_check_branch
        %4418 = sbr.rel (%p4416) target = $region60
      $region59: #{unet_deconv_block.1} parent=55 // pred_region
        %p4419 = scmp.lt.s32.totalorder %s25, 1
        %s4420 = scalar_select %p4419, %s25, 1
        %p4421 = scmp.lt.s32.totalorder %s26, 0
        %s4422 = scalar_select %p4421, %s26, 0
        %s4423 = smul.addr %s4422, 2
        %s4424 = smul.addr %s4420, 8
        %s4425 = sadd.s32 %s4423, %s4424
        %s4426 = smul.addr %s4425, 4
        %s4427 = scalar_lea.vmem %s5, %s4426
      $region60: #{unet_deconv_block.1} parent=55 // pred_fallthru
        _
      // Predicated region
      $region61: #{unet_deconv_block.1} parent=55 // pred_check
        %p4428 = pneg %p215
      $region62: #{unet_deconv_block.1} parent=55 // pred_check_branch
        %4430 = sbr.rel (%p4428) target = $region64
      $region63: #{unet_deconv_block.1} parent=55 // pred_region
        %p4431 = scmp.lt.s32.totalorder %s25, 1
        %s4432 = scalar_select %p4431, %s25, 1
        %p4433 = scmp.lt.s32.totalorder %s26, 0
        %s4434 = scalar_select %p4433, %s26, 0
        %s4435 = sadd.s32 %s4434, %s4432
        %s4436 = scalar_lea.vmem %s6, %s4435
      $region64: #{unet_deconv_block.1} parent=55 // pred_fallthru
        _
      // Predicated region
      $region65: #{unet_deconv_block.1} parent=55 // pred_check
        %p4437 = pneg %p243
      $region66: #{unet_deconv_block.1} parent=55 // pred_check_branch
        %4439 = sbr.rel (%p4437) target = $region68
      $region67: #{unet_deconv_block.1} parent=55 // pred_region
        %p4440 = scmp.lt.s32.totalorder %s25, 1
        %s4441 = scalar_select %p4440, %s25, 1
        %p4442 = scmp.lt.s32.totalorder %s26, 0
        %s4443 = scalar_select %p4442, %s26, 0
        %s4444 = sadd.s32 %s4443, %s4441
        %s4445 = scalar_lea.vmem %s7, %s4444
      $region68: #{unet_deconv_block.1} parent=55 // pred_fallthru
        _
    $region56: #{unet_deconv_block.1} parent=5 // pred_fallthru
      _
  $region6: #{unet_deconv_block.1} parent=0 // loop_footer
    %s18 = sadd.s32 1, %s14
  $region7: #{unet_deconv_block.1} parent=0 // loop_footer_branch
    %13 = sbr.rel target = $region3
  $region8: #{unet_deconv_block.1} parent=0 // loop_exit
    _

</llo_original>
